<compile_context>
chip_gen: v7x
topology: tpu7x:2x2x1
jax: 0.10.0
libtpu: 0.0.40
codegen_flags: <defaults>
</compile_context>

<pallas_src>
import math
from functools import partial

import jax
import jax.numpy as jnp
import numpy as np
from jax.experimental import pallas as pl
from jax.experimental.pallas import tpu as pltpu

# ---- small, module-consistent config (input_dim=2, nhead=4, 2 layers) ----
B = 2            # batch
IN_DIM = 2       # input_dim
IN_PAD = 8       # zero-padded contraction dim for the input projection
SEQ = 32         # seq_len (small)
D_MODEL = 64     # d_model
NHEAD = 4
HEAD_DIM = D_MODEL // NHEAD
FF = 128         # dim_feedforward (small)
NLAYERS = 2
LN_EPS = 1e-5
OUT_DIM = 2
OUT_PAD = 128    # lane-dense padded output width

# rows of the packed per-layer vector table (NLAYERS, 7, 1, D_MODEL)
_BK, _BATTN, _G1, _BE1, _BFF2, _G2, _BE2 = range(7)

_HI = jax.lax.Precision.HIGHEST


def _layer_norm(x, gamma, beta):
    mu = jnp.mean(x, axis=-1, keepdims=True)
    var = jnp.mean(jnp.square(x - mu), axis=-1, keepdims=True)
    return (x - mu) * jax.lax.rsqrt(var + LN_EPS) * gamma + beta


def transformer_kernel(x_ref, w_in_ref, b_in_ref, wq_ref, bq_ref, wk_ref,
                       wvo_ref, wff1_ref, bff1_ref, wff2_ref, vec_ref,
                       mask_ref, pool_ref, wfc_ref, bfc_ref, out_ref):
    f32, bf16 = jnp.float32, jnp.bfloat16

    # Input projection inside the kernel (K padded 2->8 with zeros; kept f32 —
    # it is a single tiny MXU push and keeps the residual stream exact here).
    h = jnp.dot(x_ref[...], w_in_ref[...], preferred_element_type=f32) + b_in_ref[...]

    mask_bias = mask_ref[...]                          # (n, n) block-diagonal, f32

    for l in range(NLAYERS):
        # ---------------- self attention (post-norm encoder layer) ----------
        h_bf = h.astype(bf16)
        # Full K projection once; ONE transpose per layer; heads are then
        # sliced on the sublane axis (offsets are multiples of 16 -> free).
        k = jnp.dot(h_bf, wk_ref[l], preferred_element_type=f32) + vec_ref[l, _BK]
        kT_bf = k.T.astype(bf16)                       # (D_MODEL, n)

        attn = None                                    # f32 head accumulator
        for hh in range(NHEAD):                        # static 4-iter loop
            lo = hh * HEAD_DIM
            # Per-head Q produced at lane offset 0; 1/sqrt(d) folded into weights.
            qh = (jnp.dot(h_bf, wq_ref[l, hh], preferred_element_type=f32)
                  + bq_ref[l, hh]).astype(bf16)        # (n, HEAD_DIM)
            s = jnp.dot(qh, kT_bf[lo:lo + HEAD_DIM, :],
                        preferred_element_type=f32) + mask_bias
            s = s - jnp.max(s, axis=-1, keepdims=True)
            e = jnp.exp(s)
            # exact reciprocal: bf16 matmul operands already spend the
            # tolerance budget, so keep the softmax denominator tight.
            p = e * pl.reciprocal(jnp.sum(e, axis=-1, keepdims=True), approx=False)
            # W_o folded into W_v at pack time: contrib = p @ (h @ W_vo[l,hh]).
            vph = jnp.dot(h_bf, wvo_ref[l, hh], preferred_element_type=f32)
            contrib = jnp.dot(p.astype(bf16), vph.astype(bf16),
                              preferred_element_type=f32)
            attn = contrib if attn is None else attn + contrib
        attn = attn + vec_ref[l, _BATTN]               # b_v @ W_o + b_o, added once
        h = _layer_norm(h + attn, vec_ref[l, _G1], vec_ref[l, _BE1])

        # ---------------- feed-forward ----------------
        h_bf = h.astype(bf16)
        ff = jnp.dot(h_bf, wff1_ref[l], preferred_element_type=f32) + bff1_ref[l]
        ff = jnp.maximum(ff, 0.0).astype(bf16)         # ReLU (PyTorch default)
        ff = jnp.dot(ff, wff2_ref[l], preferred_element_type=f32) + vec_ref[l, _BFF2]
        h = _layer_norm(h + ff, vec_ref[l, _G2], vec_ref[l, _BE2])

    # Segmented mean over each batch element via the precomputed pooling matrix
    # (no in-kernel reshape), then the final fc into a lane-dense output block.
    pooled = jnp.dot(pool_ref[...], h.astype(bf16), preferred_element_type=f32)
    out_ref[...] = (jnp.dot(pooled.astype(bf16), wfc_ref[...],
                            preferred_element_type=f32) + bfc_ref[...])


def pack_params(p):
    """Re-layout PyTorch-style params into the kernel's packed operands."""
    bf16 = jnp.bfloat16
    L, D, H, HD = NLAYERS, D_MODEL, NHEAD, HEAD_DIM
    scale = 1.0 / math.sqrt(HD)

    # q|k|v column blocks of the (L, D, 3D) in-proj used by the in-file reference.
    # NOTE: importing a real PyTorch in_proj_weight (3D, D) needs a transpose +
    # row-block split before this packing.
    w_q = p['wqkv'][:, :, 0 * D:1 * D]
    w_k = p['wqkv'][:, :, 1 * D:2 * D]
    w_v = p['wqkv'][:, :, 2 * D:3 * D]
    b_q = p['bqkv'][:, 0, 0 * D:1 * D]
    b_k = p['bqkv'][:, 0, 1 * D:2 * D]
    b_v = p['bqkv'][:, 0, 2 * D:3 * D]

    # Per-head, pre-scaled Q projection: (L, H, D, HD); bias (L, H, 1, HD).
    wq = (w_q.reshape(L, D, H, HD).transpose(0, 2, 1, 3) * scale).astype(bf16)
    bq = (b_q.reshape(L, H, HD) * scale)[:, :, None, :].astype(jnp.float32)

    wk = w_k.astype(bf16)                                            # (L, D, D)

    # Fold W_o into W_v per head: W_vo[l,h] = W_v[:, h-block] @ W_o[h-block, :].
    w_v_h = w_v.reshape(L, D, H, HD)
    w_o_h = p['wo'].reshape(L, H, HD, D)
    wvo = jnp.einsum('ldhk,lhke->lhde', w_v_h, w_o_h, precision=_HI).astype(bf16)
    # softmax rows sum to 1 -> the V bias folds through W_o into one add.
    b_attn = jnp.einsum('ld,lde->le', b_v, p['wo'], precision=_HI) + p['bo'][:, 0, :]

    vec = jnp.stack(
        [b_k, b_attn,
         p['g1'][:, 0, :], p['be1'][:, 0, :],
         p['bff2'][:, 0, :],
         p['g2'][:, 0, :], p['be2'][:, 0, :]],
        axis=1)[:, :, None, :]                                       # (L, 7, 1, D)

    w_in = jnp.pad(p['w_in'], ((0, IN_PAD - IN_DIM), (0, 0)))        # (8, D) f32
    w_fc = jnp.pad(p['wfc'], ((0, 0), (0, OUT_PAD - OUT_DIM))).astype(bf16)
    b_fc = jnp.pad(p['bfc'], ((0, 0), (0, OUT_PAD - OUT_DIM)))

    return (w_in, p['b_in'], wq, bq, wk, wvo,
            p['wff1'].astype(bf16), p['bff1'], p['wff2'].astype(bf16),
            vec, w_fc, b_fc)


def transformer_forward(x_ncl, params):
    """x_ncl: (B, IN_DIM, SEQ) float32, PyTorch (N, C, L) layout."""
    n = B * SEQ
    x = jnp.transpose(x_ncl, (0, 2, 1)).astype(jnp.float32).reshape(n, IN_DIM)
    x_pad = jnp.pad(x, ((0, 0), (0, IN_PAD - IN_DIM)))               # (n, 8)

    (w_in, b_in, wq, bq, wk, wvo, wff1, bff1, wff2, vec, w_fc, b_fc) = \
        pack_params(params)

    # Trace-time constants: block-diagonal batch mask and mean-pooling matrix.
    rows = np.arange(n) // SEQ
    mask_bias = jnp.asarray(
        np.where(rows[:, None] == rows[None, :], 0.0, -1e9), dtype=jnp.float32)
    pool = jnp.asarray(
        (np.arange(B)[:, None] == rows[None, :]).astype(np.float32) / SEQ,
        dtype=jnp.bfloat16)

    operands = (x_pad, w_in, b_in, wq, bq, wk, wvo, wff1, bff1, wff2, vec,
                mask_bias, pool, w_fc, b_fc)

    vmem = pl.BlockSpec(memory_space=pltpu.MemorySpace.VMEM)         # whole array in VMEM
    out = pl.pallas_call(
        transformer_kernel,
        out_shape=jax.ShapeDtypeStruct((B, OUT_PAD), jnp.float32),
        in_specs=[vmem] * len(operands),
        out_specs=vmem,
    )(*operands)
    return out[:, :OUT_DIM]                                          # (B, 2)


# ------------------------- pure-JAX reference -------------------------
def ref_forward(x_ncl, p):
    dot = partial(jnp.matmul, precision=_HI)
    x = jnp.transpose(x_ncl, (0, 2, 1)).astype(jnp.float32)
    h = dot(x, p['w_in']) + p['b_in']
    scale = 1.0 / math.sqrt(HEAD_DIM)
    for l in range(NLAYERS):
        qkv = dot(h, p['wqkv'][l]) + p['bqkv'][l]
        q, k, v = jnp.split(qkv, 3, axis=-1)
        sh = lambda t: t.reshape(B, SEQ, NHEAD, HEAD_DIM).transpose(0, 2, 1, 3)
        qh, kh, vh = sh(q), sh(k), sh(v)
        s = jnp.einsum('bhqd,bhkd->bhqk', qh * scale, kh, precision=_HI)
        pattn = jax.nn.softmax(s, axis=-1)
        o = jnp.einsum('bhqk,bhkd->bhqd', pattn, vh, precision=_HI)
        o = o.transpose(0, 2, 1, 3).reshape(B, SEQ, D_MODEL)
        o = dot(o, p['wo'][l]) + p['bo'][l]
        h = _layer_norm(h + o, p['g1'][l], p['be1'][l])
        ff = jax.nn.relu(dot(h, p['wff1'][l]) + p['bff1'][l])
        ff = dot(ff, p['wff2'][l]) + p['bff2'][l]
        h = _layer_norm(h + ff, p['g2'][l], p['be2'][l])
    pooled = jnp.mean(h, axis=1)
    return dot(pooled, p['wfc']) + p['bfc']


# ------------------------- deterministic params -------------------------
def init_params(key):
    ks = jax.random.split(key, 16)
    nrm = lambda k, shape, s: jax.random.normal(k, shape, jnp.float32) * s
    p = {}
    p['w_in'] = nrm(ks[0], (IN_DIM, D_MODEL), 1.0 / math.sqrt(IN_DIM))
    p['b_in'] = nrm(ks[1], (1, D_MODEL), 0.01)
    p['wqkv'] = nrm(ks[2], (NLAYERS, D_MODEL, 3 * D_MODEL), 1.0 / math.sqrt(D_MODEL))
    p['bqkv'] = nrm(ks[3], (NLAYERS, 1, 3 * D_MODEL), 0.01)
    p['wo'] = nrm(ks[4], (NLAYERS, D_MODEL, D_MODEL), 1.0 / math.sqrt(D_MODEL))
    p['bo'] = nrm(ks[5], (NLAYERS, 1, D_MODEL), 0.01)
    p['g1'] = 1.0 + nrm(ks[6], (NLAYERS, 1, D_MODEL), 0.01)
    p['be1'] = nrm(ks[7], (NLAYERS, 1, D_MODEL), 0.01)
    p['wff1'] = nrm(ks[8], (NLAYERS, D_MODEL, FF), 1.0 / math.sqrt(D_MODEL))
    p['bff1'] = nrm(ks[9], (NLAYERS, 1, FF), 0.01)
    p['wff2'] = nrm(ks[10], (NLAYERS, FF, D_MODEL), 1.0 / math.sqrt(FF))
    p['bff2'] = nrm(ks[11], (NLAYERS, 1, D_MODEL), 0.01)
    p['g2'] = 1.0 + nrm(ks[12], (NLAYERS, 1, D_MODEL), 0.01)
    p['be2'] = nrm(ks[13], (NLAYERS, 1, D_MODEL), 0.01)
    p['wfc'] = nrm(ks[14], (D_MODEL, OUT_DIM), 1.0 / math.sqrt(D_MODEL))
    p['bfc'] = nrm(ks[15], (1, OUT_DIM), 0.01)
    return p


if __name__ == "__main__":
    key = jax.random.PRNGKey(0)
    pkey, xkey = jax.random.split(key)
    params = init_params(pkey)
    # PyTorch-layout input: (N, C, L) = (B, input_dim, seq_len)
    x = jax.random.normal(xkey, (B, IN_DIM, SEQ), jnp.float32)

    out = transformer_forward(x, params)
    out = jax.block_until_ready(out)

    ref = ref_forward(x, params)
    # bf16 MXU operands (f32 accumulation) widen the error vs the f32 reference;
    # observed error is ~1e-2-scale absolute on O(1) logits, so validate at 2e-2.
    np.testing.assert_allclose(np.asarray(out), np.asarray(ref), rtol=2e-2, atol=2e-2)
    print("KERNEL_OK")
</pallas_src>

<mosaic_0001>
module attributes {stable_mosaic.version = 11 : i64} {
  func.func @transformer_kernel(%arg0: memref<64x8xf32, #tpu.memory_space<vmem>>, %arg1: memref<8x64xf32, #tpu.memory_space<vmem>>, %arg2: memref<1x64xf32, #tpu.memory_space<vmem>>, %arg3: memref<2x4x64x16xbf16, #tpu.memory_space<vmem>>, %arg4: memref<2x4x1x16xf32, #tpu.memory_space<vmem>>, %arg5: memref<2x64x64xbf16, #tpu.memory_space<vmem>>, %arg6: memref<2x4x64x64xbf16, #tpu.memory_space<vmem>>, %arg7: memref<2x64x128xbf16, #tpu.memory_space<vmem>>, %arg8: memref<2x1x128xf32, #tpu.memory_space<vmem>>, %arg9: memref<2x128x64xbf16, #tpu.memory_space<vmem>>, %arg10: memref<2x7x1x64xf32, #tpu.memory_space<vmem>>, %arg11: memref<64x64xf32, #tpu.memory_space<vmem>>, %arg12: memref<2x64xbf16, #tpu.memory_space<vmem>>, %arg13: memref<64x128xbf16, #tpu.memory_space<vmem>>, %arg14: memref<1x128xf32, #tpu.memory_space<vmem>>, %arg15: memref<2x128xf32, #tpu.memory_space<vmem>>) attributes {dimension_semantics = [], scalar_prefetch = 0 : i64, scratch_operands = 0 : i64, tpu.core_type = #tpu.core_type<tc>} {
    %c0 = arith.constant 0 : index
    %c0_0 = arith.constant 0 : index
    %0 = vector.load %arg0[%c0, %c0_0] : memref<64x8xf32, #tpu.memory_space<vmem>>, vector<64x8xf32>
    %c0_1 = arith.constant 0 : index
    %c0_2 = arith.constant 0 : index
    %1 = vector.load %arg1[%c0_1, %c0_2] : memref<8x64xf32, #tpu.memory_space<vmem>>, vector<8x64xf32>
    %cst = arith.constant dense<0.000000e+00> : vector<64x64xf32>
    %2 = tpu.matmul %0, %1, %cst {dimension_numbers = #tpu.dot_dimension_numbers<[1], [0], [0], [1], [0, 0, 1, 1], [], []>} : vector<64x8xf32>, vector<8x64xf32>, vector<64x64xf32> -> vector<64x64xf32>
    %c0_3 = arith.constant 0 : index
    %c0_4 = arith.constant 0 : index
    %3 = vector.load %arg2[%c0_3, %c0_4] : memref<1x64xf32, #tpu.memory_space<vmem>>, vector<1x64xf32>
    %4 = vector.broadcast %3 : vector<1x64xf32> to vector<64x64xf32>
    %5 = arith.addf %2, %4 : vector<64x64xf32>
    %c0_5 = arith.constant 0 : index
    %c0_6 = arith.constant 0 : index
    %6 = vector.load %arg11[%c0_5, %c0_6] : memref<64x64xf32, #tpu.memory_space<vmem>>, vector<64x64xf32>
    %7 = arith.truncf %5 : vector<64x64xf32> to vector<64x64xbf16>
    %c0_7 = arith.constant 0 : index
    %c0_8 = arith.constant 0 : index
    %c0_9 = arith.constant 0 : index
    %8 = vector.load %arg5[%c0_7, %c0_8, %c0_9] : memref<2x64x64xbf16, #tpu.memory_space<vmem>>, vector<1x64x64xbf16>
    %9 = vector.shape_cast %8 : vector<1x64x64xbf16> to vector<64x64xbf16>
    %cst_10 = arith.constant dense<0.000000e+00> : vector<64x64xf32>
    %10 = tpu.matmul %7, %9, %cst_10 {dimension_numbers = #tpu.dot_dimension_numbers<[1], [0], [0], [1], [0, 0, 1, 1], [], []>} : vector<64x64xbf16>, vector<64x64xbf16>, vector<64x64xf32> -> vector<64x64xf32>
    %c0_11 = arith.constant 0 : index
    %c0_12 = arith.constant 0 : index
    %c0_13 = arith.constant 0 : index
    %c0_14 = arith.constant 0 : index
    %11 = vector.load %arg10[%c0_11, %c0_12, %c0_13, %c0_14] : memref<2x7x1x64xf32, #tpu.memory_space<vmem>>, vector<1x1x1x64xf32>
    %12 = vector.shape_cast %11 : vector<1x1x1x64xf32> to vector<1x64xf32>
    %13 = vector.broadcast %12 : vector<1x64xf32> to vector<64x64xf32>
    %14 = arith.addf %10, %13 : vector<64x64xf32>
    %15 = tpu.transpose %14, [1, 0] : vector<64x64xf32> -> vector<64x64xf32>
    %16 = arith.truncf %15 : vector<64x64xf32> to vector<64x64xbf16>
    %c0_15 = arith.constant 0 : index
    %c0_16 = arith.constant 0 : index
    %c0_17 = arith.constant 0 : index
    %c0_18 = arith.constant 0 : index
    %17 = vector.load %arg3[%c0_15, %c0_16, %c0_17, %c0_18] : memref<2x4x64x16xbf16, #tpu.memory_space<vmem>>, vector<1x1x64x16xbf16>
    %18 = vector.shape_cast %17 : vector<1x1x64x16xbf16> to vector<64x16xbf16>
    %cst_19 = arith.constant dense<0.000000e+00> : vector<64x16xf32>
    %19 = tpu.matmul %7, %18, %cst_19 {dimension_numbers = #tpu.dot_dimension_numbers<[1], [0], [0], [1], [0, 0, 1, 1], [], []>} : vector<64x64xbf16>, vector<64x16xbf16>, vector<64x16xf32> -> vector<64x16xf32>
    %c0_20 = arith.constant 0 : index
    %c0_21 = arith.constant 0 : index
    %c0_22 = arith.constant 0 : index
    %c0_23 = arith.constant 0 : index
    %20 = vector.load %arg4[%c0_20, %c0_21, %c0_22, %c0_23] : memref<2x4x1x16xf32, #tpu.memory_space<vmem>>, vector<1x1x1x16xf32>
    %21 = vector.shape_cast %20 : vector<1x1x1x16xf32> to vector<1x16xf32>
    %22 = vector.broadcast %21 : vector<1x16xf32> to vector<64x16xf32>
    %23 = arith.addf %19, %22 : vector<64x16xf32>
    %24 = arith.truncf %23 : vector<64x16xf32> to vector<64x16xbf16>
    %25 = vector.extract_strided_slice %16 {offsets = [0, 0], sizes = [16, 64], strides = [1, 1]} : vector<64x64xbf16> to vector<16x64xbf16>
    %cst_24 = arith.constant dense<0.000000e+00> : vector<64x64xf32>
    %26 = tpu.matmul %24, %25, %cst_24 {dimension_numbers = #tpu.dot_dimension_numbers<[1], [0], [0], [1], [0, 0, 1, 1], [], []>} : vector<64x16xbf16>, vector<16x64xbf16>, vector<64x64xf32> -> vector<64x64xf32>
    %27 = arith.addf %26, %6 : vector<64x64xf32>
    %cst_25 = arith.constant dense<0xFF800000> : vector<64xf32>
    %28 = vector.multi_reduction <maximumf>, %27, %cst_25 [1] : vector<64x64xf32> to vector<64xf32>
    %29 = vector.shape_cast %28 : vector<64xf32> to vector<64x1xf32>
    %30 = vector.broadcast %29 : vector<64x1xf32> to vector<64x64xf32>
    %31 = arith.subf %27, %30 : vector<64x64xf32>
    %32 = math.exp %31 : vector<64x64xf32>
    %cst_26 = arith.constant dense<0.000000e+00> : vector<64xf32>
    %33 = vector.multi_reduction <add>, %32, %cst_26 [1] : vector<64x64xf32> to vector<64xf32>
    %34 = vector.shape_cast %33 : vector<64xf32> to vector<64x1xf32>
    %35 = tpu.reciprocal %34 : vector<64x1xf32> -> vector<64x1xf32>
    %36 = vector.broadcast %35 : vector<64x1xf32> to vector<64x64xf32>
    %37 = arith.mulf %32, %36 : vector<64x64xf32>
    %c0_27 = arith.constant 0 : index
    %c0_28 = arith.constant 0 : index
    %c0_29 = arith.constant 0 : index
    %c0_30 = arith.constant 0 : index
    %38 = vector.load %arg6[%c0_27, %c0_28, %c0_29, %c0_30] : memref<2x4x64x64xbf16, #tpu.memory_space<vmem>>, vector<1x1x64x64xbf16>
    %39 = vector.shape_cast %38 : vector<1x1x64x64xbf16> to vector<64x64xbf16>
    %cst_31 = arith.constant dense<0.000000e+00> : vector<64x64xf32>
    %40 = tpu.matmul %7, %39, %cst_31 {dimension_numbers = #tpu.dot_dimension_numbers<[1], [0], [0], [1], [0, 0, 1, 1], [], []>} : vector<64x64xbf16>, vector<64x64xbf16>, vector<64x64xf32> -> vector<64x64xf32>
    %41 = arith.truncf %37 : vector<64x64xf32> to vector<64x64xbf16>
    %42 = arith.truncf %40 : vector<64x64xf32> to vector<64x64xbf16>
    %cst_32 = arith.constant dense<0.000000e+00> : vector<64x64xf32>
    %43 = tpu.matmul %41, %42, %cst_32 {dimension_numbers = #tpu.dot_dimension_numbers<[1], [0], [0], [1], [0, 0, 1, 1], [], []>} : vector<64x64xbf16>, vector<64x64xbf16>, vector<64x64xf32> -> vector<64x64xf32>
    %c0_33 = arith.constant 0 : index
    %c1 = arith.constant 1 : index
    %c0_34 = arith.constant 0 : index
    %c0_35 = arith.constant 0 : index
    %44 = vector.load %arg3[%c0_33, %c1, %c0_34, %c0_35] : memref<2x4x64x16xbf16, #tpu.memory_space<vmem>>, vector<1x1x64x16xbf16>
    %45 = vector.shape_cast %44 : vector<1x1x64x16xbf16> to vector<64x16xbf16>
    %cst_36 = arith.constant dense<0.000000e+00> : vector<64x16xf32>
    %46 = tpu.matmul %7, %45, %cst_36 {dimension_numbers = #tpu.dot_dimension_numbers<[1], [0], [0], [1], [0, 0, 1, 1], [], []>} : vector<64x64xbf16>, vector<64x16xbf16>, vector<64x16xf32> -> vector<64x16xf32>
    %c0_37 = arith.constant 0 : index
    %c1_38 = arith.constant 1 : index
    %c0_39 = arith.constant 0 : index
    %c0_40 = arith.constant 0 : index
    %47 = vector.load %arg4[%c0_37, %c1_38, %c0_39, %c0_40] : memref<2x4x1x16xf32, #tpu.memory_space<vmem>>, vector<1x1x1x16xf32>
    %48 = vector.shape_cast %47 : vector<1x1x1x16xf32> to vector<1x16xf32>
    %49 = vector.broadcast %48 : vector<1x16xf32> to vector<64x16xf32>
    %50 = arith.addf %46, %49 : vector<64x16xf32>
    %51 = arith.truncf %50 : vector<64x16xf32> to vector<64x16xbf16>
    %52 = vector.extract_strided_slice %16 {offsets = [16, 0], sizes = [16, 64], strides = [1, 1]} : vector<64x64xbf16> to vector<16x64xbf16>
    %cst_41 = arith.constant dense<0.000000e+00> : vector<64x64xf32>
    %53 = tpu.matmul %51, %52, %cst_41 {dimension_numbers = #tpu.dot_dimension_numbers<[1], [0], [0], [1], [0, 0, 1, 1], [], []>} : vector<64x16xbf16>, vector<16x64xbf16>, vector<64x64xf32> -> vector<64x64xf32>
    %54 = arith.addf %53, %6 : vector<64x64xf32>
    %cst_42 = arith.constant dense<0xFF800000> : vector<64xf32>
    %55 = vector.multi_reduction <maximumf>, %54, %cst_42 [1] : vector<64x64xf32> to vector<64xf32>
    %56 = vector.shape_cast %55 : vector<64xf32> to vector<64x1xf32>
    %57 = vector.broadcast %56 : vector<64x1xf32> to vector<64x64xf32>
    %58 = arith.subf %54, %57 : vector<64x64xf32>
    %59 = math.exp %58 : vector<64x64xf32>
    %cst_43 = arith.constant dense<0.000000e+00> : vector<64xf32>
    %60 = vector.multi_reduction <add>, %59, %cst_43 [1] : vector<64x64xf32> to vector<64xf32>
    %61 = vector.shape_cast %60 : vector<64xf32> to vector<64x1xf32>
    %62 = tpu.reciprocal %61 : vector<64x1xf32> -> vector<64x1xf32>
    %63 = vector.broadcast %62 : vector<64x1xf32> to vector<64x64xf32>
    %64 = arith.mulf %59, %63 : vector<64x64xf32>
    %c0_44 = arith.constant 0 : index
    %c1_45 = arith.constant 1 : index
    %c0_46 = arith.constant 0 : index
    %c0_47 = arith.constant 0 : index
    %65 = vector.load %arg6[%c0_44, %c1_45, %c0_46, %c0_47] : memref<2x4x64x64xbf16, #tpu.memory_space<vmem>>, vector<1x1x64x64xbf16>
    %66 = vector.shape_cast %65 : vector<1x1x64x64xbf16> to vector<64x64xbf16>
    %cst_48 = arith.constant dense<0.000000e+00> : vector<64x64xf32>
    %67 = tpu.matmul %7, %66, %cst_48 {dimension_numbers = #tpu.dot_dimension_numbers<[1], [0], [0], [1], [0, 0, 1, 1], [], []>} : vector<64x64xbf16>, vector<64x64xbf16>, vector<64x64xf32> -> vector<64x64xf32>
    %68 = arith.truncf %64 : vector<64x64xf32> to vector<64x64xbf16>
    %69 = arith.truncf %67 : vector<64x64xf32> to vector<64x64xbf16>
    %cst_49 = arith.constant dense<0.000000e+00> : vector<64x64xf32>
    %70 = tpu.matmul %68, %69, %cst_49 {dimension_numbers = #tpu.dot_dimension_numbers<[1], [0], [0], [1], [0, 0, 1, 1], [], []>} : vector<64x64xbf16>, vector<64x64xbf16>, vector<64x64xf32> -> vector<64x64xf32>
    %71 = arith.addf %43, %70 : vector<64x64xf32>
    %c0_50 = arith.constant 0 : index
    %c2 = arith.constant 2 : index
    %c0_51 = arith.constant 0 : index
    %c0_52 = arith.constant 0 : index
    %72 = vector.load %arg3[%c0_50, %c2, %c0_51, %c0_52] : memref<2x4x64x16xbf16, #tpu.memory_space<vmem>>, vector<1x1x64x16xbf16>
    %73 = vector.shape_cast %72 : vector<1x1x64x16xbf16> to vector<64x16xbf16>
    %cst_53 = arith.constant dense<0.000000e+00> : vector<64x16xf32>
    %74 = tpu.matmul %7, %73, %cst_53 {dimension_numbers = #tpu.dot_dimension_numbers<[1], [0], [0], [1], [0, 0, 1, 1], [], []>} : vector<64x64xbf16>, vector<64x16xbf16>, vector<64x16xf32> -> vector<64x16xf32>
    %c0_54 = arith.constant 0 : index
    %c2_55 = arith.constant 2 : index
    %c0_56 = arith.constant 0 : index
    %c0_57 = arith.constant 0 : index
    %75 = vector.load %arg4[%c0_54, %c2_55, %c0_56, %c0_57] : memref<2x4x1x16xf32, #tpu.memory_space<vmem>>, vector<1x1x1x16xf32>
    %76 = vector.shape_cast %75 : vector<1x1x1x16xf32> to vector<1x16xf32>
    %77 = vector.broadcast %76 : vector<1x16xf32> to vector<64x16xf32>
    %78 = arith.addf %74, %77 : vector<64x16xf32>
    %79 = arith.truncf %78 : vector<64x16xf32> to vector<64x16xbf16>
    %80 = vector.extract_strided_slice %16 {offsets = [32, 0], sizes = [16, 64], strides = [1, 1]} : vector<64x64xbf16> to vector<16x64xbf16>
    %cst_58 = arith.constant dense<0.000000e+00> : vector<64x64xf32>
    %81 = tpu.matmul %79, %80, %cst_58 {dimension_numbers = #tpu.dot_dimension_numbers<[1], [0], [0], [1], [0, 0, 1, 1], [], []>} : vector<64x16xbf16>, vector<16x64xbf16>, vector<64x64xf32> -> vector<64x64xf32>
    %82 = arith.addf %81, %6 : vector<64x64xf32>
    %cst_59 = arith.constant dense<0xFF800000> : vector<64xf32>
    %83 = vector.multi_reduction <maximumf>, %82, %cst_59 [1] : vector<64x64xf32> to vector<64xf32>
    %84 = vector.shape_cast %83 : vector<64xf32> to vector<64x1xf32>
    %85 = vector.broadcast %84 : vector<64x1xf32> to vector<64x64xf32>
    %86 = arith.subf %82, %85 : vector<64x64xf32>
    %87 = math.exp %86 : vector<64x64xf32>
    %cst_60 = arith.constant dense<0.000000e+00> : vector<64xf32>
    %88 = vector.multi_reduction <add>, %87, %cst_60 [1] : vector<64x64xf32> to vector<64xf32>
    %89 = vector.shape_cast %88 : vector<64xf32> to vector<64x1xf32>
    %90 = tpu.reciprocal %89 : vector<64x1xf32> -> vector<64x1xf32>
    %91 = vector.broadcast %90 : vector<64x1xf32> to vector<64x64xf32>
    %92 = arith.mulf %87, %91 : vector<64x64xf32>
    %c0_61 = arith.constant 0 : index
    %c2_62 = arith.constant 2 : index
    %c0_63 = arith.constant 0 : index
    %c0_64 = arith.constant 0 : index
    %93 = vector.load %arg6[%c0_61, %c2_62, %c0_63, %c0_64] : memref<2x4x64x64xbf16, #tpu.memory_space<vmem>>, vector<1x1x64x64xbf16>
    %94 = vector.shape_cast %93 : vector<1x1x64x64xbf16> to vector<64x64xbf16>
    %cst_65 = arith.constant dense<0.000000e+00> : vector<64x64xf32>
    %95 = tpu.matmul %7, %94, %cst_65 {dimension_numbers = #tpu.dot_dimension_numbers<[1], [0], [0], [1], [0, 0, 1, 1], [], []>} : vector<64x64xbf16>, vector<64x64xbf16>, vector<64x64xf32> -> vector<64x64xf32>
    %96 = arith.truncf %92 : vector<64x64xf32> to vector<64x64xbf16>
    %97 = arith.truncf %95 : vector<64x64xf32> to vector<64x64xbf16>
    %cst_66 = arith.constant dense<0.000000e+00> : vector<64x64xf32>
    %98 = tpu.matmul %96, %97, %cst_66 {dimension_numbers = #tpu.dot_dimension_numbers<[1], [0], [0], [1], [0, 0, 1, 1], [], []>} : vector<64x64xbf16>, vector<64x64xbf16>, vector<64x64xf32> -> vector<64x64xf32>
    %99 = arith.addf %71, %98 : vector<64x64xf32>
    %c0_67 = arith.constant 0 : index
    %c3 = arith.constant 3 : index
    %c0_68 = arith.constant 0 : index
    %c0_69 = arith.constant 0 : index
    %100 = vector.load %arg3[%c0_67, %c3, %c0_68, %c0_69] : memref<2x4x64x16xbf16, #tpu.memory_space<vmem>>, vector<1x1x64x16xbf16>
    %101 = vector.shape_cast %100 : vector<1x1x64x16xbf16> to vector<64x16xbf16>
    %cst_70 = arith.constant dense<0.000000e+00> : vector<64x16xf32>
    %102 = tpu.matmul %7, %101, %cst_70 {dimension_numbers = #tpu.dot_dimension_numbers<[1], [0], [0], [1], [0, 0, 1, 1], [], []>} : vector<64x64xbf16>, vector<64x16xbf16>, vector<64x16xf32> -> vector<64x16xf32>
    %c0_71 = arith.constant 0 : index
    %c3_72 = arith.constant 3 : index
    %c0_73 = arith.constant 0 : index
    %c0_74 = arith.constant 0 : index
    %103 = vector.load %arg4[%c0_71, %c3_72, %c0_73, %c0_74] : memref<2x4x1x16xf32, #tpu.memory_space<vmem>>, vector<1x1x1x16xf32>
    %104 = vector.shape_cast %103 : vector<1x1x1x16xf32> to vector<1x16xf32>
    %105 = vector.broadcast %104 : vector<1x16xf32> to vector<64x16xf32>
    %106 = arith.addf %102, %105 : vector<64x16xf32>
    %107 = arith.truncf %106 : vector<64x16xf32> to vector<64x16xbf16>
    %108 = vector.extract_strided_slice %16 {offsets = [48, 0], sizes = [16, 64], strides = [1, 1]} : vector<64x64xbf16> to vector<16x64xbf16>
    %cst_75 = arith.constant dense<0.000000e+00> : vector<64x64xf32>
    %109 = tpu.matmul %107, %108, %cst_75 {dimension_numbers = #tpu.dot_dimension_numbers<[1], [0], [0], [1], [0, 0, 1, 1], [], []>} : vector<64x16xbf16>, vector<16x64xbf16>, vector<64x64xf32> -> vector<64x64xf32>
    %110 = arith.addf %109, %6 : vector<64x64xf32>
    %cst_76 = arith.constant dense<0xFF800000> : vector<64xf32>
    %111 = vector.multi_reduction <maximumf>, %110, %cst_76 [1] : vector<64x64xf32> to vector<64xf32>
    %112 = vector.shape_cast %111 : vector<64xf32> to vector<64x1xf32>
    %113 = vector.broadcast %112 : vector<64x1xf32> to vector<64x64xf32>
    %114 = arith.subf %110, %113 : vector<64x64xf32>
    %115 = math.exp %114 : vector<64x64xf32>
    %cst_77 = arith.constant dense<0.000000e+00> : vector<64xf32>
    %116 = vector.multi_reduction <add>, %115, %cst_77 [1] : vector<64x64xf32> to vector<64xf32>
    %117 = vector.shape_cast %116 : vector<64xf32> to vector<64x1xf32>
    %118 = tpu.reciprocal %117 : vector<64x1xf32> -> vector<64x1xf32>
    %119 = vector.broadcast %118 : vector<64x1xf32> to vector<64x64xf32>
    %120 = arith.mulf %115, %119 : vector<64x64xf32>
    %c0_78 = arith.constant 0 : index
    %c3_79 = arith.constant 3 : index
    %c0_80 = arith.constant 0 : index
    %c0_81 = arith.constant 0 : index
    %121 = vector.load %arg6[%c0_78, %c3_79, %c0_80, %c0_81] : memref<2x4x64x64xbf16, #tpu.memory_space<vmem>>, vector<1x1x64x64xbf16>
    %122 = vector.shape_cast %121 : vector<1x1x64x64xbf16> to vector<64x64xbf16>
    %cst_82 = arith.constant dense<0.000000e+00> : vector<64x64xf32>
    %123 = tpu.matmul %7, %122, %cst_82 {dimension_numbers = #tpu.dot_dimension_numbers<[1], [0], [0], [1], [0, 0, 1, 1], [], []>} : vector<64x64xbf16>, vector<64x64xbf16>, vector<64x64xf32> -> vector<64x64xf32>
    %124 = arith.truncf %120 : vector<64x64xf32> to vector<64x64xbf16>
    %125 = arith.truncf %123 : vector<64x64xf32> to vector<64x64xbf16>
    %cst_83 = arith.constant dense<0.000000e+00> : vector<64x64xf32>
    %126 = tpu.matmul %124, %125, %cst_83 {dimension_numbers = #tpu.dot_dimension_numbers<[1], [0], [0], [1], [0, 0, 1, 1], [], []>} : vector<64x64xbf16>, vector<64x64xbf16>, vector<64x64xf32> -> vector<64x64xf32>
    %127 = arith.addf %99, %126 : vector<64x64xf32>
    %c0_84 = arith.constant 0 : index
    %c1_85 = arith.constant 1 : index
    %c0_86 = arith.constant 0 : index
    %c0_87 = arith.constant 0 : index
    %128 = vector.load %arg10[%c0_84, %c1_85, %c0_86, %c0_87] : memref<2x7x1x64xf32, #tpu.memory_space<vmem>>, vector<1x1x1x64xf32>
    %129 = vector.shape_cast %128 : vector<1x1x1x64xf32> to vector<1x64xf32>
    %130 = vector.broadcast %129 : vector<1x64xf32> to vector<64x64xf32>
    %131 = arith.addf %127, %130 : vector<64x64xf32>
    %132 = arith.addf %5, %131 : vector<64x64xf32>
    %c0_88 = arith.constant 0 : index
    %c2_89 = arith.constant 2 : index
    %c0_90 = arith.constant 0 : index
    %c0_91 = arith.constant 0 : index
    %133 = vector.load %arg10[%c0_88, %c2_89, %c0_90, %c0_91] : memref<2x7x1x64xf32, #tpu.memory_space<vmem>>, vector<1x1x1x64xf32>
    %134 = vector.shape_cast %133 : vector<1x1x1x64xf32> to vector<1x64xf32>
    %c0_92 = arith.constant 0 : index
    %c3_93 = arith.constant 3 : index
    %c0_94 = arith.constant 0 : index
    %c0_95 = arith.constant 0 : index
    %135 = vector.load %arg10[%c0_92, %c3_93, %c0_94, %c0_95] : memref<2x7x1x64xf32, #tpu.memory_space<vmem>>, vector<1x1x1x64xf32>
    %136 = vector.shape_cast %135 : vector<1x1x1x64xf32> to vector<1x64xf32>
    %cst_96 = arith.constant dense<0.000000e+00> : vector<64xf32>
    %137 = vector.multi_reduction <add>, %132, %cst_96 [1] : vector<64x64xf32> to vector<64xf32>
    %138 = vector.shape_cast %137 : vector<64xf32> to vector<64x1xf32>
    %cst_97 = arith.constant 6.400000e+01 : f32
    %139 = vector.broadcast %cst_97 : f32 to vector<64x1xf32>
    %140 = arith.divf %138, %139 : vector<64x1xf32>
    %141 = vector.broadcast %140 : vector<64x1xf32> to vector<64x64xf32>
    %142 = arith.subf %132, %141 : vector<64x64xf32>
    %143 = arith.mulf %142, %142 : vector<64x64xf32>
    %cst_98 = arith.constant dense<0.000000e+00> : vector<64xf32>
    %144 = vector.multi_reduction <add>, %143, %cst_98 [1] : vector<64x64xf32> to vector<64xf32>
    %145 = vector.shape_cast %144 : vector<64xf32> to vector<64x1xf32>
    %cst_99 = arith.constant 6.400000e+01 : f32
    %146 = vector.broadcast %cst_99 : f32 to vector<64x1xf32>
    %147 = arith.divf %145, %146 : vector<64x1xf32>
    %148 = vector.broadcast %140 : vector<64x1xf32> to vector<64x64xf32>
    %149 = arith.subf %132, %148 : vector<64x64xf32>
    %cst_100 = arith.constant 9.99999974E-6 : f32
    %150 = vector.broadcast %cst_100 : f32 to vector<64x1xf32>
    %151 = arith.addf %147, %150 : vector<64x1xf32>
    %152 = math.rsqrt %151 : vector<64x1xf32>
    %153 = vector.broadcast %152 : vector<64x1xf32> to vector<64x64xf32>
    %154 = arith.mulf %149, %153 : vector<64x64xf32>
    %155 = vector.broadcast %134 : vector<1x64xf32> to vector<64x64xf32>
    %156 = arith.mulf %154, %155 : vector<64x64xf32>
    %157 = vector.broadcast %136 : vector<1x64xf32> to vector<64x64xf32>
    %158 = arith.addf %156, %157 : vector<64x64xf32>
    %159 = arith.truncf %158 : vector<64x64xf32> to vector<64x64xbf16>
    %c0_101 = arith.constant 0 : index
    %c0_102 = arith.constant 0 : index
    %c0_103 = arith.constant 0 : index
    %160 = vector.load %arg7[%c0_101, %c0_102, %c0_103] : memref<2x64x128xbf16, #tpu.memory_space<vmem>>, vector<1x64x128xbf16>
    %161 = vector.shape_cast %160 : vector<1x64x128xbf16> to vector<64x128xbf16>
    %cst_104 = arith.constant dense<0.000000e+00> : vector<64x128xf32>
    %162 = tpu.matmul %159, %161, %cst_104 {dimension_numbers = #tpu.dot_dimension_numbers<[1], [0], [0], [1], [0, 0, 1, 1], [], []>} : vector<64x64xbf16>, vector<64x128xbf16>, vector<64x128xf32> -> vector<64x128xf32>
    %c0_105 = arith.constant 0 : index
    %c0_106 = arith.constant 0 : index
    %c0_107 = arith.constant 0 : index
    %163 = vector.load %arg8[%c0_105, %c0_106, %c0_107] : memref<2x1x128xf32, #tpu.memory_space<vmem>>, vector<1x1x128xf32>
    %164 = vector.shape_cast %163 : vector<1x1x128xf32> to vector<1x128xf32>
    %165 = vector.broadcast %164 : vector<1x128xf32> to vector<64x128xf32>
    %166 = arith.addf %162, %165 : vector<64x128xf32>
    %cst_108 = arith.constant 0.000000e+00 : f32
    %167 = vector.broadcast %cst_108 : f32 to vector<64x128xf32>
    %168 = arith.maximumf %166, %167 : vector<64x128xf32>
    %169 = arith.truncf %168 : vector<64x128xf32> to vector<64x128xbf16>
    %c0_109 = arith.constant 0 : index
    %c0_110 = arith.constant 0 : index
    %c0_111 = arith.constant 0 : index
    %170 = vector.load %arg9[%c0_109, %c0_110, %c0_111] : memref<2x128x64xbf16, #tpu.memory_space<vmem>>, vector<1x128x64xbf16>
    %171 = vector.shape_cast %170 : vector<1x128x64xbf16> to vector<128x64xbf16>
    %cst_112 = arith.constant dense<0.000000e+00> : vector<64x64xf32>
    %172 = tpu.matmul %169, %171, %cst_112 {dimension_numbers = #tpu.dot_dimension_numbers<[1], [0], [0], [1], [0, 0, 1, 1], [], []>} : vector<64x128xbf16>, vector<128x64xbf16>, vector<64x64xf32> -> vector<64x64xf32>
    %c0_113 = arith.constant 0 : index
    %c4 = arith.constant 4 : index
    %c0_114 = arith.constant 0 : index
    %c0_115 = arith.constant 0 : index
    %173 = vector.load %arg10[%c0_113, %c4, %c0_114, %c0_115] : memref<2x7x1x64xf32, #tpu.memory_space<vmem>>, vector<1x1x1x64xf32>
    %174 = vector.shape_cast %173 : vector<1x1x1x64xf32> to vector<1x64xf32>
    %175 = vector.broadcast %174 : vector<1x64xf32> to vector<64x64xf32>
    %176 = arith.addf %172, %175 : vector<64x64xf32>
    %177 = arith.addf %158, %176 : vector<64x64xf32>
    %c0_116 = arith.constant 0 : index
    %c5 = arith.constant 5 : index
    %c0_117 = arith.constant 0 : index
    %c0_118 = arith.constant 0 : index
    %178 = vector.load %arg10[%c0_116, %c5, %c0_117, %c0_118] : memref<2x7x1x64xf32, #tpu.memory_space<vmem>>, vector<1x1x1x64xf32>
    %179 = vector.shape_cast %178 : vector<1x1x1x64xf32> to vector<1x64xf32>
    %c0_119 = arith.constant 0 : index
    %c6 = arith.constant 6 : index
    %c0_120 = arith.constant 0 : index
    %c0_121 = arith.constant 0 : index
    %180 = vector.load %arg10[%c0_119, %c6, %c0_120, %c0_121] : memref<2x7x1x64xf32, #tpu.memory_space<vmem>>, vector<1x1x1x64xf32>
    %181 = vector.shape_cast %180 : vector<1x1x1x64xf32> to vector<1x64xf32>
    %cst_122 = arith.constant dense<0.000000e+00> : vector<64xf32>
    %182 = vector.multi_reduction <add>, %177, %cst_122 [1] : vector<64x64xf32> to vector<64xf32>
    %183 = vector.shape_cast %182 : vector<64xf32> to vector<64x1xf32>
    %cst_123 = arith.constant 6.400000e+01 : f32
    %184 = vector.broadcast %cst_123 : f32 to vector<64x1xf32>
    %185 = arith.divf %183, %184 : vector<64x1xf32>
    %186 = vector.broadcast %185 : vector<64x1xf32> to vector<64x64xf32>
    %187 = arith.subf %177, %186 : vector<64x64xf32>
    %188 = arith.mulf %187, %187 : vector<64x64xf32>
    %cst_124 = arith.constant dense<0.000000e+00> : vector<64xf32>
    %189 = vector.multi_reduction <add>, %188, %cst_124 [1] : vector<64x64xf32> to vector<64xf32>
    %190 = vector.shape_cast %189 : vector<64xf32> to vector<64x1xf32>
    %cst_125 = arith.constant 6.400000e+01 : f32
    %191 = vector.broadcast %cst_125 : f32 to vector<64x1xf32>
    %192 = arith.divf %190, %191 : vector<64x1xf32>
    %193 = vector.broadcast %185 : vector<64x1xf32> to vector<64x64xf32>
    %194 = arith.subf %177, %193 : vector<64x64xf32>
    %cst_126 = arith.constant 9.99999974E-6 : f32
    %195 = vector.broadcast %cst_126 : f32 to vector<64x1xf32>
    %196 = arith.addf %192, %195 : vector<64x1xf32>
    %197 = math.rsqrt %196 : vector<64x1xf32>
    %198 = vector.broadcast %197 : vector<64x1xf32> to vector<64x64xf32>
    %199 = arith.mulf %194, %198 : vector<64x64xf32>
    %200 = vector.broadcast %179 : vector<1x64xf32> to vector<64x64xf32>
    %201 = arith.mulf %199, %200 : vector<64x64xf32>
    %202 = vector.broadcast %181 : vector<1x64xf32> to vector<64x64xf32>
    %203 = arith.addf %201, %202 : vector<64x64xf32>
    %204 = arith.truncf %203 : vector<64x64xf32> to vector<64x64xbf16>
    %c1_127 = arith.constant 1 : index
    %c0_128 = arith.constant 0 : index
    %c0_129 = arith.constant 0 : index
    %205 = vector.load %arg5[%c1_127, %c0_128, %c0_129] : memref<2x64x64xbf16, #tpu.memory_space<vmem>>, vector<1x64x64xbf16>
    %206 = vector.shape_cast %205 : vector<1x64x64xbf16> to vector<64x64xbf16>
    %cst_130 = arith.constant dense<0.000000e+00> : vector<64x64xf32>
    %207 = tpu.matmul %204, %206, %cst_130 {dimension_numbers = #tpu.dot_dimension_numbers<[1], [0], [0], [1], [0, 0, 1, 1], [], []>} : vector<64x64xbf16>, vector<64x64xbf16>, vector<64x64xf32> -> vector<64x64xf32>
    %c1_131 = arith.constant 1 : index
    %c0_132 = arith.constant 0 : index
    %c0_133 = arith.constant 0 : index
    %c0_134 = arith.constant 0 : index
    %208 = vector.load %arg10[%c1_131, %c0_132, %c0_133, %c0_134] : memref<2x7x1x64xf32, #tpu.memory_space<vmem>>, vector<1x1x1x64xf32>
    %209 = vector.shape_cast %208 : vector<1x1x1x64xf32> to vector<1x64xf32>
    %210 = vector.broadcast %209 : vector<1x64xf32> to vector<64x64xf32>
    %211 = arith.addf %207, %210 : vector<64x64xf32>
    %212 = tpu.transpose %211, [1, 0] : vector<64x64xf32> -> vector<64x64xf32>
    %213 = arith.truncf %212 : vector<64x64xf32> to vector<64x64xbf16>
    %c1_135 = arith.constant 1 : index
    %c0_136 = arith.constant 0 : index
    %c0_137 = arith.constant 0 : index
    %c0_138 = arith.constant 0 : index
    %214 = vector.load %arg3[%c1_135, %c0_136, %c0_137, %c0_138] : memref<2x4x64x16xbf16, #tpu.memory_space<vmem>>, vector<1x1x64x16xbf16>
    %215 = vector.shape_cast %214 : vector<1x1x64x16xbf16> to vector<64x16xbf16>
    %cst_139 = arith.constant dense<0.000000e+00> : vector<64x16xf32>
    %216 = tpu.matmul %204, %215, %cst_139 {dimension_numbers = #tpu.dot_dimension_numbers<[1], [0], [0], [1], [0, 0, 1, 1], [], []>} : vector<64x64xbf16>, vector<64x16xbf16>, vector<64x16xf32> -> vector<64x16xf32>
    %c1_140 = arith.constant 1 : index
    %c0_141 = arith.constant 0 : index
    %c0_142 = arith.constant 0 : index
    %c0_143 = arith.constant 0 : index
    %217 = vector.load %arg4[%c1_140, %c0_141, %c0_142, %c0_143] : memref<2x4x1x16xf32, #tpu.memory_space<vmem>>, vector<1x1x1x16xf32>
    %218 = vector.shape_cast %217 : vector<1x1x1x16xf32> to vector<1x16xf32>
    %219 = vector.broadcast %218 : vector<1x16xf32> to vector<64x16xf32>
    %220 = arith.addf %216, %219 : vector<64x16xf32>
    %221 = arith.truncf %220 : vector<64x16xf32> to vector<64x16xbf16>
    %222 = vector.extract_strided_slice %213 {offsets = [0, 0], sizes = [16, 64], strides = [1, 1]} : vector<64x64xbf16> to vector<16x64xbf16>
    %cst_144 = arith.constant dense<0.000000e+00> : vector<64x64xf32>
    %223 = tpu.matmul %221, %222, %cst_144 {dimension_numbers = #tpu.dot_dimension_numbers<[1], [0], [0], [1], [0, 0, 1, 1], [], []>} : vector<64x16xbf16>, vector<16x64xbf16>, vector<64x64xf32> -> vector<64x64xf32>
    %224 = arith.addf %223, %6 : vector<64x64xf32>
    %cst_145 = arith.constant dense<0xFF800000> : vector<64xf32>
    %225 = vector.multi_reduction <maximumf>, %224, %cst_145 [1] : vector<64x64xf32> to vector<64xf32>
    %226 = vector.shape_cast %225 : vector<64xf32> to vector<64x1xf32>
    %227 = vector.broadcast %226 : vector<64x1xf32> to vector<64x64xf32>
    %228 = arith.subf %224, %227 : vector<64x64xf32>
    %229 = math.exp %228 : vector<64x64xf32>
    %cst_146 = arith.constant dense<0.000000e+00> : vector<64xf32>
    %230 = vector.multi_reduction <add>, %229, %cst_146 [1] : vector<64x64xf32> to vector<64xf32>
    %231 = vector.shape_cast %230 : vector<64xf32> to vector<64x1xf32>
    %232 = tpu.reciprocal %231 : vector<64x1xf32> -> vector<64x1xf32>
    %233 = vector.broadcast %232 : vector<64x1xf32> to vector<64x64xf32>
    %234 = arith.mulf %229, %233 : vector<64x64xf32>
    %c1_147 = arith.constant 1 : index
    %c0_148 = arith.constant 0 : index
    %c0_149 = arith.constant 0 : index
    %c0_150 = arith.constant 0 : index
    %235 = vector.load %arg6[%c1_147, %c0_148, %c0_149, %c0_150] : memref<2x4x64x64xbf16, #tpu.memory_space<vmem>>, vector<1x1x64x64xbf16>
    %236 = vector.shape_cast %235 : vector<1x1x64x64xbf16> to vector<64x64xbf16>
    %cst_151 = arith.constant dense<0.000000e+00> : vector<64x64xf32>
    %237 = tpu.matmul %204, %236, %cst_151 {dimension_numbers = #tpu.dot_dimension_numbers<[1], [0], [0], [1], [0, 0, 1, 1], [], []>} : vector<64x64xbf16>, vector<64x64xbf16>, vector<64x64xf32> -> vector<64x64xf32>
    %238 = arith.truncf %234 : vector<64x64xf32> to vector<64x64xbf16>
    %239 = arith.truncf %237 : vector<64x64xf32> to vector<64x64xbf16>
    %cst_152 = arith.constant dense<0.000000e+00> : vector<64x64xf32>
    %240 = tpu.matmul %238, %239, %cst_152 {dimension_numbers = #tpu.dot_dimension_numbers<[1], [0], [0], [1], [0, 0, 1, 1], [], []>} : vector<64x64xbf16>, vector<64x64xbf16>, vector<64x64xf32> -> vector<64x64xf32>
    %c1_153 = arith.constant 1 : index
    %c1_154 = arith.constant 1 : index
    %c0_155 = arith.constant 0 : index
    %c0_156 = arith.constant 0 : index
    %241 = vector.load %arg3[%c1_153, %c1_154, %c0_155, %c0_156] : memref<2x4x64x16xbf16, #tpu.memory_space<vmem>>, vector<1x1x64x16xbf16>
    %242 = vector.shape_cast %241 : vector<1x1x64x16xbf16> to vector<64x16xbf16>
    %cst_157 = arith.constant dense<0.000000e+00> : vector<64x16xf32>
    %243 = tpu.matmul %204, %242, %cst_157 {dimension_numbers = #tpu.dot_dimension_numbers<[1], [0], [0], [1], [0, 0, 1, 1], [], []>} : vector<64x64xbf16>, vector<64x16xbf16>, vector<64x16xf32> -> vector<64x16xf32>
    %c1_158 = arith.constant 1 : index
    %c1_159 = arith.constant 1 : index
    %c0_160 = arith.constant 0 : index
    %c0_161 = arith.constant 0 : index
    %244 = vector.load %arg4[%c1_158, %c1_159, %c0_160, %c0_161] : memref<2x4x1x16xf32, #tpu.memory_space<vmem>>, vector<1x1x1x16xf32>
    %245 = vector.shape_cast %244 : vector<1x1x1x16xf32> to vector<1x16xf32>
    %246 = vector.broadcast %245 : vector<1x16xf32> to vector<64x16xf32>
    %247 = arith.addf %243, %246 : vector<64x16xf32>
    %248 = arith.truncf %247 : vector<64x16xf32> to vector<64x16xbf16>
    %249 = vector.extract_strided_slice %213 {offsets = [16, 0], sizes = [16, 64], strides = [1, 1]} : vector<64x64xbf16> to vector<16x64xbf16>
    %cst_162 = arith.constant dense<0.000000e+00> : vector<64x64xf32>
    %250 = tpu.matmul %248, %249, %cst_162 {dimension_numbers = #tpu.dot_dimension_numbers<[1], [0], [0], [1], [0, 0, 1, 1], [], []>} : vector<64x16xbf16>, vector<16x64xbf16>, vector<64x64xf32> -> vector<64x64xf32>
    %251 = arith.addf %250, %6 : vector<64x64xf32>
    %cst_163 = arith.constant dense<0xFF800000> : vector<64xf32>
    %252 = vector.multi_reduction <maximumf>, %251, %cst_163 [1] : vector<64x64xf32> to vector<64xf32>
    %253 = vector.shape_cast %252 : vector<64xf32> to vector<64x1xf32>
    %254 = vector.broadcast %253 : vector<64x1xf32> to vector<64x64xf32>
    %255 = arith.subf %251, %254 : vector<64x64xf32>
    %256 = math.exp %255 : vector<64x64xf32>
    %cst_164 = arith.constant dense<0.000000e+00> : vector<64xf32>
    %257 = vector.multi_reduction <add>, %256, %cst_164 [1] : vector<64x64xf32> to vector<64xf32>
    %258 = vector.shape_cast %257 : vector<64xf32> to vector<64x1xf32>
    %259 = tpu.reciprocal %258 : vector<64x1xf32> -> vector<64x1xf32>
    %260 = vector.broadcast %259 : vector<64x1xf32> to vector<64x64xf32>
    %261 = arith.mulf %256, %260 : vector<64x64xf32>
    %c1_165 = arith.constant 1 : index
    %c1_166 = arith.constant 1 : index
    %c0_167 = arith.constant 0 : index
    %c0_168 = arith.constant 0 : index
    %262 = vector.load %arg6[%c1_165, %c1_166, %c0_167, %c0_168] : memref<2x4x64x64xbf16, #tpu.memory_space<vmem>>, vector<1x1x64x64xbf16>
    %263 = vector.shape_cast %262 : vector<1x1x64x64xbf16> to vector<64x64xbf16>
    %cst_169 = arith.constant dense<0.000000e+00> : vector<64x64xf32>
    %264 = tpu.matmul %204, %263, %cst_169 {dimension_numbers = #tpu.dot_dimension_numbers<[1], [0], [0], [1], [0, 0, 1, 1], [], []>} : vector<64x64xbf16>, vector<64x64xbf16>, vector<64x64xf32> -> vector<64x64xf32>
    %265 = arith.truncf %261 : vector<64x64xf32> to vector<64x64xbf16>
    %266 = arith.truncf %264 : vector<64x64xf32> to vector<64x64xbf16>
    %cst_170 = arith.constant dense<0.000000e+00> : vector<64x64xf32>
    %267 = tpu.matmul %265, %266, %cst_170 {dimension_numbers = #tpu.dot_dimension_numbers<[1], [0], [0], [1], [0, 0, 1, 1], [], []>} : vector<64x64xbf16>, vector<64x64xbf16>, vector<64x64xf32> -> vector<64x64xf32>
    %268 = arith.addf %240, %267 : vector<64x64xf32>
    %c1_171 = arith.constant 1 : index
    %c2_172 = arith.constant 2 : index
    %c0_173 = arith.constant 0 : index
    %c0_174 = arith.constant 0 : index
    %269 = vector.load %arg3[%c1_171, %c2_172, %c0_173, %c0_174] : memref<2x4x64x16xbf16, #tpu.memory_space<vmem>>, vector<1x1x64x16xbf16>
    %270 = vector.shape_cast %269 : vector<1x1x64x16xbf16> to vector<64x16xbf16>
    %cst_175 = arith.constant dense<0.000000e+00> : vector<64x16xf32>
    %271 = tpu.matmul %204, %270, %cst_175 {dimension_numbers = #tpu.dot_dimension_numbers<[1], [0], [0], [1], [0, 0, 1, 1], [], []>} : vector<64x64xbf16>, vector<64x16xbf16>, vector<64x16xf32> -> vector<64x16xf32>
    %c1_176 = arith.constant 1 : index
    %c2_177 = arith.constant 2 : index
    %c0_178 = arith.constant 0 : index
    %c0_179 = arith.constant 0 : index
    %272 = vector.load %arg4[%c1_176, %c2_177, %c0_178, %c0_179] : memref<2x4x1x16xf32, #tpu.memory_space<vmem>>, vector<1x1x1x16xf32>
    %273 = vector.shape_cast %272 : vector<1x1x1x16xf32> to vector<1x16xf32>
    %274 = vector.broadcast %273 : vector<1x16xf32> to vector<64x16xf32>
    %275 = arith.addf %271, %274 : vector<64x16xf32>
    %276 = arith.truncf %275 : vector<64x16xf32> to vector<64x16xbf16>
    %277 = vector.extract_strided_slice %213 {offsets = [32, 0], sizes = [16, 64], strides = [1, 1]} : vector<64x64xbf16> to vector<16x64xbf16>
    %cst_180 = arith.constant dense<0.000000e+00> : vector<64x64xf32>
    %278 = tpu.matmul %276, %277, %cst_180 {dimension_numbers = #tpu.dot_dimension_numbers<[1], [0], [0], [1], [0, 0, 1, 1], [], []>} : vector<64x16xbf16>, vector<16x64xbf16>, vector<64x64xf32> -> vector<64x64xf32>
    %279 = arith.addf %278, %6 : vector<64x64xf32>
    %cst_181 = arith.constant dense<0xFF800000> : vector<64xf32>
    %280 = vector.multi_reduction <maximumf>, %279, %cst_181 [1] : vector<64x64xf32> to vector<64xf32>
    %281 = vector.shape_cast %280 : vector<64xf32> to vector<64x1xf32>
    %282 = vector.broadcast %281 : vector<64x1xf32> to vector<64x64xf32>
    %283 = arith.subf %279, %282 : vector<64x64xf32>
    %284 = math.exp %283 : vector<64x64xf32>
    %cst_182 = arith.constant dense<0.000000e+00> : vector<64xf32>
    %285 = vector.multi_reduction <add>, %284, %cst_182 [1] : vector<64x64xf32> to vector<64xf32>
    %286 = vector.shape_cast %285 : vector<64xf32> to vector<64x1xf32>
    %287 = tpu.reciprocal %286 : vector<64x1xf32> -> vector<64x1xf32>
    %288 = vector.broadcast %287 : vector<64x1xf32> to vector<64x64xf32>
    %289 = arith.mulf %284, %288 : vector<64x64xf32>
    %c1_183 = arith.constant 1 : index
    %c2_184 = arith.constant 2 : index
    %c0_185 = arith.constant 0 : index
    %c0_186 = arith.constant 0 : index
    %290 = vector.load %arg6[%c1_183, %c2_184, %c0_185, %c0_186] : memref<2x4x64x64xbf16, #tpu.memory_space<vmem>>, vector<1x1x64x64xbf16>
    %291 = vector.shape_cast %290 : vector<1x1x64x64xbf16> to vector<64x64xbf16>
    %cst_187 = arith.constant dense<0.000000e+00> : vector<64x64xf32>
    %292 = tpu.matmul %204, %291, %cst_187 {dimension_numbers = #tpu.dot_dimension_numbers<[1], [0], [0], [1], [0, 0, 1, 1], [], []>} : vector<64x64xbf16>, vector<64x64xbf16>, vector<64x64xf32> -> vector<64x64xf32>
    %293 = arith.truncf %289 : vector<64x64xf32> to vector<64x64xbf16>
    %294 = arith.truncf %292 : vector<64x64xf32> to vector<64x64xbf16>
    %cst_188 = arith.constant dense<0.000000e+00> : vector<64x64xf32>
    %295 = tpu.matmul %293, %294, %cst_188 {dimension_numbers = #tpu.dot_dimension_numbers<[1], [0], [0], [1], [0, 0, 1, 1], [], []>} : vector<64x64xbf16>, vector<64x64xbf16>, vector<64x64xf32> -> vector<64x64xf32>
    %296 = arith.addf %268, %295 : vector<64x64xf32>
    %c1_189 = arith.constant 1 : index
    %c3_190 = arith.constant 3 : index
    %c0_191 = arith.constant 0 : index
    %c0_192 = arith.constant 0 : index
    %297 = vector.load %arg3[%c1_189, %c3_190, %c0_191, %c0_192] : memref<2x4x64x16xbf16, #tpu.memory_space<vmem>>, vector<1x1x64x16xbf16>
    %298 = vector.shape_cast %297 : vector<1x1x64x16xbf16> to vector<64x16xbf16>
    %cst_193 = arith.constant dense<0.000000e+00> : vector<64x16xf32>
    %299 = tpu.matmul %204, %298, %cst_193 {dimension_numbers = #tpu.dot_dimension_numbers<[1], [0], [0], [1], [0, 0, 1, 1], [], []>} : vector<64x64xbf16>, vector<64x16xbf16>, vector<64x16xf32> -> vector<64x16xf32>
    %c1_194 = arith.constant 1 : index
    %c3_195 = arith.constant 3 : index
    %c0_196 = arith.constant 0 : index
    %c0_197 = arith.constant 0 : index
    %300 = vector.load %arg4[%c1_194, %c3_195, %c0_196, %c0_197] : memref<2x4x1x16xf32, #tpu.memory_space<vmem>>, vector<1x1x1x16xf32>
    %301 = vector.shape_cast %300 : vector<1x1x1x16xf32> to vector<1x16xf32>
    %302 = vector.broadcast %301 : vector<1x16xf32> to vector<64x16xf32>
    %303 = arith.addf %299, %302 : vector<64x16xf32>
    %304 = arith.truncf %303 : vector<64x16xf32> to vector<64x16xbf16>
    %305 = vector.extract_strided_slice %213 {offsets = [48, 0], sizes = [16, 64], strides = [1, 1]} : vector<64x64xbf16> to vector<16x64xbf16>
    %cst_198 = arith.constant dense<0.000000e+00> : vector<64x64xf32>
    %306 = tpu.matmul %304, %305, %cst_198 {dimension_numbers = #tpu.dot_dimension_numbers<[1], [0], [0], [1], [0, 0, 1, 1], [], []>} : vector<64x16xbf16>, vector<16x64xbf16>, vector<64x64xf32> -> vector<64x64xf32>
    %307 = arith.addf %306, %6 : vector<64x64xf32>
    %cst_199 = arith.constant dense<0xFF800000> : vector<64xf32>
    %308 = vector.multi_reduction <maximumf>, %307, %cst_199 [1] : vector<64x64xf32> to vector<64xf32>
    %309 = vector.shape_cast %308 : vector<64xf32> to vector<64x1xf32>
    %310 = vector.broadcast %309 : vector<64x1xf32> to vector<64x64xf32>
    %311 = arith.subf %307, %310 : vector<64x64xf32>
    %312 = math.exp %311 : vector<64x64xf32>
    %cst_200 = arith.constant dense<0.000000e+00> : vector<64xf32>
    %313 = vector.multi_reduction <add>, %312, %cst_200 [1] : vector<64x64xf32> to vector<64xf32>
    %314 = vector.shape_cast %313 : vector<64xf32> to vector<64x1xf32>
    %315 = tpu.reciprocal %314 : vector<64x1xf32> -> vector<64x1xf32>
    %316 = vector.broadcast %315 : vector<64x1xf32> to vector<64x64xf32>
    %317 = arith.mulf %312, %316 : vector<64x64xf32>
    %c1_201 = arith.constant 1 : index
    %c3_202 = arith.constant 3 : index
    %c0_203 = arith.constant 0 : index
    %c0_204 = arith.constant 0 : index
    %318 = vector.load %arg6[%c1_201, %c3_202, %c0_203, %c0_204] : memref<2x4x64x64xbf16, #tpu.memory_space<vmem>>, vector<1x1x64x64xbf16>
    %319 = vector.shape_cast %318 : vector<1x1x64x64xbf16> to vector<64x64xbf16>
    %cst_205 = arith.constant dense<0.000000e+00> : vector<64x64xf32>
    %320 = tpu.matmul %204, %319, %cst_205 {dimension_numbers = #tpu.dot_dimension_numbers<[1], [0], [0], [1], [0, 0, 1, 1], [], []>} : vector<64x64xbf16>, vector<64x64xbf16>, vector<64x64xf32> -> vector<64x64xf32>
    %321 = arith.truncf %317 : vector<64x64xf32> to vector<64x64xbf16>
    %322 = arith.truncf %320 : vector<64x64xf32> to vector<64x64xbf16>
    %cst_206 = arith.constant dense<0.000000e+00> : vector<64x64xf32>
    %323 = tpu.matmul %321, %322, %cst_206 {dimension_numbers = #tpu.dot_dimension_numbers<[1], [0], [0], [1], [0, 0, 1, 1], [], []>} : vector<64x64xbf16>, vector<64x64xbf16>, vector<64x64xf32> -> vector<64x64xf32>
    %324 = arith.addf %296, %323 : vector<64x64xf32>
    %c1_207 = arith.constant 1 : index
    %c1_208 = arith.constant 1 : index
    %c0_209 = arith.constant 0 : index
    %c0_210 = arith.constant 0 : index
    %325 = vector.load %arg10[%c1_207, %c1_208, %c0_209, %c0_210] : memref<2x7x1x64xf32, #tpu.memory_space<vmem>>, vector<1x1x1x64xf32>
    %326 = vector.shape_cast %325 : vector<1x1x1x64xf32> to vector<1x64xf32>
    %327 = vector.broadcast %326 : vector<1x64xf32> to vector<64x64xf32>
    %328 = arith.addf %324, %327 : vector<64x64xf32>
    %329 = arith.addf %203, %328 : vector<64x64xf32>
    %c1_211 = arith.constant 1 : index
    %c2_212 = arith.constant 2 : index
    %c0_213 = arith.constant 0 : index
    %c0_214 = arith.constant 0 : index
    %330 = vector.load %arg10[%c1_211, %c2_212, %c0_213, %c0_214] : memref<2x7x1x64xf32, #tpu.memory_space<vmem>>, vector<1x1x1x64xf32>
    %331 = vector.shape_cast %330 : vector<1x1x1x64xf32> to vector<1x64xf32>
    %c1_215 = arith.constant 1 : index
    %c3_216 = arith.constant 3 : index
    %c0_217 = arith.constant 0 : index
    %c0_218 = arith.constant 0 : index
    %332 = vector.load %arg10[%c1_215, %c3_216, %c0_217, %c0_218] : memref<2x7x1x64xf32, #tpu.memory_space<vmem>>, vector<1x1x1x64xf32>
    %333 = vector.shape_cast %332 : vector<1x1x1x64xf32> to vector<1x64xf32>
    %cst_219 = arith.constant dense<0.000000e+00> : vector<64xf32>
    %334 = vector.multi_reduction <add>, %329, %cst_219 [1] : vector<64x64xf32> to vector<64xf32>
    %335 = vector.shape_cast %334 : vector<64xf32> to vector<64x1xf32>
    %cst_220 = arith.constant 6.400000e+01 : f32
    %336 = vector.broadcast %cst_220 : f32 to vector<64x1xf32>
    %337 = arith.divf %335, %336 : vector<64x1xf32>
    %338 = vector.broadcast %337 : vector<64x1xf32> to vector<64x64xf32>
    %339 = arith.subf %329, %338 : vector<64x64xf32>
    %340 = arith.mulf %339, %339 : vector<64x64xf32>
    %cst_221 = arith.constant dense<0.000000e+00> : vector<64xf32>
    %341 = vector.multi_reduction <add>, %340, %cst_221 [1] : vector<64x64xf32> to vector<64xf32>
    %342 = vector.shape_cast %341 : vector<64xf32> to vector<64x1xf32>
    %cst_222 = arith.constant 6.400000e+01 : f32
    %343 = vector.broadcast %cst_222 : f32 to vector<64x1xf32>
    %344 = arith.divf %342, %343 : vector<64x1xf32>
    %345 = vector.broadcast %337 : vector<64x1xf32> to vector<64x64xf32>
    %346 = arith.subf %329, %345 : vector<64x64xf32>
    %cst_223 = arith.constant 9.99999974E-6 : f32
    %347 = vector.broadcast %cst_223 : f32 to vector<64x1xf32>
    %348 = arith.addf %344, %347 : vector<64x1xf32>
    %349 = math.rsqrt %348 : vector<64x1xf32>
    %350 = vector.broadcast %349 : vector<64x1xf32> to vector<64x64xf32>
    %351 = arith.mulf %346, %350 : vector<64x64xf32>
    %352 = vector.broadcast %331 : vector<1x64xf32> to vector<64x64xf32>
    %353 = arith.mulf %351, %352 : vector<64x64xf32>
    %354 = vector.broadcast %333 : vector<1x64xf32> to vector<64x64xf32>
    %355 = arith.addf %353, %354 : vector<64x64xf32>
    %356 = arith.truncf %355 : vector<64x64xf32> to vector<64x64xbf16>
    %c1_224 = arith.constant 1 : index
    %c0_225 = arith.constant 0 : index
    %c0_226 = arith.constant 0 : index
    %357 = vector.load %arg7[%c1_224, %c0_225, %c0_226] : memref<2x64x128xbf16, #tpu.memory_space<vmem>>, vector<1x64x128xbf16>
    %358 = vector.shape_cast %357 : vector<1x64x128xbf16> to vector<64x128xbf16>
    %cst_227 = arith.constant dense<0.000000e+00> : vector<64x128xf32>
    %359 = tpu.matmul %356, %358, %cst_227 {dimension_numbers = #tpu.dot_dimension_numbers<[1], [0], [0], [1], [0, 0, 1, 1], [], []>} : vector<64x64xbf16>, vector<64x128xbf16>, vector<64x128xf32> -> vector<64x128xf32>
    %c1_228 = arith.constant 1 : index
    %c0_229 = arith.constant 0 : index
    %c0_230 = arith.constant 0 : index
    %360 = vector.load %arg8[%c1_228, %c0_229, %c0_230] : memref<2x1x128xf32, #tpu.memory_space<vmem>>, vector<1x1x128xf32>
    %361 = vector.shape_cast %360 : vector<1x1x128xf32> to vector<1x128xf32>
    %362 = vector.broadcast %361 : vector<1x128xf32> to vector<64x128xf32>
    %363 = arith.addf %359, %362 : vector<64x128xf32>
    %cst_231 = arith.constant 0.000000e+00 : f32
    %364 = vector.broadcast %cst_231 : f32 to vector<64x128xf32>
    %365 = arith.maximumf %363, %364 : vector<64x128xf32>
    %366 = arith.truncf %365 : vector<64x128xf32> to vector<64x128xbf16>
    %c1_232 = arith.constant 1 : index
    %c0_233 = arith.constant 0 : index
    %c0_234 = arith.constant 0 : index
    %367 = vector.load %arg9[%c1_232, %c0_233, %c0_234] : memref<2x128x64xbf16, #tpu.memory_space<vmem>>, vector<1x128x64xbf16>
    %368 = vector.shape_cast %367 : vector<1x128x64xbf16> to vector<128x64xbf16>
    %cst_235 = arith.constant dense<0.000000e+00> : vector<64x64xf32>
    %369 = tpu.matmul %366, %368, %cst_235 {dimension_numbers = #tpu.dot_dimension_numbers<[1], [0], [0], [1], [0, 0, 1, 1], [], []>} : vector<64x128xbf16>, vector<128x64xbf16>, vector<64x64xf32> -> vector<64x64xf32>
    %c1_236 = arith.constant 1 : index
    %c4_237 = arith.constant 4 : index
    %c0_238 = arith.constant 0 : index
    %c0_239 = arith.constant 0 : index
    %370 = vector.load %arg10[%c1_236, %c4_237, %c0_238, %c0_239] : memref<2x7x1x64xf32, #tpu.memory_space<vmem>>, vector<1x1x1x64xf32>
    %371 = vector.shape_cast %370 : vector<1x1x1x64xf32> to vector<1x64xf32>
    %372 = vector.broadcast %371 : vector<1x64xf32> to vector<64x64xf32>
    %373 = arith.addf %369, %372 : vector<64x64xf32>
    %374 = arith.addf %355, %373 : vector<64x64xf32>
    %c1_240 = arith.constant 1 : index
    %c5_241 = arith.constant 5 : index
    %c0_242 = arith.constant 0 : index
    %c0_243 = arith.constant 0 : index
    %375 = vector.load %arg10[%c1_240, %c5_241, %c0_242, %c0_243] : memref<2x7x1x64xf32, #tpu.memory_space<vmem>>, vector<1x1x1x64xf32>
    %376 = vector.shape_cast %375 : vector<1x1x1x64xf32> to vector<1x64xf32>
    %c1_244 = arith.constant 1 : index
    %c6_245 = arith.constant 6 : index
    %c0_246 = arith.constant 0 : index
    %c0_247 = arith.constant 0 : index
    %377 = vector.load %arg10[%c1_244, %c6_245, %c0_246, %c0_247] : memref<2x7x1x64xf32, #tpu.memory_space<vmem>>, vector<1x1x1x64xf32>
    %378 = vector.shape_cast %377 : vector<1x1x1x64xf32> to vector<1x64xf32>
    %cst_248 = arith.constant dense<0.000000e+00> : vector<64xf32>
    %379 = vector.multi_reduction <add>, %374, %cst_248 [1] : vector<64x64xf32> to vector<64xf32>
    %380 = vector.shape_cast %379 : vector<64xf32> to vector<64x1xf32>
    %cst_249 = arith.constant 6.400000e+01 : f32
    %381 = vector.broadcast %cst_249 : f32 to vector<64x1xf32>
    %382 = arith.divf %380, %381 : vector<64x1xf32>
    %383 = vector.broadcast %382 : vector<64x1xf32> to vector<64x64xf32>
    %384 = arith.subf %374, %383 : vector<64x64xf32>
    %385 = arith.mulf %384, %384 : vector<64x64xf32>
    %cst_250 = arith.constant dense<0.000000e+00> : vector<64xf32>
    %386 = vector.multi_reduction <add>, %385, %cst_250 [1] : vector<64x64xf32> to vector<64xf32>
    %387 = vector.shape_cast %386 : vector<64xf32> to vector<64x1xf32>
    %cst_251 = arith.constant 6.400000e+01 : f32
    %388 = vector.broadcast %cst_251 : f32 to vector<64x1xf32>
    %389 = arith.divf %387, %388 : vector<64x1xf32>
    %390 = vector.broadcast %382 : vector<64x1xf32> to vector<64x64xf32>
    %391 = arith.subf %374, %390 : vector<64x64xf32>
    %cst_252 = arith.constant 9.99999974E-6 : f32
    %392 = vector.broadcast %cst_252 : f32 to vector<64x1xf32>
    %393 = arith.addf %389, %392 : vector<64x1xf32>
    %394 = math.rsqrt %393 : vector<64x1xf32>
    %395 = vector.broadcast %394 : vector<64x1xf32> to vector<64x64xf32>
    %396 = arith.mulf %391, %395 : vector<64x64xf32>
    %397 = vector.broadcast %376 : vector<1x64xf32> to vector<64x64xf32>
    %398 = arith.mulf %396, %397 : vector<64x64xf32>
    %399 = vector.broadcast %378 : vector<1x64xf32> to vector<64x64xf32>
    %400 = arith.addf %398, %399 : vector<64x64xf32>
    %c0_253 = arith.constant 0 : index
    %c0_254 = arith.constant 0 : index
    %401 = vector.load %arg12[%c0_253, %c0_254] : memref<2x64xbf16, #tpu.memory_space<vmem>>, vector<2x64xbf16>
    %402 = arith.truncf %400 : vector<64x64xf32> to vector<64x64xbf16>
    %cst_255 = arith.constant dense<0.000000e+00> : vector<2x64xf32>
    %403 = tpu.matmul %401, %402, %cst_255 {dimension_numbers = #tpu.dot_dimension_numbers<[1], [0], [0], [1], [0, 0, 1, 1], [], []>} : vector<2x64xbf16>, vector<64x64xbf16>, vector<2x64xf32> -> vector<2x64xf32>
    %404 = arith.truncf %403 : vector<2x64xf32> to vector<2x64xbf16>
    %c0_256 = arith.constant 0 : index
    %c0_257 = arith.constant 0 : index
    %405 = vector.load %arg13[%c0_256, %c0_257] : memref<64x128xbf16, #tpu.memory_space<vmem>>, vector<64x128xbf16>
    %cst_258 = arith.constant dense<0.000000e+00> : vector<2x128xf32>
    %406 = tpu.matmul %404, %405, %cst_258 {dimension_numbers = #tpu.dot_dimension_numbers<[1], [0], [0], [1], [0, 0, 1, 1], [], []>} : vector<2x64xbf16>, vector<64x128xbf16>, vector<2x128xf32> -> vector<2x128xf32>
    %c0_259 = arith.constant 0 : index
    %c0_260 = arith.constant 0 : index
    %407 = vector.load %arg14[%c0_259, %c0_260] : memref<1x128xf32, #tpu.memory_space<vmem>>, vector<1x128xf32>
    %408 = vector.broadcast %407 : vector<1x128xf32> to vector<2x128xf32>
    %409 = arith.addf %406, %408 : vector<2x128xf32>
    %c0_261 = arith.constant 0 : index
    %c0_262 = arith.constant 0 : index
    %410 = vector.load %arg15[%c0_261, %c0_262] : memref<2x128xf32, #tpu.memory_space<vmem>>, vector<2x128xf32>
    tpu.vector_store %arg15[%c0_261, %c0_262], %409 {strides = array<i32>} : memref<2x128xf32, #tpu.memory_space<vmem>>, vector<2x128xf32>,
    return
  }
}

</mosaic_0001>

<llo_original>
// kernel: tpu_custom_call.1
$region0: #{tpu_custom_call.1}
  #allocation0 [shape = 'u32[]', space=smem, size = 0x4, offset = 0x4, fixed_abs, tag = 'smem constant byte address 0x4 - core index']
  #allocation1 [shape = 'u32[144,128]{1,0:T(1,128)}', space=vmem, size = 0x12000, scoped, tag = 'internal scratch']
  %s0 = inlined_call_operand.vmem [shape: f32[64,8], index: 0, kind: input, shape index: {}]
  %s1 = inlined_call_operand.vmem [shape: f32[8,64], index: 1, kind: input, shape index: {}]
  %s2 = inlined_call_operand.hbm [shape: f32[1,64], index: 2, kind: input, shape index: {}]
  %s3 = inlined_call_operand.vmem [shape: bf16[2,4,64,16], index: 3, kind: input, shape index: {}]
  %s4 = inlined_call_operand.hbm [shape: f32[2,4,1,16], index: 4, kind: input, shape index: {}]
  %s5 = inlined_call_operand.vmem [shape: bf16[2,64,64], index: 5, kind: input, shape index: {}]
  %s6 = inlined_call_operand.vmem [shape: bf16[2,4,64,64], index: 6, kind: input, shape index: {}]
  %s7 = inlined_call_operand.vmem [shape: bf16[2,64,128], index: 7, kind: input, shape index: {}]
  %s8 = inlined_call_operand.vmem [shape: f32[2,1,128], index: 8, kind: input, shape index: {}]
  %s9 = inlined_call_operand.vmem [shape: bf16[2,128,64], index: 9, kind: input, shape index: {}]
  %s10 = inlined_call_operand.hbm [shape: f32[2,7,1,64], index: 10, kind: input, shape index: {}]
  %s11 = inlined_call_operand.vmem [shape: f32[64,64], index: 11, kind: input, shape index: {}]
  %s12 = inlined_call_operand.vmem [shape: bf16[2,64], index: 12, kind: input, shape index: {}]
  %s13 = inlined_call_operand.vmem [shape: bf16[64,128], index: 13, kind: input, shape index: {}]
  %s14 = inlined_call_operand.vmem [shape: f32[1,128], index: 14, kind: input, shape index: {}]
  %s15 = inlined_call_operand.hbm [shape: f32[2,128], index: 15, kind: output, shape index: {}]
  %s16 = sld [smem:[#allocation0]]
  $region82: #{tpu_custom_call.1} parent=0
    _
  %s18 = ssub.s32 1, %s16
  %s19 = scalar_select 0, %s18, %s16
  $region1: #{tpu_custom_call.1} parent=0
    #allocation2 [shape = 'u8[512]{0}', space=vmem, size = 0x400, scoped, tag = 'input window, operand 2, single buffered']
    #allocation3 [shape = 's32[1]{0}', space=sflag, size = 0x4, scoped, tag = 'scoped memory for tpu_custom_call.1']
    #allocation4 [shape = 's32[1]{0}', space=sflag, size = 0x4, scoped, tag = 'scoped memory for tpu_custom_call.1']
    #allocation5 [shape = 'u8[4096]{0}', space=vmem, size = 0x1000, scoped, tag = 'input window, operand 4, single buffered']
    #allocation6 [shape = 's32[1]{0}', space=sflag, size = 0x4, scoped, tag = 'scoped memory for tpu_custom_call.1']
    #allocation7 [shape = 'u8[7168]{0}', space=vmem, size = 0x1c00, scoped, tag = 'input window, operand 10, single buffered']
    #allocation8 [shape = 'u8[1024]{0}', space=vmem, size = 0x400, scoped, tag = 'output window, operand 0, single buffered']
    %20 = vsyncpa [#allocation3], 0
    %21 = vsyncpa [#allocation6], 0
    %22 = vsyncpa [#allocation4], 0
    // Predicated region
    $region2: #{tpu_custom_call.1} parent=1 // pred_check
      _
    $region3: #{tpu_custom_call.1} parent=1 // pred_check_branch
      %24 = sbr.rel (0) target = $region5
    $region4: #{tpu_custom_call.1} parent=1 // pred_region
      _
    $region5: #{tpu_custom_call.1} parent=1 // pred_fallthru
      _
    // Predicated region
    $region6: #{tpu_custom_call.1} parent=1 // pred_check
      _
    $region7: #{tpu_custom_call.1} parent=1 // pred_check_branch
      %26 = sbr.rel (0) target = $region9
    $region8: #{tpu_custom_call.1} parent=1 // pred_region
      _
    $region9: #{tpu_custom_call.1} parent=1 // pred_fallthru
      _
    // Predicated region
    $region10: #{tpu_custom_call.1} parent=1 // pred_check
      _
    $region11: #{tpu_custom_call.1} parent=1 // pred_check_branch
      %28 = sbr.rel (0) target = $region13
    $region12: #{tpu_custom_call.1} parent=1 // pred_region
      %s30 = ssub.s32 16, 16
      %31 = vsyncadd [#allocation3], %s30
      %s33 = sshll.u32 [#allocation2], 4
      %s34 = int_to_ptr.vmem [resolvable:$true] %s33
      %36 = dma.hbm_to_vmem [thread:$0]  %s2, 16, %s34, [#allocation3]
    $region13: #{tpu_custom_call.1} parent=1 // pred_fallthru
      _
    // Predicated region
    $region14: #{tpu_custom_call.1} parent=1 // pred_check
      _
    $region15: #{tpu_custom_call.1} parent=1 // pred_check_branch
      %38 = sbr.rel (0) target = $region17
    $region16: #{tpu_custom_call.1} parent=1 // pred_region
      _
    $region17: #{tpu_custom_call.1} parent=1 // pred_fallthru
      _
    // Predicated region
    $region18: #{tpu_custom_call.1} parent=1 // pred_check
      _
    $region19: #{tpu_custom_call.1} parent=1 // pred_check_branch
      %40 = sbr.rel (0) target = $region21
    $region20: #{tpu_custom_call.1} parent=1 // pred_region
      %s42 = ssub.s32 128, 128
      %43 = vsyncadd [#allocation6], %s42
      %s44 = sshll.u32 [#allocation5], 4
      %s45 = int_to_ptr.vmem [resolvable:$true] %s44
      %50 = dma.hbm_to_vmem [thread:$0]  %s4, 128, %s45, [#allocation6], 16, 16, 1
    $region21: #{tpu_custom_call.1} parent=1 // pred_fallthru
      _
    // Predicated region
    $region22: #{tpu_custom_call.1} parent=1 // pred_check
      _
    $region23: #{tpu_custom_call.1} parent=1 // pred_check_branch
      %52 = sbr.rel (0) target = $region25
    $region24: #{tpu_custom_call.1} parent=1 // pred_region
      _
    $region25: #{tpu_custom_call.1} parent=1 // pred_fallthru
      _
    // Predicated region
    $region26: #{tpu_custom_call.1} parent=1 // pred_check
      _
    $region27: #{tpu_custom_call.1} parent=1 // pred_check_branch
      %54 = sbr.rel (0) target = $region29
    $region28: #{tpu_custom_call.1} parent=1 // pred_region
      _
    $region29: #{tpu_custom_call.1} parent=1 // pred_fallthru
      _
    // Predicated region
    $region30: #{tpu_custom_call.1} parent=1 // pred_check
      _
    $region31: #{tpu_custom_call.1} parent=1 // pred_check_branch
      %56 = sbr.rel (0) target = $region33
    $region32: #{tpu_custom_call.1} parent=1 // pred_region
      _
    $region33: #{tpu_custom_call.1} parent=1 // pred_fallthru
      _
    // Predicated region
    $region34: #{tpu_custom_call.1} parent=1 // pred_check
      _
    $region35: #{tpu_custom_call.1} parent=1 // pred_check_branch
      %58 = sbr.rel (0) target = $region37
    $region36: #{tpu_custom_call.1} parent=1 // pred_region
      _
    $region37: #{tpu_custom_call.1} parent=1 // pred_fallthru
      _
    // Predicated region
    $region38: #{tpu_custom_call.1} parent=1 // pred_check
      _
    $region39: #{tpu_custom_call.1} parent=1 // pred_check_branch
      %60 = sbr.rel (0) target = $region41
    $region40: #{tpu_custom_call.1} parent=1 // pred_region
      _
    $region41: #{tpu_custom_call.1} parent=1 // pred_fallthru
      _
    // Predicated region
    $region42: #{tpu_custom_call.1} parent=1 // pred_check
      _
    $region43: #{tpu_custom_call.1} parent=1 // pred_check_branch
      %62 = sbr.rel (0) target = $region45
    $region44: #{tpu_custom_call.1} parent=1 // pred_region
      %s64 = ssub.s32 224, 224
      %65 = vsyncadd [#allocation6], %s64
      %s66 = sshll.u32 [#allocation7], 4
      %s67 = int_to_ptr.vmem [resolvable:$true] %s66
      %72 = dma.hbm_to_vmem [thread:$0]  %s10, 224, %s67, [#allocation6], 16, 16, 1
    $region45: #{tpu_custom_call.1} parent=1 // pred_fallthru
      _
    // Predicated region
    $region46: #{tpu_custom_call.1} parent=1 // pred_check
      _
    $region47: #{tpu_custom_call.1} parent=1 // pred_check_branch
      %74 = sbr.rel (0) target = $region49
    $region48: #{tpu_custom_call.1} parent=1 // pred_region
      _
    $region49: #{tpu_custom_call.1} parent=1 // pred_fallthru
      _
    // Predicated region
    $region50: #{tpu_custom_call.1} parent=1 // pred_check
      _
    $region51: #{tpu_custom_call.1} parent=1 // pred_check_branch
      %76 = sbr.rel (0) target = $region53
    $region52: #{tpu_custom_call.1} parent=1 // pred_region
      _
    $region53: #{tpu_custom_call.1} parent=1 // pred_fallthru
      _
    // Predicated region
    $region54: #{tpu_custom_call.1} parent=1 // pred_check
      _
    $region55: #{tpu_custom_call.1} parent=1 // pred_check_branch
      %78 = sbr.rel (0) target = $region57
    $region56: #{tpu_custom_call.1} parent=1 // pred_region
      _
    $region57: #{tpu_custom_call.1} parent=1 // pred_fallthru
      _
    // Predicated region
    $region58: #{tpu_custom_call.1} parent=1 // pred_check
      _
    $region59: #{tpu_custom_call.1} parent=1 // pred_check_branch
      %80 = sbr.rel (0) target = $region61
    $region60: #{tpu_custom_call.1} parent=1 // pred_region
      _
    $region61: #{tpu_custom_call.1} parent=1 // pred_fallthru
      _
    // Predicated region
    $region62: #{tpu_custom_call.1} parent=1 // pred_check
      _
    $region63: #{tpu_custom_call.1} parent=1 // pred_check_branch
      %82 = sbr.rel (0) target = $region65
    $region64: #{tpu_custom_call.1} parent=1 // pred_region
      %83 = dma.done [#allocation3], 16
    $region65: #{tpu_custom_call.1} parent=1 // pred_fallthru
      _
    // Predicated region
    $region66: #{tpu_custom_call.1} parent=1 // pred_check
      _
    $region67: #{tpu_custom_call.1} parent=1 // pred_check_branch
      %85 = sbr.rel (0) target = $region69
    $region68: #{tpu_custom_call.1} parent=1 // pred_region
      %86 = dma.done [#allocation6], 128
    $region69: #{tpu_custom_call.1} parent=1 // pred_fallthru
      _
    // Predicated region
    $region70: #{tpu_custom_call.1} parent=1 // pred_check
      _
    $region71: #{tpu_custom_call.1} parent=1 // pred_check_branch
      %88 = sbr.rel (0) target = $region73
    $region72: #{tpu_custom_call.1} parent=1 // pred_region
      %89 = dma.done [#allocation6], 224
    $region73: #{tpu_custom_call.1} parent=1 // pred_fallthru
      _
    %v91 = vld [vmem:[%s0] sm:$0xff]
    %v92 = vld [vmem:[%s0 + $0x8] sm:$0xff]
    %v93 = vld [vmem:[%s0 + $0x10] sm:$0xff]
    %v94 = vld [vmem:[%s0 + $0x18] sm:$0xff]
    %v95 = vld [vmem:[%s0 + $0x20] sm:$0xff]
    %v96 = vld [vmem:[%s0 + $0x28] sm:$0xff]
    %v97 = vld [vmem:[%s0 + $0x30] sm:$0xff]
    %v98 = vld [vmem:[%s0 + $0x38] sm:$0xff]
    %v99 = vld [vmem:[%s1] sm:$0xff]
    %v100 = vld [vmem:[#allocation2] sm:$0x1]
    %v102 = vlaneseq
    %v103 = vshrl.u32 %v102, 7
    %v104 = vsub.s32 0, %v103
    %v105 = vrot.slane %v100, %v104
    %vm107 = vcmask 64512
    %v109 = vsel %vm107, %v91, 0
    %v112 = vsel %vm107, %v92, 0
    %v115 = vsel %vm107, %v93, 0
    %v118 = vsel %vm107, %v94, 0
    %v121 = vsel %vm107, %v95, 0
    %v124 = vsel %vm107, %v96, 0
    %v127 = vsel %vm107, %v97, 0
    %v130 = vsel %vm107, %v98, 0
    %132 = vmatprep.subr.mxu0 0.0
    %133 = vmatpush1.msra.mxu0 %v99
    %134 = vmatprep.subr.mxu0 0.0
    %135 = vmatpush1.msra.mxu0 0.0
    %136 = vmatprep.subr.mxu0 0.0
    %137 = vmatpush1.msra.mxu0 0.0
    %138 = vmatprep.subr.mxu0 0.0
    %139 = vmatpush1.msra.mxu0 0.0
    %140 = vmatprep.subr.mxu0 0.0
    %141 = vmatpush1.msra.mxu0 0.0
    %142 = vmatprep.subr.mxu0 0.0
    %143 = vmatpush1.msra.mxu0 0.0
    %144 = vmatprep.subr.mxu0 0.0
    %145 = vmatpush1.msra.mxu0 0.0
    %146 = vmatprep.subr.mxu0 0.0
    %147 = vmatpush1.msra.mxu0 0.0
    %148 = vmatprep.subr.mxu0 0.0
    %149 = vmatpush1.msra.mxu0 0.0
    %150 = vmatprep.subr.mxu0 0.0
    %151 = vmatpush1.msra.mxu0 0.0
    %152 = vmatprep.subr.mxu0 0.0
    %153 = vmatpush1.msra.mxu0 0.0
    %154 = vmatprep.subr.mxu0 0.0
    %155 = vmatpush1.msra.mxu0 0.0
    %156 = vmatprep.subr.mxu0 0.0
    %157 = vmatpush1.msra.mxu0 0.0
    %158 = vmatprep.subr.mxu0 0.0
    %159 = vmatpush1.msra.mxu0 0.0
    %160 = vmatprep.subr.mxu0 0.0
    %161 = vmatpush1.msra.mxu0 0.0
    %162 = vmatprep.subr.mxu0 0.0
    %163 = vmatpush1.msra.mxu0 0.0
    %164 = vmatprep.subr.mxu0 0.0
    %165 = vmatpush1.msra.mxu0 0.0
    %166 = vmatprep.subr.mxu0 0.0
    %167 = vmatpush1.msra.mxu0 0.0
    %168 = vmatprep.subr.mxu0 0.0
    %169 = vmatpush1.msra.mxu0 0.0
    %170 = vmatprep.subr.mxu0 0.0
    %171 = vmatpush1.msra.mxu0 0.0
    %172 = vmatprep.subr.mxu0 0.0
    %173 = vmatpush1.msra.mxu0 0.0
    %174 = vmatprep.subr.mxu0 0.0
    %175 = vmatpush1.msra.mxu0 0.0
    %176 = vmatprep.subr.mxu0 0.0
    %177 = vmatpush1.msra.mxu0 0.0
    %178 = vmatprep.subr.mxu0 0.0
    %179 = vmatpush1.msra.mxu0 0.0
    %180 = vmatprep.subr.mxu0 0.0
    %181 = vmatpush1.msra.mxu0 0.0
    %182 = vmatprep.subr.mxu0 0.0
    %183 = vmatpush1.msra.mxu0 0.0
    %184 = vmatprep.subr.mxu0 0.0
    %185 = vmatpush1.msra.mxu0 0.0
    %186 = vmatprep.subr.mxu0 0.0
    %187 = vmatpush1.msra.mxu0 0.0
    %188 = vmatprep.subr.mxu0 0.0
    %189 = vmatpush1.msra.mxu0 0.0
    %190 = vmatprep.subr.mxu0 0.0
    %191 = vmatpush1.msra.mxu0 0.0
    %192 = vmatprep.subr.mxu0 0.0
    %193 = vmatpush1.msra.mxu0 0.0
    %194 = vmatprep.subr.mxu0 0.0
    %195 = vmatpush1.msra.mxu0 0.0
    %196 = vmatprep.mubr.f32.mxu0 0.0
    %197 = vmatmul.mubr.f32.gmra.mrb[0].mxu0 %v109
    %v198 = vpop.f32.mrb[0].mxu0
    %v199 = vadd.f32 %v105, %v198
    %v200 = vpop.f32.mrb[0].mxu0
    %201 = vmatprep.mubr.f32.mxu0 0.0
    %202 = vmatmul.mubr.f32.gmra.mrb[0].mxu0 %v112
    %v203 = vpop.f32.mrb[0].mxu0
    %v204 = vadd.f32 %v105, %v203
    %v205 = vpop.f32.mrb[0].mxu0
    %206 = vmatprep.mubr.f32.mxu0 0.0
    %207 = vmatmul.mubr.f32.gmra.mrb[0].mxu0 %v115
    %v208 = vpop.f32.mrb[0].mxu0
    %v209 = vadd.f32 %v105, %v208
    %v210 = vpop.f32.mrb[0].mxu0
    %211 = vmatprep.mubr.f32.mxu0 0.0
    %212 = vmatmul.mubr.f32.gmra.mrb[0].mxu0 %v118
    %v213 = vpop.f32.mrb[0].mxu0
    %v214 = vadd.f32 %v105, %v213
    %v215 = vpop.f32.mrb[0].mxu0
    %216 = vmatprep.mubr.f32.mxu0 0.0
    %217 = vmatmul.mubr.f32.gmra.mrb[0].mxu0 %v121
    %v218 = vpop.f32.mrb[0].mxu0
    %v219 = vadd.f32 %v105, %v218
    %v220 = vpop.f32.mrb[0].mxu0
    %221 = vmatprep.mubr.f32.mxu0 0.0
    %222 = vmatmul.mubr.f32.gmra.mrb[0].mxu0 %v124
    %v223 = vpop.f32.mrb[0].mxu0
    %v224 = vadd.f32 %v105, %v223
    %v225 = vpop.f32.mrb[0].mxu0
    %226 = vmatprep.mubr.f32.mxu0 0.0
    %227 = vmatmul.mubr.f32.gmra.mrb[0].mxu0 %v127
    %v228 = vpop.f32.mrb[0].mxu0
    %v229 = vadd.f32 %v105, %v228
    %v230 = vpop.f32.mrb[0].mxu0
    %231 = vmatprep.mubr.f32.mxu0 0.0
    %232 = vmatmul.mubr.f32.gmra.mrb[0].mxu0 %v130
    %v233 = vpop.f32.mrb[0].mxu0
    %v234 = vadd.f32 %v105, %v233
    %v235 = vpop.f32.mrb[0].mxu0
    %236 = vdwg.mxu0
    %v237 = vld [vmem:[%s11] sm:$0xff]
    %v238 = vld [vmem:[%s11 + $0x8] sm:$0xff]
    %v239 = vld [vmem:[%s11 + $0x10] sm:$0xff]
    %v240 = vld [vmem:[%s11 + $0x18] sm:$0xff]
    %v241 = vld [vmem:[%s11 + $0x20] sm:$0xff]
    %v242 = vld [vmem:[%s11 + $0x28] sm:$0xff]
    %v243 = vld [vmem:[%s11 + $0x30] sm:$0xff]
    %v244 = vld [vmem:[%s11 + $0x38] sm:$0xff]
    %v245 = vpack.c.bf16 %v204, %v199
    %v246 = vpack.c.bf16 %v214, %v209
    %v247 = vpack.c.bf16 %v224, %v219
    %v248 = vpack.c.bf16 %v234, %v229
    %v249 = vld [vmem:[%s5] sm:$0xf]
    %v250 = vld [vmem:[%s5 + $0x4] sm:$0xf]
    %v251 = vld [vmem:[%s5 + $0x8] sm:$0xf]
    %v252 = vld [vmem:[%s5 + $0xc] sm:$0xf]
    %v253 = vld [vmem:[%s5 + $0x10] sm:$0xf]
    %v254 = vld [vmem:[%s5 + $0x14] sm:$0xf]
    %v255 = vld [vmem:[%s5 + $0x18] sm:$0xf]
    %v256 = vld [vmem:[%s5 + $0x1c] sm:$0xf]
    %v257 = vld [vmem:[#allocation7] sm:$0x1]
    %v259 = vlaneseq
    %v260 = vshrl.u32 %v259, 7
    %v261 = vsub.s32 0, %v260
    %v262 = vrot.slane %v257, %v261
    %v272 = vunpack.c.l.b16 %v249
    %v273 = vunpack.c.l.b16 %v250
    %v274 = vunpack.c.l.b16 %v251
    %v275 = vunpack.c.l.b16 %v252
    %v276 = vunpack.c.l.b16 %v253
    %v277 = vunpack.c.l.b16 %v254
    %v278 = vunpack.c.l.b16 %v255
    %v279 = vunpack.c.l.b16 %v256
    %v280 = vpack.c.b16 %v273, %v272
    %v281 = vpack.c.b16 %v275, %v274
    %v282 = vpack.c.b16 %v277, %v276
    %v283 = vpack.c.b16 %v279, %v278
    %vm288 = vcmask 523264
    %v290 = vsel %vm288, %v245, 0
    %v293 = vsel %vm288, %v246, 0
    %v296 = vsel %vm288, %v247, 0
    %v299 = vsel %vm288, %v248, 0
    %301 = vmatprep.subr.bf16.mxu0 0
    %302 = vmatpush1.bf16.msra.mxu0 %v280
    %303 = vmatprep.subr.bf16.mxu0 0
    %304 = vmatpush1.bf16.msra.mxu0 %v281
    %305 = vmatprep.subr.bf16.mxu0 0
    %306 = vmatpush1.bf16.msra.mxu0 %v282
    %307 = vmatprep.subr.bf16.mxu0 0
    %308 = vmatpush1.bf16.msra.mxu0 %v283
    %309 = vmatprep.subr.bf16.mxu0 0
    %310 = vmatpush1.bf16.msra.mxu0 0
    %311 = vmatprep.subr.bf16.mxu0 0
    %312 = vmatpush1.bf16.msra.mxu0 0
    %313 = vmatprep.subr.bf16.mxu0 0
    %314 = vmatpush1.bf16.msra.mxu0 0
    %315 = vmatprep.subr.bf16.mxu0 0
    %316 = vmatpush1.bf16.msra.mxu0 0
    %317 = vmatprep.subr.bf16.mxu0 0
    %318 = vmatpush1.bf16.msra.mxu0 0
    %319 = vmatprep.subr.bf16.mxu0 0
    %320 = vmatpush1.bf16.msra.mxu0 0
    %321 = vmatprep.subr.bf16.mxu0 0
    %322 = vmatpush1.bf16.msra.mxu0 0
    %323 = vmatprep.subr.bf16.mxu0 0
    %324 = vmatpush1.bf16.msra.mxu0 0
    %325 = vmatprep.subr.bf16.mxu0 0
    %326 = vmatpush1.bf16.msra.mxu0 0
    %327 = vmatprep.subr.bf16.mxu0 0
    %328 = vmatpush1.bf16.msra.mxu0 0
    %329 = vmatprep.subr.bf16.mxu0 0
    %330 = vmatpush1.bf16.msra.mxu0 0
    %331 = vmatprep.subr.bf16.mxu0 0
    %332 = vmatpush1.bf16.msra.mxu0 0
    %333 = vmatprep.mubr.bf16.mxu0 0
    %334 = vmatmul.mubr.bf16.gmra.mrb[0].mxu0 %v290
    %v335 = vpop.f32.mrb[0].mxu0
    %v336 = vadd.f32 %v262, %v335
    %v337 = vpop.f32.mrb[0].mxu0
    %v338 = vpop.f32.mrb[0].mxu0
    %v339 = vadd.f32 %v262, %v338
    %v340 = vpop.f32.mrb[0].mxu0
    %341 = vmatprep.mubr.bf16.mxu0 0
    %342 = vmatmul.mubr.bf16.gmra.mrb[0].mxu0 %v293
    %v343 = vpop.f32.mrb[0].mxu0
    %v344 = vadd.f32 %v262, %v343
    %v345 = vpop.f32.mrb[0].mxu0
    %v346 = vpop.f32.mrb[0].mxu0
    %v347 = vadd.f32 %v262, %v346
    %v348 = vpop.f32.mrb[0].mxu0
    %349 = vmatprep.mubr.bf16.mxu0 0
    %350 = vmatmul.mubr.bf16.gmra.mrb[0].mxu0 %v296
    %v351 = vpop.f32.mrb[0].mxu0
    %v352 = vadd.f32 %v262, %v351
    %v353 = vpop.f32.mrb[0].mxu0
    %v354 = vpop.f32.mrb[0].mxu0
    %v355 = vadd.f32 %v262, %v354
    %v356 = vpop.f32.mrb[0].mxu0
    %357 = vmatprep.mubr.bf16.mxu0 0
    %358 = vmatmul.mubr.bf16.gmra.mrb[0].mxu0 %v299
    %v359 = vpop.f32.mrb[0].mxu0
    %v360 = vadd.f32 %v262, %v359
    %v361 = vpop.f32.mrb[0].mxu0
    %v362 = vpop.f32.mrb[0].mxu0
    %v363 = vadd.f32 %v262, %v362
    %v364 = vpop.f32.mrb[0].mxu0
    %365 = vdwg.mxu0
    %366 = vxpose.xlu0.b32.start [1/16] %v336, 128
    %367 = vxpose.xlu0.b32.cont [2/16] %v339, 128
    %368 = vxpose.xlu0.b32.cont [3/16] %v344, 128
    %369 = vxpose.xlu0.b32.cont [4/16] %v347, 128
    %370 = vxpose.xlu0.b32.cont [5/16] %v352, 128
    %371 = vxpose.xlu0.b32.cont [6/16] %v355, 128
    %372 = vxpose.xlu0.b32.cont [7/16] %v360, 128
    %373 = vxpose.xlu0.b32.cont [8/16] %v363, 128
    %374 = vxpose.xlu0.b32.cont [9/16] 0.0, 128
    %375 = vxpose.xlu0.b32.cont [10/16] 0.0, 128
    %376 = vxpose.xlu0.b32.cont [11/16] 0.0, 128
    %377 = vxpose.xlu0.b32.cont [12/16] 0.0, 128
    %378 = vxpose.xlu0.b32.cont [13/16] 0.0, 128
    %379 = vxpose.xlu0.b32.cont [14/16] 0.0, 128
    %380 = vxpose.xlu0.b32.cont [15/16] 0.0, 128
    %381 = vxpose.xlu0.b32.end [16/16] 0.0, 128
    %v382 = vpop.trf.xlu0
    %v383 = vpop.trf.xlu0
    %v384 = vpop.trf.xlu0
    %v385 = vpop.trf.xlu0
    %v386 = vpop.trf.xlu0
    %v387 = vpop.trf.xlu0
    %v388 = vpop.trf.xlu0
    %v389 = vpop.trf.xlu0
    %v390 = vpop.trf.xlu0
    %v391 = vpop.trf.xlu0
    %v392 = vpop.trf.xlu0
    %v393 = vpop.trf.xlu0
    %v394 = vpop.trf.xlu0
    %v395 = vpop.trf.xlu0
    %v396 = vpop.trf.xlu0
    %v397 = vpop.trf.xlu0
    %v398 = vpack.c.bf16 %v383, %v382
    %v399 = vpack.c.bf16 %v385, %v384
    %v400 = vpack.c.bf16 %v387, %v386
    %v401 = vpack.c.bf16 %v389, %v388
    %v402 = vld [vmem:[%s3] sm:$0xf]
    %v403 = vld [vmem:[%s3 + $0x4] sm:$0xf]
    %v404 = vld [vmem:[%s3 + $0x8] sm:$0xf]
    %v405 = vld [vmem:[%s3 + $0xc] sm:$0xf]
    %v406 = vld [vmem:[%s3 + $0x10] sm:$0xf]
    %v407 = vld [vmem:[%s3 + $0x14] sm:$0xf]
    %v408 = vld [vmem:[%s3 + $0x18] sm:$0xf]
    %v409 = vld [vmem:[%s3 + $0x1c] sm:$0xf]
    %v410 = vld [vmem:[#allocation5] sm:$0x1]
    %v412 = vlaneseq
    %v413 = vshrl.u32 %v412, 7
    %v414 = vsub.s32 0, %v413
    %v415 = vrot.slane %v410, %v414
    %v425 = vunpack.c.l.b16 %v402
    %v426 = vunpack.c.l.b16 %v403
    %v427 = vunpack.c.l.b16 %v404
    %v428 = vunpack.c.l.b16 %v405
    %v429 = vunpack.c.l.b16 %v406
    %v430 = vunpack.c.l.b16 %v407
    %v431 = vunpack.c.l.b16 %v408
    %v432 = vunpack.c.l.b16 %v409
    %v433 = vpack.c.b16 %v426, %v425
    %v434 = vpack.c.b16 %v428, %v427
    %v435 = vpack.c.b16 %v430, %v429
    %v436 = vpack.c.b16 %v432, %v431
    %441 = vmatprep.subr.bf16.mxu0 0
    %442 = vmatpush1.bf16.msra.mxu0 %v433
    %443 = vmatprep.subr.bf16.mxu0 0
    %444 = vmatpush1.bf16.msra.mxu0 %v434
    %445 = vmatprep.subr.bf16.mxu0 0
    %446 = vmatpush1.bf16.msra.mxu0 %v435
    %447 = vmatprep.subr.bf16.mxu0 0
    %448 = vmatpush1.bf16.msra.mxu0 %v436
    %449 = vmatprep.subr.bf16.mxu0 0
    %450 = vmatpush1.bf16.msra.mxu0 0
    %451 = vmatprep.subr.bf16.mxu0 0
    %452 = vmatpush1.bf16.msra.mxu0 0
    %453 = vmatprep.subr.bf16.mxu0 0
    %454 = vmatpush1.bf16.msra.mxu0 0
    %455 = vmatprep.subr.bf16.mxu0 0
    %456 = vmatpush1.bf16.msra.mxu0 0
    %457 = vmatprep.subr.bf16.mxu0 0
    %458 = vmatpush1.bf16.msra.mxu0 0
    %459 = vmatprep.subr.bf16.mxu0 0
    %460 = vmatpush1.bf16.msra.mxu0 0
    %461 = vmatprep.subr.bf16.mxu0 0
    %462 = vmatpush1.bf16.msra.mxu0 0
    %463 = vmatprep.subr.bf16.mxu0 0
    %464 = vmatpush1.bf16.msra.mxu0 0
    %465 = vmatprep.subr.bf16.mxu0 0
    %466 = vmatpush1.bf16.msra.mxu0 0
    %467 = vmatprep.subr.bf16.mxu0 0
    %468 = vmatpush1.bf16.msra.mxu0 0
    %469 = vmatprep.subr.bf16.mxu0 0
    %470 = vmatpush1.bf16.msra.mxu0 0
    %471 = vmatprep.subr.bf16.mxu0 0
    %472 = vmatpush1.bf16.msra.mxu0 0
    %473 = vmatprep.mubr.bf16.mxu0 0
    %474 = vmatmul.mubr.bf16.gmra.mrb[0].mxu0 %v290
    %v475 = vpop.f32.mrb[0].mxu0
    %v476 = vadd.f32 %v415, %v475
    %v477 = vpop.f32.mrb[0].mxu0
    %v478 = vpop.f32.mrb[0].mxu0
    %v479 = vadd.f32 %v415, %v478
    %v480 = vpop.f32.mrb[0].mxu0
    %481 = vmatprep.mubr.bf16.mxu0 0
    %482 = vmatmul.mubr.bf16.gmra.mrb[0].mxu0 %v293
    %v483 = vpop.f32.mrb[0].mxu0
    %v484 = vadd.f32 %v415, %v483
    %v485 = vpop.f32.mrb[0].mxu0
    %v486 = vpop.f32.mrb[0].mxu0
    %v487 = vadd.f32 %v415, %v486
    %v488 = vpop.f32.mrb[0].mxu0
    %489 = vmatprep.mubr.bf16.mxu0 0
    %490 = vmatmul.mubr.bf16.gmra.mrb[0].mxu0 %v296
    %v491 = vpop.f32.mrb[0].mxu0
    %v492 = vadd.f32 %v415, %v491
    %v493 = vpop.f32.mrb[0].mxu0
    %v494 = vpop.f32.mrb[0].mxu0
    %v495 = vadd.f32 %v415, %v494
    %v496 = vpop.f32.mrb[0].mxu0
    %497 = vmatprep.mubr.bf16.mxu0 0
    %498 = vmatmul.mubr.bf16.gmra.mrb[0].mxu0 %v299
    %v499 = vpop.f32.mrb[0].mxu0
    %v500 = vadd.f32 %v415, %v499
    %v501 = vpop.f32.mrb[0].mxu0
    %v502 = vpop.f32.mrb[0].mxu0
    %v503 = vadd.f32 %v415, %v502
    %v504 = vpop.f32.mrb[0].mxu0
    %505 = vdwg.mxu0
    %v506 = vpack.c.bf16 %v479, %v476
    %v507 = vpack.c.bf16 %v487, %v484
    %v508 = vpack.c.bf16 %v495, %v492
    %v509 = vpack.c.bf16 %v503, %v500
    %vm510 = vcmask 130048
    %v512 = vsel %vm510, %v506, 0
    %v515 = vsel %vm510, %v507, 0
    %v518 = vsel %vm510, %v508, 0
    %v521 = vsel %vm510, %v509, 0
    %523 = vmatprep.subr.bf16.mxu0 0
    %524 = vmatpush1.bf16.msra.mxu0 %v398
    %525 = vmatprep.subr.bf16.mxu0 0
    %526 = vmatpush1.bf16.msra.mxu0 0
    %527 = vmatprep.subr.bf16.mxu0 0
    %528 = vmatpush1.bf16.msra.mxu0 0
    %529 = vmatprep.subr.bf16.mxu0 0
    %530 = vmatpush1.bf16.msra.mxu0 0
    %531 = vmatprep.subr.bf16.mxu0 0
    %532 = vmatpush1.bf16.msra.mxu0 0
    %533 = vmatprep.subr.bf16.mxu0 0
    %534 = vmatpush1.bf16.msra.mxu0 0
    %535 = vmatprep.subr.bf16.mxu0 0
    %536 = vmatpush1.bf16.msra.mxu0 0
    %537 = vmatprep.subr.bf16.mxu0 0
    %538 = vmatpush1.bf16.msra.mxu0 0
    %539 = vmatprep.subr.bf16.mxu0 0
    %540 = vmatpush1.bf16.msra.mxu0 0
    %541 = vmatprep.subr.bf16.mxu0 0
    %542 = vmatpush1.bf16.msra.mxu0 0
    %543 = vmatprep.subr.bf16.mxu0 0
    %544 = vmatpush1.bf16.msra.mxu0 0
    %545 = vmatprep.subr.bf16.mxu0 0
    %546 = vmatpush1.bf16.msra.mxu0 0
    %547 = vmatprep.subr.bf16.mxu0 0
    %548 = vmatpush1.bf16.msra.mxu0 0
    %549 = vmatprep.subr.bf16.mxu0 0
    %550 = vmatpush1.bf16.msra.mxu0 0
    %551 = vmatprep.subr.bf16.mxu0 0
    %552 = vmatpush1.bf16.msra.mxu0 0
    %553 = vmatprep.subr.bf16.mxu0 0
    %554 = vmatpush1.bf16.msra.mxu0 0
    %555 = vmatprep.mubr.bf16.mxu0 0
    %556 = vmatmul.mubr.bf16.gmra.mrb[0].mxu0 %v512
    %v557 = vpop.f32.mrb[0].mxu0
    %v558 = vadd.f32 %v237, %v557
    %v559 = vpop.f32.mrb[0].mxu0
    %v560 = vpop.f32.mrb[0].mxu0
    %v561 = vadd.f32 %v238, %v560
    %v562 = vpop.f32.mrb[0].mxu0
    %563 = vmatprep.mubr.bf16.mxu0 0
    %564 = vmatmul.mubr.bf16.gmra.mrb[0].mxu0 %v515
    %v565 = vpop.f32.mrb[0].mxu0
    %v566 = vadd.f32 %v239, %v565
    %v567 = vpop.f32.mrb[0].mxu0
    %v568 = vpop.f32.mrb[0].mxu0
    %v569 = vadd.f32 %v240, %v568
    %v570 = vpop.f32.mrb[0].mxu0
    %571 = vmatprep.mubr.bf16.mxu0 0
    %572 = vmatmul.mubr.bf16.gmra.mrb[0].mxu0 %v518
    %v573 = vpop.f32.mrb[0].mxu0
    %v574 = vadd.f32 %v241, %v573
    %v575 = vpop.f32.mrb[0].mxu0
    %v576 = vpop.f32.mrb[0].mxu0
    %v577 = vadd.f32 %v242, %v576
    %v578 = vpop.f32.mrb[0].mxu0
    %579 = vmatprep.mubr.bf16.mxu0 0
    %580 = vmatmul.mubr.bf16.gmra.mrb[0].mxu0 %v521
    %v581 = vpop.f32.mrb[0].mxu0
    %v582 = vadd.f32 %v243, %v581
    %v583 = vpop.f32.mrb[0].mxu0
    %v584 = vpop.f32.mrb[0].mxu0
    %v585 = vadd.f32 %v244, %v584
    %v586 = vpop.f32.mrb[0].mxu0
    %587 = vdwg.mxu0
    %v588 = vsel %vm288, %v558, -inf
    %589 = vmax.xlane.f32.xlu0 %v588
    %v590 = vpop.xlane.xlu0 %589
    %v591 = vsel %vm288, %v561, -inf
    %592 = vmax.xlane.f32.xlu0 %v591
    %v593 = vpop.xlane.xlu0 %592
    %v594 = vsel %vm288, %v566, -inf
    %595 = vmax.xlane.f32.xlu0 %v594
    %v596 = vpop.xlane.xlu0 %595
    %v597 = vsel %vm288, %v569, -inf
    %598 = vmax.xlane.f32.xlu0 %v597
    %v599 = vpop.xlane.xlu0 %598
    %v600 = vsel %vm288, %v574, -inf
    %601 = vmax.xlane.f32.xlu0 %v600
    %v602 = vpop.xlane.xlu0 %601
    %v603 = vsel %vm288, %v577, -inf
    %604 = vmax.xlane.f32.xlu0 %v603
    %v605 = vpop.xlane.xlu0 %604
    %v606 = vsel %vm288, %v582, -inf
    %607 = vmax.xlane.f32.xlu0 %v606
    %v608 = vpop.xlane.xlu0 %607
    %v609 = vsel %vm288, %v585, -inf
    %610 = vmax.xlane.f32.xlu0 %v609
    %v611 = vpop.xlane.xlu0 %610
    %v612 = vsub.f32 %v558, %v590
    %v613 = vsub.f32 %v561, %v593
    %v614 = vsub.f32 %v566, %v596
    %v615 = vsub.f32 %v569, %v599
    %v616 = vsub.f32 %v574, %v602
    %v617 = vsub.f32 %v577, %v605
    %v618 = vsub.f32 %v582, %v608
    %v619 = vsub.f32 %v585, %v611
    %v620 = vmul.f32 %v612, 1.442695
    %v621 = vpow.pop %v620
    %v622 = vmul.f32 %v613, 1.442695
    %v623 = vpow.pop %v622
    %v624 = vmul.f32 %v614, 1.442695
    %v625 = vpow.pop %v624
    %v626 = vmul.f32 %v615, 1.442695
    %v627 = vpow.pop %v626
    %v628 = vmul.f32 %v616, 1.442695
    %v629 = vpow.pop %v628
    %v630 = vmul.f32 %v617, 1.442695
    %v631 = vpow.pop %v630
    %v632 = vmul.f32 %v618, 1.442695
    %v633 = vpow.pop %v632
    %v634 = vmul.f32 %v619, 1.442695
    %v635 = vpow.pop %v634
    %v636 = vsel %vm288, %v621, 0.0
    %637 = vadd.xlane.f32.xlu0 %v636
    %v638 = vpop.xlane.xlu0 %637
    %v639 = vsel %vm288, %v623, 0.0
    %640 = vadd.xlane.f32.xlu0 %v639
    %v641 = vpop.xlane.xlu0 %640
    %v642 = vsel %vm288, %v625, 0.0
    %643 = vadd.xlane.f32.xlu0 %v642
    %v644 = vpop.xlane.xlu0 %643
    %v645 = vsel %vm288, %v627, 0.0
    %646 = vadd.xlane.f32.xlu0 %v645
    %v647 = vpop.xlane.xlu0 %646
    %v648 = vsel %vm288, %v629, 0.0
    %649 = vadd.xlane.f32.xlu0 %v648
    %v650 = vpop.xlane.xlu0 %649
    %v651 = vsel %vm288, %v631, 0.0
    %652 = vadd.xlane.f32.xlu0 %v651
    %v653 = vpop.xlane.xlu0 %652
    %v654 = vsel %vm288, %v633, 0.0
    %655 = vadd.xlane.f32.xlu0 %v654
    %v656 = vpop.xlane.xlu0 %655
    %v657 = vsel %vm288, %v635, 0.0
    %658 = vadd.xlane.f32.xlu0 %v657
    %v659 = vpop.xlane.xlu0 %658
    %v660 = vrcp.pop %v638
    %v661 = vrcp.pop %v641
    %v662 = vrcp.pop %v644
    %v663 = vrcp.pop %v647
    %v664 = vrcp.pop %v650
    %v665 = vrcp.pop %v653
    %v666 = vrcp.pop %v656
    %v667 = vrcp.pop %v659
    %v668 = vmul.f32 %v621, %v660
    %v669 = vmul.f32 %v623, %v661
    %v670 = vmul.f32 %v625, %v662
    %v671 = vmul.f32 %v627, %v663
    %v672 = vmul.f32 %v629, %v664
    %v673 = vmul.f32 %v631, %v665
    %v674 = vmul.f32 %v633, %v666
    %v675 = vmul.f32 %v635, %v667
    %v676 = vld [vmem:[%s6] sm:$0xf]
    %v677 = vld [vmem:[%s6 + $0x4] sm:$0xf]
    %v678 = vld [vmem:[%s6 + $0x8] sm:$0xf]
    %v679 = vld [vmem:[%s6 + $0xc] sm:$0xf]
    %v680 = vld [vmem:[%s6 + $0x10] sm:$0xf]
    %v681 = vld [vmem:[%s6 + $0x14] sm:$0xf]
    %v682 = vld [vmem:[%s6 + $0x18] sm:$0xf]
    %v683 = vld [vmem:[%s6 + $0x1c] sm:$0xf]
    %v692 = vunpack.c.l.b16 %v676
    %v693 = vunpack.c.l.b16 %v677
    %v694 = vunpack.c.l.b16 %v678
    %v695 = vunpack.c.l.b16 %v679
    %v696 = vunpack.c.l.b16 %v680
    %v697 = vunpack.c.l.b16 %v681
    %v698 = vunpack.c.l.b16 %v682
    %v699 = vunpack.c.l.b16 %v683
    %v700 = vpack.c.b16 %v693, %v692
    %v701 = vpack.c.b16 %v695, %v694
    %v702 = vpack.c.b16 %v697, %v696
    %v703 = vpack.c.b16 %v699, %v698
    %708 = vmatprep.subr.bf16.mxu0 0
    %709 = vmatpush1.bf16.msra.mxu0 %v700
    %710 = vmatprep.subr.bf16.mxu0 0
    %711 = vmatpush1.bf16.msra.mxu0 %v701
    %712 = vmatprep.subr.bf16.mxu0 0
    %713 = vmatpush1.bf16.msra.mxu0 %v702
    %714 = vmatprep.subr.bf16.mxu0 0
    %715 = vmatpush1.bf16.msra.mxu0 %v703
    %716 = vmatprep.subr.bf16.mxu0 0
    %717 = vmatpush1.bf16.msra.mxu0 0
    %718 = vmatprep.subr.bf16.mxu0 0
    %719 = vmatpush1.bf16.msra.mxu0 0
    %720 = vmatprep.subr.bf16.mxu0 0
    %721 = vmatpush1.bf16.msra.mxu0 0
    %722 = vmatprep.subr.bf16.mxu0 0
    %723 = vmatpush1.bf16.msra.mxu0 0
    %724 = vmatprep.subr.bf16.mxu0 0
    %725 = vmatpush1.bf16.msra.mxu0 0
    %726 = vmatprep.subr.bf16.mxu0 0
    %727 = vmatpush1.bf16.msra.mxu0 0
    %728 = vmatprep.subr.bf16.mxu0 0
    %729 = vmatpush1.bf16.msra.mxu0 0
    %730 = vmatprep.subr.bf16.mxu0 0
    %731 = vmatpush1.bf16.msra.mxu0 0
    %732 = vmatprep.subr.bf16.mxu0 0
    %733 = vmatpush1.bf16.msra.mxu0 0
    %734 = vmatprep.subr.bf16.mxu0 0
    %735 = vmatpush1.bf16.msra.mxu0 0
    %736 = vmatprep.subr.bf16.mxu0 0
    %737 = vmatpush1.bf16.msra.mxu0 0
    %738 = vmatprep.subr.bf16.mxu0 0
    %739 = vmatpush1.bf16.msra.mxu0 0
    %740 = vmatprep.mubr.bf16.mxu0 0
    %741 = vmatmul.mubr.bf16.gmra.mrb[0].mxu0 %v290
    %v742 = vpop.f32.mrb[0].mxu0
    %v743 = vadd.f32 0.0, %v742
    %v744 = vpop.f32.mrb[0].mxu0
    %v745 = vpop.f32.mrb[0].mxu0
    %v746 = vadd.f32 0.0, %v745
    %v747 = vpop.f32.mrb[0].mxu0
    %748 = vmatprep.mubr.bf16.mxu0 0
    %749 = vmatmul.mubr.bf16.gmra.mrb[0].mxu0 %v293
    %v750 = vpop.f32.mrb[0].mxu0
    %v751 = vadd.f32 0.0, %v750
    %v752 = vpop.f32.mrb[0].mxu0
    %v753 = vpop.f32.mrb[0].mxu0
    %v754 = vadd.f32 0.0, %v753
    %v755 = vpop.f32.mrb[0].mxu0
    %756 = vmatprep.mubr.bf16.mxu0 0
    %757 = vmatmul.mubr.bf16.gmra.mrb[0].mxu0 %v296
    %v758 = vpop.f32.mrb[0].mxu0
    %v759 = vadd.f32 0.0, %v758
    %v760 = vpop.f32.mrb[0].mxu0
    %v761 = vpop.f32.mrb[0].mxu0
    %v762 = vadd.f32 0.0, %v761
    %v763 = vpop.f32.mrb[0].mxu0
    %764 = vmatprep.mubr.bf16.mxu0 0
    %765 = vmatmul.mubr.bf16.gmra.mrb[0].mxu0 %v299
    %v766 = vpop.f32.mrb[0].mxu0
    %v767 = vadd.f32 0.0, %v766
    %v768 = vpop.f32.mrb[0].mxu0
    %v769 = vpop.f32.mrb[0].mxu0
    %v770 = vadd.f32 0.0, %v769
    %v771 = vpop.f32.mrb[0].mxu0
    %772 = vdwg.mxu0
    %v773 = vpack.c.bf16 %v669, %v668
    %v774 = vpack.c.bf16 %v671, %v670
    %v775 = vpack.c.bf16 %v673, %v672
    %v776 = vpack.c.bf16 %v675, %v674
    %v777 = vpack.c.bf16 %v746, %v743
    %v778 = vpack.c.bf16 %v754, %v751
    %v779 = vpack.c.bf16 %v762, %v759
    %v780 = vpack.c.bf16 %v770, %v767
    %s781 = scalar_lea.vmem %s3, 32
    %v782 = vld [vmem:[%s781] sm:$0xf]
    %v783 = vld [vmem:[%s781 + $0x4] sm:$0xf]
    %v784 = vld [vmem:[%s781 + $0x8] sm:$0xf]
    %v785 = vld [vmem:[%s781 + $0xc] sm:$0xf]
    %v786 = vld [vmem:[%s781 + $0x10] sm:$0xf]
    %v787 = vld [vmem:[%s781 + $0x14] sm:$0xf]
    %v788 = vld [vmem:[%s781 + $0x18] sm:$0xf]
    %v789 = vld [vmem:[%s781 + $0x1c] sm:$0xf]
    %s790 = scalar_lea.vmem [#allocation5], 1
    %v791 = vld [vmem:[%s790] sm:$0x1]
    %v793 = vlaneseq
    %v794 = vshrl.u32 %v793, 7
    %v795 = vsub.s32 0, %v794
    %v796 = vrot.slane %v791, %v795
    %v806 = vunpack.c.l.b16 %v782
    %v807 = vunpack.c.l.b16 %v783
    %v808 = vunpack.c.l.b16 %v784
    %v809 = vunpack.c.l.b16 %v785
    %v810 = vunpack.c.l.b16 %v786
    %v811 = vunpack.c.l.b16 %v787
    %v812 = vunpack.c.l.b16 %v788
    %v813 = vunpack.c.l.b16 %v789
    %v814 = vpack.c.b16 %v807, %v806
    %v815 = vpack.c.b16 %v809, %v808
    %v816 = vpack.c.b16 %v811, %v810
    %v817 = vpack.c.b16 %v813, %v812
    %822 = vmatprep.subr.bf16.mxu0 0
    %823 = vmatpush1.bf16.msra.mxu0 %v814
    %824 = vmatprep.subr.bf16.mxu0 0
    %825 = vmatpush1.bf16.msra.mxu0 %v815
    %826 = vmatprep.subr.bf16.mxu0 0
    %827 = vmatpush1.bf16.msra.mxu0 %v816
    %828 = vmatprep.subr.bf16.mxu0 0
    %829 = vmatpush1.bf16.msra.mxu0 %v817
    %830 = vmatprep.subr.bf16.mxu0 0
    %831 = vmatpush1.bf16.msra.mxu0 0
    %832 = vmatprep.subr.bf16.mxu0 0
    %833 = vmatpush1.bf16.msra.mxu0 0
    %834 = vmatprep.subr.bf16.mxu0 0
    %835 = vmatpush1.bf16.msra.mxu0 0
    %836 = vmatprep.subr.bf16.mxu0 0
    %837 = vmatpush1.bf16.msra.mxu0 0
    %838 = vmatprep.subr.bf16.mxu0 0
    %839 = vmatpush1.bf16.msra.mxu0 0
    %840 = vmatprep.subr.bf16.mxu0 0
    %841 = vmatpush1.bf16.msra.mxu0 0
    %842 = vmatprep.subr.bf16.mxu0 0
    %843 = vmatpush1.bf16.msra.mxu0 0
    %844 = vmatprep.subr.bf16.mxu0 0
    %845 = vmatpush1.bf16.msra.mxu0 0
    %846 = vmatprep.subr.bf16.mxu0 0
    %847 = vmatpush1.bf16.msra.mxu0 0
    %848 = vmatprep.subr.bf16.mxu0 0
    %849 = vmatpush1.bf16.msra.mxu0 0
    %850 = vmatprep.subr.bf16.mxu0 0
    %851 = vmatpush1.bf16.msra.mxu0 0
    %852 = vmatprep.subr.bf16.mxu0 0
    %853 = vmatpush1.bf16.msra.mxu0 0
    %854 = vmatprep.mubr.bf16.mxu0 0
    %855 = vmatmul.mubr.bf16.gmra.mrb[0].mxu0 %v290
    %v856 = vpop.f32.mrb[0].mxu0
    %v857 = vadd.f32 %v796, %v856
    %v858 = vpop.f32.mrb[0].mxu0
    %v859 = vpop.f32.mrb[0].mxu0
    %v860 = vadd.f32 %v796, %v859
    %v861 = vpop.f32.mrb[0].mxu0
    %862 = vmatprep.mubr.bf16.mxu0 0
    %863 = vmatmul.mubr.bf16.gmra.mrb[0].mxu0 %v293
    %v864 = vpop.f32.mrb[0].mxu0
    %v865 = vadd.f32 %v796, %v864
    %v866 = vpop.f32.mrb[0].mxu0
    %v867 = vpop.f32.mrb[0].mxu0
    %v868 = vadd.f32 %v796, %v867
    %v869 = vpop.f32.mrb[0].mxu0
    %870 = vmatprep.mubr.bf16.mxu0 0
    %871 = vmatmul.mubr.bf16.gmra.mrb[0].mxu0 %v296
    %v872 = vpop.f32.mrb[0].mxu0
    %v873 = vadd.f32 %v796, %v872
    %v874 = vpop.f32.mrb[0].mxu0
    %v875 = vpop.f32.mrb[0].mxu0
    %v876 = vadd.f32 %v796, %v875
    %v877 = vpop.f32.mrb[0].mxu0
    %878 = vmatprep.mubr.bf16.mxu0 0
    %879 = vmatmul.mubr.bf16.gmra.mrb[0].mxu0 %v299
    %v880 = vpop.f32.mrb[0].mxu0
    %v881 = vadd.f32 %v796, %v880
    %v882 = vpop.f32.mrb[0].mxu0
    %v883 = vpop.f32.mrb[0].mxu0
    %v884 = vadd.f32 %v796, %v883
    %v885 = vpop.f32.mrb[0].mxu0
    %886 = vdwg.mxu0
    %v887 = vpack.c.bf16 %v860, %v857
    %v888 = vpack.c.bf16 %v868, %v865
    %v889 = vpack.c.bf16 %v876, %v873
    %v890 = vpack.c.bf16 %v884, %v881
    %v892 = vsel %vm510, %v887, 0
    %v895 = vsel %vm510, %v888, 0
    %v898 = vsel %vm510, %v889, 0
    %v901 = vsel %vm510, %v890, 0
    %903 = vmatprep.subr.bf16.mxu0 0
    %904 = vmatpush1.bf16.msra.mxu0 %v399
    %905 = vmatprep.subr.bf16.mxu0 0
    %906 = vmatpush1.bf16.msra.mxu0 0
    %907 = vmatprep.subr.bf16.mxu0 0
    %908 = vmatpush1.bf16.msra.mxu0 0
    %909 = vmatprep.subr.bf16.mxu0 0
    %910 = vmatpush1.bf16.msra.mxu0 0
    %911 = vmatprep.subr.bf16.mxu0 0
    %912 = vmatpush1.bf16.msra.mxu0 0
    %913 = vmatprep.subr.bf16.mxu0 0
    %914 = vmatpush1.bf16.msra.mxu0 0
    %915 = vmatprep.subr.bf16.mxu0 0
    %916 = vmatpush1.bf16.msra.mxu0 0
    %917 = vmatprep.subr.bf16.mxu0 0
    %918 = vmatpush1.bf16.msra.mxu0 0
    %919 = vmatprep.subr.bf16.mxu0 0
    %920 = vmatpush1.bf16.msra.mxu0 0
    %921 = vmatprep.subr.bf16.mxu0 0
    %922 = vmatpush1.bf16.msra.mxu0 0
    %923 = vmatprep.subr.bf16.mxu0 0
    %924 = vmatpush1.bf16.msra.mxu0 0
    %925 = vmatprep.subr.bf16.mxu0 0
    %926 = vmatpush1.bf16.msra.mxu0 0
    %927 = vmatprep.subr.bf16.mxu0 0
    %928 = vmatpush1.bf16.msra.mxu0 0
    %929 = vmatprep.subr.bf16.mxu0 0
    %930 = vmatpush1.bf16.msra.mxu0 0
    %931 = vmatprep.subr.bf16.mxu0 0
    %932 = vmatpush1.bf16.msra.mxu0 0
    %933 = vmatprep.subr.bf16.mxu0 0
    %934 = vmatpush1.bf16.msra.mxu0 0
    %935 = vmatprep.mubr.bf16.mxu0 0
    %936 = vmatmul.mubr.bf16.gmra.mrb[0].mxu0 %v892
    %v937 = vpop.f32.mrb[0].mxu0
    %v938 = vadd.f32 %v237, %v937
    %v939 = vpop.f32.mrb[0].mxu0
    %v940 = vpop.f32.mrb[0].mxu0
    %v941 = vadd.f32 %v238, %v940
    %v942 = vpop.f32.mrb[0].mxu0
    %943 = vmatprep.mubr.bf16.mxu0 0
    %944 = vmatmul.mubr.bf16.gmra.mrb[0].mxu0 %v895
    %v945 = vpop.f32.mrb[0].mxu0
    %v946 = vadd.f32 %v239, %v945
    %v947 = vpop.f32.mrb[0].mxu0
    %v948 = vpop.f32.mrb[0].mxu0
    %v949 = vadd.f32 %v240, %v948
    %v950 = vpop.f32.mrb[0].mxu0
    %951 = vmatprep.mubr.bf16.mxu0 0
    %952 = vmatmul.mubr.bf16.gmra.mrb[0].mxu0 %v898
    %v953 = vpop.f32.mrb[0].mxu0
    %v954 = vadd.f32 %v241, %v953
    %v955 = vpop.f32.mrb[0].mxu0
    %v956 = vpop.f32.mrb[0].mxu0
    %v957 = vadd.f32 %v242, %v956
    %v958 = vpop.f32.mrb[0].mxu0
    %959 = vmatprep.mubr.bf16.mxu0 0
    %960 = vmatmul.mubr.bf16.gmra.mrb[0].mxu0 %v901
    %v961 = vpop.f32.mrb[0].mxu0
    %v962 = vadd.f32 %v243, %v961
    %v963 = vpop.f32.mrb[0].mxu0
    %v964 = vpop.f32.mrb[0].mxu0
    %v965 = vadd.f32 %v244, %v964
    %v966 = vpop.f32.mrb[0].mxu0
    %967 = vdwg.mxu0
    %v968 = vsel %vm288, %v938, -inf
    %969 = vmax.xlane.f32.xlu0 %v968
    %v970 = vpop.xlane.xlu0 %969
    %v971 = vsel %vm288, %v941, -inf
    %972 = vmax.xlane.f32.xlu0 %v971
    %v973 = vpop.xlane.xlu0 %972
    %v974 = vsel %vm288, %v946, -inf
    %975 = vmax.xlane.f32.xlu0 %v974
    %v976 = vpop.xlane.xlu0 %975
    %v977 = vsel %vm288, %v949, -inf
    %978 = vmax.xlane.f32.xlu0 %v977
    %v979 = vpop.xlane.xlu0 %978
    %v980 = vsel %vm288, %v954, -inf
    %981 = vmax.xlane.f32.xlu0 %v980
    %v982 = vpop.xlane.xlu0 %981
    %v983 = vsel %vm288, %v957, -inf
    %984 = vmax.xlane.f32.xlu0 %v983
    %v985 = vpop.xlane.xlu0 %984
    %v986 = vsel %vm288, %v962, -inf
    %987 = vmax.xlane.f32.xlu0 %v986
    %v988 = vpop.xlane.xlu0 %987
    %v989 = vsel %vm288, %v965, -inf
    %990 = vmax.xlane.f32.xlu0 %v989
    %v991 = vpop.xlane.xlu0 %990
    %v992 = vsub.f32 %v938, %v970
    %v993 = vsub.f32 %v941, %v973
    %v994 = vsub.f32 %v946, %v976
    %v995 = vsub.f32 %v949, %v979
    %v996 = vsub.f32 %v954, %v982
    %v997 = vsub.f32 %v957, %v985
    %v998 = vsub.f32 %v962, %v988
    %v999 = vsub.f32 %v965, %v991
    %v1000 = vmul.f32 %v992, 1.442695
    %v1001 = vpow.pop %v1000
    %v1002 = vmul.f32 %v993, 1.442695
    %v1003 = vpow.pop %v1002
    %v1004 = vmul.f32 %v994, 1.442695
    %v1005 = vpow.pop %v1004
    %v1006 = vmul.f32 %v995, 1.442695
    %v1007 = vpow.pop %v1006
    %v1008 = vmul.f32 %v996, 1.442695
    %v1009 = vpow.pop %v1008
    %v1010 = vmul.f32 %v997, 1.442695
    %v1011 = vpow.pop %v1010
    %v1012 = vmul.f32 %v998, 1.442695
    %v1013 = vpow.pop %v1012
    %v1014 = vmul.f32 %v999, 1.442695
    %v1015 = vpow.pop %v1014
    %v1016 = vsel %vm288, %v1001, 0.0
    %1017 = vadd.xlane.f32.xlu0 %v1016
    %v1018 = vpop.xlane.xlu0 %1017
    %v1019 = vsel %vm288, %v1003, 0.0
    %1020 = vadd.xlane.f32.xlu0 %v1019
    %v1021 = vpop.xlane.xlu0 %1020
    %v1022 = vsel %vm288, %v1005, 0.0
    %1023 = vadd.xlane.f32.xlu0 %v1022
    %v1024 = vpop.xlane.xlu0 %1023
    %v1025 = vsel %vm288, %v1007, 0.0
    %1026 = vadd.xlane.f32.xlu0 %v1025
    %v1027 = vpop.xlane.xlu0 %1026
    %v1028 = vsel %vm288, %v1009, 0.0
    %1029 = vadd.xlane.f32.xlu0 %v1028
    %v1030 = vpop.xlane.xlu0 %1029
    %v1031 = vsel %vm288, %v1011, 0.0
    %1032 = vadd.xlane.f32.xlu0 %v1031
    %v1033 = vpop.xlane.xlu0 %1032
    %v1034 = vsel %vm288, %v1013, 0.0
    %1035 = vadd.xlane.f32.xlu0 %v1034
    %v1036 = vpop.xlane.xlu0 %1035
    %v1037 = vsel %vm288, %v1015, 0.0
    %1038 = vadd.xlane.f32.xlu0 %v1037
    %v1039 = vpop.xlane.xlu0 %1038
    %v1040 = vrcp.pop %v1018
    %v1041 = vrcp.pop %v1021
    %v1042 = vrcp.pop %v1024
    %v1043 = vrcp.pop %v1027
    %v1044 = vrcp.pop %v1030
    %v1045 = vrcp.pop %v1033
    %v1046 = vrcp.pop %v1036
    %v1047 = vrcp.pop %v1039
    %v1048 = vmul.f32 %v1001, %v1040
    %v1049 = vmul.f32 %v1003, %v1041
    %v1050 = vmul.f32 %v1005, %v1042
    %v1051 = vmul.f32 %v1007, %v1043
    %v1052 = vmul.f32 %v1009, %v1044
    %v1053 = vmul.f32 %v1011, %v1045
    %v1054 = vmul.f32 %v1013, %v1046
    %v1055 = vmul.f32 %v1015, %v1047
    %s1056 = scalar_lea.vmem %s6, 32
    %v1057 = vld [vmem:[%s1056] sm:$0xf]
    %v1058 = vld [vmem:[%s1056 + $0x4] sm:$0xf]
    %v1059 = vld [vmem:[%s1056 + $0x8] sm:$0xf]
    %v1060 = vld [vmem:[%s1056 + $0xc] sm:$0xf]
    %v1061 = vld [vmem:[%s1056 + $0x10] sm:$0xf]
    %v1062 = vld [vmem:[%s1056 + $0x14] sm:$0xf]
    %v1063 = vld [vmem:[%s1056 + $0x18] sm:$0xf]
    %v1064 = vld [vmem:[%s1056 + $0x1c] sm:$0xf]
    %v1073 = vunpack.c.l.b16 %v1057
    %v1074 = vunpack.c.l.b16 %v1058
    %v1075 = vunpack.c.l.b16 %v1059
    %v1076 = vunpack.c.l.b16 %v1060
    %v1077 = vunpack.c.l.b16 %v1061
    %v1078 = vunpack.c.l.b16 %v1062
    %v1079 = vunpack.c.l.b16 %v1063
    %v1080 = vunpack.c.l.b16 %v1064
    %v1081 = vpack.c.b16 %v1074, %v1073
    %v1082 = vpack.c.b16 %v1076, %v1075
    %v1083 = vpack.c.b16 %v1078, %v1077
    %v1084 = vpack.c.b16 %v1080, %v1079
    %1089 = vmatprep.subr.bf16.mxu0 0
    %1090 = vmatpush1.bf16.msra.mxu0 %v1081
    %1091 = vmatprep.subr.bf16.mxu0 0
    %1092 = vmatpush1.bf16.msra.mxu0 %v1082
    %1093 = vmatprep.subr.bf16.mxu0 0
    %1094 = vmatpush1.bf16.msra.mxu0 %v1083
    %1095 = vmatprep.subr.bf16.mxu0 0
    %1096 = vmatpush1.bf16.msra.mxu0 %v1084
    %1097 = vmatprep.subr.bf16.mxu0 0
    %1098 = vmatpush1.bf16.msra.mxu0 0
    %1099 = vmatprep.subr.bf16.mxu0 0
    %1100 = vmatpush1.bf16.msra.mxu0 0
    %1101 = vmatprep.subr.bf16.mxu0 0
    %1102 = vmatpush1.bf16.msra.mxu0 0
    %1103 = vmatprep.subr.bf16.mxu0 0
    %1104 = vmatpush1.bf16.msra.mxu0 0
    %1105 = vmatprep.subr.bf16.mxu0 0
    %1106 = vmatpush1.bf16.msra.mxu0 0
    %1107 = vmatprep.subr.bf16.mxu0 0
    %1108 = vmatpush1.bf16.msra.mxu0 0
    %1109 = vmatprep.subr.bf16.mxu0 0
    %1110 = vmatpush1.bf16.msra.mxu0 0
    %1111 = vmatprep.subr.bf16.mxu0 0
    %1112 = vmatpush1.bf16.msra.mxu0 0
    %1113 = vmatprep.subr.bf16.mxu0 0
    %1114 = vmatpush1.bf16.msra.mxu0 0
    %1115 = vmatprep.subr.bf16.mxu0 0
    %1116 = vmatpush1.bf16.msra.mxu0 0
    %1117 = vmatprep.subr.bf16.mxu0 0
    %1118 = vmatpush1.bf16.msra.mxu0 0
    %1119 = vmatprep.subr.bf16.mxu0 0
    %1120 = vmatpush1.bf16.msra.mxu0 0
    %1121 = vmatprep.mubr.bf16.mxu0 0
    %1122 = vmatmul.mubr.bf16.gmra.mrb[0].mxu0 %v290
    %v1123 = vpop.f32.mrb[0].mxu0
    %v1124 = vadd.f32 0.0, %v1123
    %v1125 = vpop.f32.mrb[0].mxu0
    %v1126 = vpop.f32.mrb[0].mxu0
    %v1127 = vadd.f32 0.0, %v1126
    %v1128 = vpop.f32.mrb[0].mxu0
    %1129 = vmatprep.mubr.bf16.mxu0 0
    %1130 = vmatmul.mubr.bf16.gmra.mrb[0].mxu0 %v293
    %v1131 = vpop.f32.mrb[0].mxu0
    %v1132 = vadd.f32 0.0, %v1131
    %v1133 = vpop.f32.mrb[0].mxu0
    %v1134 = vpop.f32.mrb[0].mxu0
    %v1135 = vadd.f32 0.0, %v1134
    %v1136 = vpop.f32.mrb[0].mxu0
    %1137 = vmatprep.mubr.bf16.mxu0 0
    %1138 = vmatmul.mubr.bf16.gmra.mrb[0].mxu0 %v296
    %v1139 = vpop.f32.mrb[0].mxu0
    %v1140 = vadd.f32 0.0, %v1139
    %v1141 = vpop.f32.mrb[0].mxu0
    %v1142 = vpop.f32.mrb[0].mxu0
    %v1143 = vadd.f32 0.0, %v1142
    %v1144 = vpop.f32.mrb[0].mxu0
    %1145 = vmatprep.mubr.bf16.mxu0 0
    %1146 = vmatmul.mubr.bf16.gmra.mrb[0].mxu0 %v299
    %v1147 = vpop.f32.mrb[0].mxu0
    %v1148 = vadd.f32 0.0, %v1147
    %v1149 = vpop.f32.mrb[0].mxu0
    %v1150 = vpop.f32.mrb[0].mxu0
    %v1151 = vadd.f32 0.0, %v1150
    %v1152 = vpop.f32.mrb[0].mxu0
    %1153 = vdwg.mxu0
    %v1154 = vpack.c.bf16 %v1049, %v1048
    %v1155 = vpack.c.bf16 %v1051, %v1050
    %v1156 = vpack.c.bf16 %v1053, %v1052
    %v1157 = vpack.c.bf16 %v1055, %v1054
    %v1158 = vpack.c.bf16 %v1127, %v1124
    %v1159 = vpack.c.bf16 %v1135, %v1132
    %v1160 = vpack.c.bf16 %v1143, %v1140
    %v1161 = vpack.c.bf16 %v1151, %v1148
    %v1163 = vsel %vm288, %v1154, 0
    %v1166 = vsel %vm288, %v1155, 0
    %v1169 = vsel %vm288, %v1156, 0
    %v1172 = vsel %vm288, %v1157, 0
    %1174 = vmatprep.subr.bf16.mxu0 0
    %1175 = vmatpush1.bf16.msra.mxu0 %v1158
    %1176 = vmatprep.subr.bf16.mxu0 0
    %1177 = vmatpush1.bf16.msra.mxu0 %v1159
    %1178 = vmatprep.subr.bf16.mxu0 0
    %1179 = vmatpush1.bf16.msra.mxu0 %v1160
    %1180 = vmatprep.subr.bf16.mxu0 0
    %1181 = vmatpush1.bf16.msra.mxu0 %v1161
    %1182 = vmatprep.subr.bf16.mxu0 0
    %1183 = vmatpush1.bf16.msra.mxu0 0
    %1184 = vmatprep.subr.bf16.mxu0 0
    %1185 = vmatpush1.bf16.msra.mxu0 0
    %1186 = vmatprep.subr.bf16.mxu0 0
    %1187 = vmatpush1.bf16.msra.mxu0 0
    %1188 = vmatprep.subr.bf16.mxu0 0
    %1189 = vmatpush1.bf16.msra.mxu0 0
    %1190 = vmatprep.subr.bf16.mxu0 0
    %1191 = vmatpush1.bf16.msra.mxu0 0
    %1192 = vmatprep.subr.bf16.mxu0 0
    %1193 = vmatpush1.bf16.msra.mxu0 0
    %1194 = vmatprep.subr.bf16.mxu0 0
    %1195 = vmatpush1.bf16.msra.mxu0 0
    %1196 = vmatprep.subr.bf16.mxu0 0
    %1197 = vmatpush1.bf16.msra.mxu0 0
    %1198 = vmatprep.subr.bf16.mxu0 0
    %1199 = vmatpush1.bf16.msra.mxu0 0
    %1200 = vmatprep.subr.bf16.mxu0 0
    %1201 = vmatpush1.bf16.msra.mxu0 0
    %1202 = vmatprep.subr.bf16.mxu0 0
    %1203 = vmatpush1.bf16.msra.mxu0 0
    %1204 = vmatprep.subr.bf16.mxu0 0
    %1205 = vmatpush1.bf16.msra.mxu0 0
    %1206 = vmatprep.mubr.bf16.mxu0 0
    %1207 = vmatmul.mubr.bf16.gmra.mrb[0].mxu0 %v1163
    %v1208 = vpop.f32.mrb[0].mxu0
    %v1209 = vadd.f32 0.0, %v1208
    %v1210 = vpop.f32.mrb[0].mxu0
    %v1211 = vpop.f32.mrb[0].mxu0
    %v1212 = vadd.f32 0.0, %v1211
    %v1213 = vpop.f32.mrb[0].mxu0
    %1214 = vmatprep.mubr.bf16.mxu0 0
    %1215 = vmatmul.mubr.bf16.gmra.mrb[0].mxu0 %v1166
    %v1216 = vpop.f32.mrb[0].mxu0
    %v1217 = vadd.f32 0.0, %v1216
    %v1218 = vpop.f32.mrb[0].mxu0
    %v1219 = vpop.f32.mrb[0].mxu0
    %v1220 = vadd.f32 0.0, %v1219
    %v1221 = vpop.f32.mrb[0].mxu0
    %1222 = vmatprep.mubr.bf16.mxu0 0
    %1223 = vmatmul.mubr.bf16.gmra.mrb[0].mxu0 %v1169
    %v1224 = vpop.f32.mrb[0].mxu0
    %v1225 = vadd.f32 0.0, %v1224
    %v1226 = vpop.f32.mrb[0].mxu0
    %v1227 = vpop.f32.mrb[0].mxu0
    %v1228 = vadd.f32 0.0, %v1227
    %v1229 = vpop.f32.mrb[0].mxu0
    %1230 = vmatprep.mubr.bf16.mxu0 0
    %1231 = vmatmul.mubr.bf16.gmra.mrb[0].mxu0 %v1172
    %v1232 = vpop.f32.mrb[0].mxu0
    %v1233 = vadd.f32 0.0, %v1232
    %v1234 = vpop.f32.mrb[0].mxu0
    %v1235 = vpop.f32.mrb[0].mxu0
    %v1236 = vadd.f32 0.0, %v1235
    %v1237 = vpop.f32.mrb[0].mxu0
    %1238 = vdwg.mxu0
    %v1240 = vsel %vm288, %v773, 0
    %v1243 = vsel %vm288, %v774, 0
    %v1246 = vsel %vm288, %v775, 0
    %v1249 = vsel %vm288, %v776, 0
    %1251 = vmatprep.subr.bf16.mxu0 0
    %1252 = vmatpush1.bf16.msra.mxu0 %v777
    %1253 = vmatprep.subr.bf16.mxu0 0
    %1254 = vmatpush1.bf16.msra.mxu0 %v778
    %1255 = vmatprep.subr.bf16.mxu0 0
    %1256 = vmatpush1.bf16.msra.mxu0 %v779
    %1257 = vmatprep.subr.bf16.mxu0 0
    %1258 = vmatpush1.bf16.msra.mxu0 %v780
    %1259 = vmatprep.subr.bf16.mxu0 0
    %1260 = vmatpush1.bf16.msra.mxu0 0
    %1261 = vmatprep.subr.bf16.mxu0 0
    %1262 = vmatpush1.bf16.msra.mxu0 0
    %1263 = vmatprep.subr.bf16.mxu0 0
    %1264 = vmatpush1.bf16.msra.mxu0 0
    %1265 = vmatprep.subr.bf16.mxu0 0
    %1266 = vmatpush1.bf16.msra.mxu0 0
    %1267 = vmatprep.subr.bf16.mxu0 0
    %1268 = vmatpush1.bf16.msra.mxu0 0
    %1269 = vmatprep.subr.bf16.mxu0 0
    %1270 = vmatpush1.bf16.msra.mxu0 0
    %1271 = vmatprep.subr.bf16.mxu0 0
    %1272 = vmatpush1.bf16.msra.mxu0 0
    %1273 = vmatprep.subr.bf16.mxu0 0
    %1274 = vmatpush1.bf16.msra.mxu0 0
    %1275 = vmatprep.subr.bf16.mxu0 0
    %1276 = vmatpush1.bf16.msra.mxu0 0
    %1277 = vmatprep.subr.bf16.mxu0 0
    %1278 = vmatpush1.bf16.msra.mxu0 0
    %1279 = vmatprep.subr.bf16.mxu0 0
    %1280 = vmatpush1.bf16.msra.mxu0 0
    %1281 = vmatprep.subr.bf16.mxu0 0
    %1282 = vmatpush1.bf16.msra.mxu0 0
    %1283 = vmatprep.mubr.bf16.mxu0 0
    %1284 = vmatmul.mubr.bf16.gmra.mrb[0].mxu0 %v1240
    %v1285 = vpop.f32.mrb[0].mxu0
    %v1286 = vadd.f32 %v1209, %v1285
    %v1287 = vpop.f32.mrb[0].mxu0
    %v1288 = vpop.f32.mrb[0].mxu0
    %v1289 = vadd.f32 %v1212, %v1288
    %v1290 = vpop.f32.mrb[0].mxu0
    %1291 = vmatprep.mubr.bf16.mxu0 0
    %1292 = vmatmul.mubr.bf16.gmra.mrb[0].mxu0 %v1243
    %v1293 = vpop.f32.mrb[0].mxu0
    %v1294 = vadd.f32 %v1217, %v1293
    %v1295 = vpop.f32.mrb[0].mxu0
    %v1296 = vpop.f32.mrb[0].mxu0
    %v1297 = vadd.f32 %v1220, %v1296
    %v1298 = vpop.f32.mrb[0].mxu0
    %1299 = vmatprep.mubr.bf16.mxu0 0
    %1300 = vmatmul.mubr.bf16.gmra.mrb[0].mxu0 %v1246
    %v1301 = vpop.f32.mrb[0].mxu0
    %v1302 = vadd.f32 %v1225, %v1301
    %v1303 = vpop.f32.mrb[0].mxu0
    %v1304 = vpop.f32.mrb[0].mxu0
    %v1305 = vadd.f32 %v1228, %v1304
    %v1306 = vpop.f32.mrb[0].mxu0
    %1307 = vmatprep.mubr.bf16.mxu0 0
    %1308 = vmatmul.mubr.bf16.gmra.mrb[0].mxu0 %v1249
    %v1309 = vpop.f32.mrb[0].mxu0
    %v1310 = vadd.f32 %v1233, %v1309
    %v1311 = vpop.f32.mrb[0].mxu0
    %v1312 = vpop.f32.mrb[0].mxu0
    %v1313 = vadd.f32 %v1236, %v1312
    %v1314 = vpop.f32.mrb[0].mxu0
    %1315 = vdwg.mxu0
    %s1316 = scalar_lea.vmem %s3, 64
    %v1317 = vld [vmem:[%s1316] sm:$0xf]
    %v1318 = vld [vmem:[%s1316 + $0x4] sm:$0xf]
    %v1319 = vld [vmem:[%s1316 + $0x8] sm:$0xf]
    %v1320 = vld [vmem:[%s1316 + $0xc] sm:$0xf]
    %v1321 = vld [vmem:[%s1316 + $0x10] sm:$0xf]
    %v1322 = vld [vmem:[%s1316 + $0x14] sm:$0xf]
    %v1323 = vld [vmem:[%s1316 + $0x18] sm:$0xf]
    %v1324 = vld [vmem:[%s1316 + $0x1c] sm:$0xf]
    %s1325 = scalar_lea.vmem [#allocation5], 2
    %v1326 = vld [vmem:[%s1325] sm:$0x1]
    %v1328 = vlaneseq
    %v1329 = vshrl.u32 %v1328, 7
    %v1330 = vsub.s32 0, %v1329
    %v1331 = vrot.slane %v1326, %v1330
    %v1341 = vunpack.c.l.b16 %v1317
    %v1342 = vunpack.c.l.b16 %v1318
    %v1343 = vunpack.c.l.b16 %v1319
    %v1344 = vunpack.c.l.b16 %v1320
    %v1345 = vunpack.c.l.b16 %v1321
    %v1346 = vunpack.c.l.b16 %v1322
    %v1347 = vunpack.c.l.b16 %v1323
    %v1348 = vunpack.c.l.b16 %v1324
    %v1349 = vpack.c.b16 %v1342, %v1341
    %v1350 = vpack.c.b16 %v1344, %v1343
    %v1351 = vpack.c.b16 %v1346, %v1345
    %v1352 = vpack.c.b16 %v1348, %v1347
    %1357 = vmatprep.subr.bf16.mxu0 0
    %1358 = vmatpush1.bf16.msra.mxu0 %v1349
    %1359 = vmatprep.subr.bf16.mxu0 0
    %1360 = vmatpush1.bf16.msra.mxu0 %v1350
    %1361 = vmatprep.subr.bf16.mxu0 0
    %1362 = vmatpush1.bf16.msra.mxu0 %v1351
    %1363 = vmatprep.subr.bf16.mxu0 0
    %1364 = vmatpush1.bf16.msra.mxu0 %v1352
    %1365 = vmatprep.subr.bf16.mxu0 0
    %1366 = vmatpush1.bf16.msra.mxu0 0
    %1367 = vmatprep.subr.bf16.mxu0 0
    %1368 = vmatpush1.bf16.msra.mxu0 0
    %1369 = vmatprep.subr.bf16.mxu0 0
    %1370 = vmatpush1.bf16.msra.mxu0 0
    %1371 = vmatprep.subr.bf16.mxu0 0
    %1372 = vmatpush1.bf16.msra.mxu0 0
    %1373 = vmatprep.subr.bf16.mxu0 0
    %1374 = vmatpush1.bf16.msra.mxu0 0
    %1375 = vmatprep.subr.bf16.mxu0 0
    %1376 = vmatpush1.bf16.msra.mxu0 0
    %1377 = vmatprep.subr.bf16.mxu0 0
    %1378 = vmatpush1.bf16.msra.mxu0 0
    %1379 = vmatprep.subr.bf16.mxu0 0
    %1380 = vmatpush1.bf16.msra.mxu0 0
    %1381 = vmatprep.subr.bf16.mxu0 0
    %1382 = vmatpush1.bf16.msra.mxu0 0
    %1383 = vmatprep.subr.bf16.mxu0 0
    %1384 = vmatpush1.bf16.msra.mxu0 0
    %1385 = vmatprep.subr.bf16.mxu0 0
    %1386 = vmatpush1.bf16.msra.mxu0 0
    %1387 = vmatprep.subr.bf16.mxu0 0
    %1388 = vmatpush1.bf16.msra.mxu0 0
    %1389 = vmatprep.mubr.bf16.mxu0 0
    %1390 = vmatmul.mubr.bf16.gmra.mrb[0].mxu0 %v290
    %v1391 = vpop.f32.mrb[0].mxu0
    %v1392 = vadd.f32 %v1331, %v1391
    %v1393 = vpop.f32.mrb[0].mxu0
    %v1394 = vpop.f32.mrb[0].mxu0
    %v1395 = vadd.f32 %v1331, %v1394
    %v1396 = vpop.f32.mrb[0].mxu0
    %1397 = vmatprep.mubr.bf16.mxu0 0
    %1398 = vmatmul.mubr.bf16.gmra.mrb[0].mxu0 %v293
    %v1399 = vpop.f32.mrb[0].mxu0
    %v1400 = vadd.f32 %v1331, %v1399
    %v1401 = vpop.f32.mrb[0].mxu0
    %v1402 = vpop.f32.mrb[0].mxu0
    %v1403 = vadd.f32 %v1331, %v1402
    %v1404 = vpop.f32.mrb[0].mxu0
    %1405 = vmatprep.mubr.bf16.mxu0 0
    %1406 = vmatmul.mubr.bf16.gmra.mrb[0].mxu0 %v296
    %v1407 = vpop.f32.mrb[0].mxu0
    %v1408 = vadd.f32 %v1331, %v1407
    %v1409 = vpop.f32.mrb[0].mxu0
    %v1410 = vpop.f32.mrb[0].mxu0
    %v1411 = vadd.f32 %v1331, %v1410
    %v1412 = vpop.f32.mrb[0].mxu0
    %1413 = vmatprep.mubr.bf16.mxu0 0
    %1414 = vmatmul.mubr.bf16.gmra.mrb[0].mxu0 %v299
    %v1415 = vpop.f32.mrb[0].mxu0
    %v1416 = vadd.f32 %v1331, %v1415
    %v1417 = vpop.f32.mrb[0].mxu0
    %v1418 = vpop.f32.mrb[0].mxu0
    %v1419 = vadd.f32 %v1331, %v1418
    %v1420 = vpop.f32.mrb[0].mxu0
    %1421 = vdwg.mxu0
    %v1422 = vpack.c.bf16 %v1395, %v1392
    %v1423 = vpack.c.bf16 %v1403, %v1400
    %v1424 = vpack.c.bf16 %v1411, %v1408
    %v1425 = vpack.c.bf16 %v1419, %v1416
    %v1427 = vsel %vm510, %v1422, 0
    %v1430 = vsel %vm510, %v1423, 0
    %v1433 = vsel %vm510, %v1424, 0
    %v1436 = vsel %vm510, %v1425, 0
    %1438 = vmatprep.subr.bf16.mxu0 0
    %1439 = vmatpush1.bf16.msra.mxu0 %v400
    %1440 = vmatprep.subr.bf16.mxu0 0
    %1441 = vmatpush1.bf16.msra.mxu0 0
    %1442 = vmatprep.subr.bf16.mxu0 0
    %1443 = vmatpush1.bf16.msra.mxu0 0
    %1444 = vmatprep.subr.bf16.mxu0 0
    %1445 = vmatpush1.bf16.msra.mxu0 0
    %1446 = vmatprep.subr.bf16.mxu0 0
    %1447 = vmatpush1.bf16.msra.mxu0 0
    %1448 = vmatprep.subr.bf16.mxu0 0
    %1449 = vmatpush1.bf16.msra.mxu0 0
    %1450 = vmatprep.subr.bf16.mxu0 0
    %1451 = vmatpush1.bf16.msra.mxu0 0
    %1452 = vmatprep.subr.bf16.mxu0 0
    %1453 = vmatpush1.bf16.msra.mxu0 0
    %1454 = vmatprep.subr.bf16.mxu0 0
    %1455 = vmatpush1.bf16.msra.mxu0 0
    %1456 = vmatprep.subr.bf16.mxu0 0
    %1457 = vmatpush1.bf16.msra.mxu0 0
    %1458 = vmatprep.subr.bf16.mxu0 0
    %1459 = vmatpush1.bf16.msra.mxu0 0
    %1460 = vmatprep.subr.bf16.mxu0 0
    %1461 = vmatpush1.bf16.msra.mxu0 0
    %1462 = vmatprep.subr.bf16.mxu0 0
    %1463 = vmatpush1.bf16.msra.mxu0 0
    %1464 = vmatprep.subr.bf16.mxu0 0
    %1465 = vmatpush1.bf16.msra.mxu0 0
    %1466 = vmatprep.subr.bf16.mxu0 0
    %1467 = vmatpush1.bf16.msra.mxu0 0
    %1468 = vmatprep.subr.bf16.mxu0 0
    %1469 = vmatpush1.bf16.msra.mxu0 0
    %1470 = vmatprep.mubr.bf16.mxu0 0
    %1471 = vmatmul.mubr.bf16.gmra.mrb[0].mxu0 %v1427
    %v1472 = vpop.f32.mrb[0].mxu0
    %v1473 = vadd.f32 %v237, %v1472
    %v1474 = vpop.f32.mrb[0].mxu0
    %v1475 = vpop.f32.mrb[0].mxu0
    %v1476 = vadd.f32 %v238, %v1475
    %v1477 = vpop.f32.mrb[0].mxu0
    %1478 = vmatprep.mubr.bf16.mxu0 0
    %1479 = vmatmul.mubr.bf16.gmra.mrb[0].mxu0 %v1430
    %v1480 = vpop.f32.mrb[0].mxu0
    %v1481 = vadd.f32 %v239, %v1480
    %v1482 = vpop.f32.mrb[0].mxu0
    %v1483 = vpop.f32.mrb[0].mxu0
    %v1484 = vadd.f32 %v240, %v1483
    %v1485 = vpop.f32.mrb[0].mxu0
    %1486 = vmatprep.mubr.bf16.mxu0 0
    %1487 = vmatmul.mubr.bf16.gmra.mrb[0].mxu0 %v1433
    %v1488 = vpop.f32.mrb[0].mxu0
    %v1489 = vadd.f32 %v241, %v1488
    %v1490 = vpop.f32.mrb[0].mxu0
    %v1491 = vpop.f32.mrb[0].mxu0
    %v1492 = vadd.f32 %v242, %v1491
    %v1493 = vpop.f32.mrb[0].mxu0
    %1494 = vmatprep.mubr.bf16.mxu0 0
    %1495 = vmatmul.mubr.bf16.gmra.mrb[0].mxu0 %v1436
    %v1496 = vpop.f32.mrb[0].mxu0
    %v1497 = vadd.f32 %v243, %v1496
    %v1498 = vpop.f32.mrb[0].mxu0
    %v1499 = vpop.f32.mrb[0].mxu0
    %v1500 = vadd.f32 %v244, %v1499
    %v1501 = vpop.f32.mrb[0].mxu0
    %1502 = vdwg.mxu0
    %v1503 = vsel %vm288, %v1473, -inf
    %1504 = vmax.xlane.f32.xlu0 %v1503
    %v1505 = vpop.xlane.xlu0 %1504
    %v1506 = vsel %vm288, %v1476, -inf
    %1507 = vmax.xlane.f32.xlu0 %v1506
    %v1508 = vpop.xlane.xlu0 %1507
    %v1509 = vsel %vm288, %v1481, -inf
    %1510 = vmax.xlane.f32.xlu0 %v1509
    %v1511 = vpop.xlane.xlu0 %1510
    %v1512 = vsel %vm288, %v1484, -inf
    %1513 = vmax.xlane.f32.xlu0 %v1512
    %v1514 = vpop.xlane.xlu0 %1513
    %v1515 = vsel %vm288, %v1489, -inf
    %1516 = vmax.xlane.f32.xlu0 %v1515
    %v1517 = vpop.xlane.xlu0 %1516
    %v1518 = vsel %vm288, %v1492, -inf
    %1519 = vmax.xlane.f32.xlu0 %v1518
    %v1520 = vpop.xlane.xlu0 %1519
    %v1521 = vsel %vm288, %v1497, -inf
    %1522 = vmax.xlane.f32.xlu0 %v1521
    %v1523 = vpop.xlane.xlu0 %1522
    %v1524 = vsel %vm288, %v1500, -inf
    %1525 = vmax.xlane.f32.xlu0 %v1524
    %v1526 = vpop.xlane.xlu0 %1525
    %v1527 = vsub.f32 %v1473, %v1505
    %v1528 = vsub.f32 %v1476, %v1508
    %v1529 = vsub.f32 %v1481, %v1511
    %v1530 = vsub.f32 %v1484, %v1514
    %v1531 = vsub.f32 %v1489, %v1517
    %v1532 = vsub.f32 %v1492, %v1520
    %v1533 = vsub.f32 %v1497, %v1523
    %v1534 = vsub.f32 %v1500, %v1526
    %v1535 = vmul.f32 %v1527, 1.442695
    %v1536 = vpow.pop %v1535
    %v1537 = vmul.f32 %v1528, 1.442695
    %v1538 = vpow.pop %v1537
    %v1539 = vmul.f32 %v1529, 1.442695
    %v1540 = vpow.pop %v1539
    %v1541 = vmul.f32 %v1530, 1.442695
    %v1542 = vpow.pop %v1541
    %v1543 = vmul.f32 %v1531, 1.442695
    %v1544 = vpow.pop %v1543
    %v1545 = vmul.f32 %v1532, 1.442695
    %v1546 = vpow.pop %v1545
    %v1547 = vmul.f32 %v1533, 1.442695
    %v1548 = vpow.pop %v1547
    %v1549 = vmul.f32 %v1534, 1.442695
    %v1550 = vpow.pop %v1549
    %v1551 = vsel %vm288, %v1536, 0.0
    %1552 = vadd.xlane.f32.xlu0 %v1551
    %v1553 = vpop.xlane.xlu0 %1552
    %v1554 = vsel %vm288, %v1538, 0.0
    %1555 = vadd.xlane.f32.xlu0 %v1554
    %v1556 = vpop.xlane.xlu0 %1555
    %v1557 = vsel %vm288, %v1540, 0.0
    %1558 = vadd.xlane.f32.xlu0 %v1557
    %v1559 = vpop.xlane.xlu0 %1558
    %v1560 = vsel %vm288, %v1542, 0.0
    %1561 = vadd.xlane.f32.xlu0 %v1560
    %v1562 = vpop.xlane.xlu0 %1561
    %v1563 = vsel %vm288, %v1544, 0.0
    %1564 = vadd.xlane.f32.xlu0 %v1563
    %v1565 = vpop.xlane.xlu0 %1564
    %v1566 = vsel %vm288, %v1546, 0.0
    %1567 = vadd.xlane.f32.xlu0 %v1566
    %v1568 = vpop.xlane.xlu0 %1567
    %v1569 = vsel %vm288, %v1548, 0.0
    %1570 = vadd.xlane.f32.xlu0 %v1569
    %v1571 = vpop.xlane.xlu0 %1570
    %v1572 = vsel %vm288, %v1550, 0.0
    %1573 = vadd.xlane.f32.xlu0 %v1572
    %v1574 = vpop.xlane.xlu0 %1573
    %v1575 = vrcp.pop %v1553
    %v1576 = vrcp.pop %v1556
    %v1577 = vrcp.pop %v1559
    %v1578 = vrcp.pop %v1562
    %v1579 = vrcp.pop %v1565
    %v1580 = vrcp.pop %v1568
    %v1581 = vrcp.pop %v1571
    %v1582 = vrcp.pop %v1574
    %v1583 = vmul.f32 %v1536, %v1575
    %v1584 = vmul.f32 %v1538, %v1576
    %v1585 = vmul.f32 %v1540, %v1577
    %v1586 = vmul.f32 %v1542, %v1578
    %v1587 = vmul.f32 %v1544, %v1579
    %v1588 = vmul.f32 %v1546, %v1580
    %v1589 = vmul.f32 %v1548, %v1581
    %v1590 = vmul.f32 %v1550, %v1582
    %s1591 = scalar_lea.vmem %s6, 64
    %v1592 = vld [vmem:[%s1591] sm:$0xf]
    %v1593 = vld [vmem:[%s1591 + $0x4] sm:$0xf]
    %v1594 = vld [vmem:[%s1591 + $0x8] sm:$0xf]
    %v1595 = vld [vmem:[%s1591 + $0xc] sm:$0xf]
    %v1596 = vld [vmem:[%s1591 + $0x10] sm:$0xf]
    %v1597 = vld [vmem:[%s1591 + $0x14] sm:$0xf]
    %v1598 = vld [vmem:[%s1591 + $0x18] sm:$0xf]
    %v1599 = vld [vmem:[%s1591 + $0x1c] sm:$0xf]
    %v1608 = vunpack.c.l.b16 %v1592
    %v1609 = vunpack.c.l.b16 %v1593
    %v1610 = vunpack.c.l.b16 %v1594
    %v1611 = vunpack.c.l.b16 %v1595
    %v1612 = vunpack.c.l.b16 %v1596
    %v1613 = vunpack.c.l.b16 %v1597
    %v1614 = vunpack.c.l.b16 %v1598
    %v1615 = vunpack.c.l.b16 %v1599
    %v1616 = vpack.c.b16 %v1609, %v1608
    %v1617 = vpack.c.b16 %v1611, %v1610
    %v1618 = vpack.c.b16 %v1613, %v1612
    %v1619 = vpack.c.b16 %v1615, %v1614
    %1624 = vmatprep.subr.bf16.mxu0 0
    %1625 = vmatpush1.bf16.msra.mxu0 %v1616
    %1626 = vmatprep.subr.bf16.mxu0 0
    %1627 = vmatpush1.bf16.msra.mxu0 %v1617
    %1628 = vmatprep.subr.bf16.mxu0 0
    %1629 = vmatpush1.bf16.msra.mxu0 %v1618
    %1630 = vmatprep.subr.bf16.mxu0 0
    %1631 = vmatpush1.bf16.msra.mxu0 %v1619
    %1632 = vmatprep.subr.bf16.mxu0 0
    %1633 = vmatpush1.bf16.msra.mxu0 0
    %1634 = vmatprep.subr.bf16.mxu0 0
    %1635 = vmatpush1.bf16.msra.mxu0 0
    %1636 = vmatprep.subr.bf16.mxu0 0
    %1637 = vmatpush1.bf16.msra.mxu0 0
    %1638 = vmatprep.subr.bf16.mxu0 0
    %1639 = vmatpush1.bf16.msra.mxu0 0
    %1640 = vmatprep.subr.bf16.mxu0 0
    %1641 = vmatpush1.bf16.msra.mxu0 0
    %1642 = vmatprep.subr.bf16.mxu0 0
    %1643 = vmatpush1.bf16.msra.mxu0 0
    %1644 = vmatprep.subr.bf16.mxu0 0
    %1645 = vmatpush1.bf16.msra.mxu0 0
    %1646 = vmatprep.subr.bf16.mxu0 0
    %1647 = vmatpush1.bf16.msra.mxu0 0
    %1648 = vmatprep.subr.bf16.mxu0 0
    %1649 = vmatpush1.bf16.msra.mxu0 0
    %1650 = vmatprep.subr.bf16.mxu0 0
    %1651 = vmatpush1.bf16.msra.mxu0 0
    %1652 = vmatprep.subr.bf16.mxu0 0
    %1653 = vmatpush1.bf16.msra.mxu0 0
    %1654 = vmatprep.subr.bf16.mxu0 0
    %1655 = vmatpush1.bf16.msra.mxu0 0
    %1656 = vmatprep.mubr.bf16.mxu0 0
    %1657 = vmatmul.mubr.bf16.gmra.mrb[0].mxu0 %v290
    %v1658 = vpop.f32.mrb[0].mxu0
    %v1659 = vadd.f32 0.0, %v1658
    %v1660 = vpop.f32.mrb[0].mxu0
    %v1661 = vpop.f32.mrb[0].mxu0
    %v1662 = vadd.f32 0.0, %v1661
    %v1663 = vpop.f32.mrb[0].mxu0
    %1664 = vmatprep.mubr.bf16.mxu0 0
    %1665 = vmatmul.mubr.bf16.gmra.mrb[0].mxu0 %v293
    %v1666 = vpop.f32.mrb[0].mxu0
    %v1667 = vadd.f32 0.0, %v1666
    %v1668 = vpop.f32.mrb[0].mxu0
    %v1669 = vpop.f32.mrb[0].mxu0
    %v1670 = vadd.f32 0.0, %v1669
    %v1671 = vpop.f32.mrb[0].mxu0
    %1672 = vmatprep.mubr.bf16.mxu0 0
    %1673 = vmatmul.mubr.bf16.gmra.mrb[0].mxu0 %v296
    %v1674 = vpop.f32.mrb[0].mxu0
    %v1675 = vadd.f32 0.0, %v1674
    %v1676 = vpop.f32.mrb[0].mxu0
    %v1677 = vpop.f32.mrb[0].mxu0
    %v1678 = vadd.f32 0.0, %v1677
    %v1679 = vpop.f32.mrb[0].mxu0
    %1680 = vmatprep.mubr.bf16.mxu0 0
    %1681 = vmatmul.mubr.bf16.gmra.mrb[0].mxu0 %v299
    %v1682 = vpop.f32.mrb[0].mxu0
    %v1683 = vadd.f32 0.0, %v1682
    %v1684 = vpop.f32.mrb[0].mxu0
    %v1685 = vpop.f32.mrb[0].mxu0
    %v1686 = vadd.f32 0.0, %v1685
    %v1687 = vpop.f32.mrb[0].mxu0
    %1688 = vdwg.mxu0
    %v1689 = vpack.c.bf16 %v1584, %v1583
    %v1690 = vpack.c.bf16 %v1586, %v1585
    %v1691 = vpack.c.bf16 %v1588, %v1587
    %v1692 = vpack.c.bf16 %v1590, %v1589
    %v1693 = vpack.c.bf16 %v1662, %v1659
    %v1694 = vpack.c.bf16 %v1670, %v1667
    %v1695 = vpack.c.bf16 %v1678, %v1675
    %v1696 = vpack.c.bf16 %v1686, %v1683
    %v1698 = vsel %vm288, %v1689, 0
    %v1701 = vsel %vm288, %v1690, 0
    %v1704 = vsel %vm288, %v1691, 0
    %v1707 = vsel %vm288, %v1692, 0
    %1709 = vmatprep.subr.bf16.mxu0 0
    %1710 = vmatpush1.bf16.msra.mxu0 %v1693
    %1711 = vmatprep.subr.bf16.mxu0 0
    %1712 = vmatpush1.bf16.msra.mxu0 %v1694
    %1713 = vmatprep.subr.bf16.mxu0 0
    %1714 = vmatpush1.bf16.msra.mxu0 %v1695
    %1715 = vmatprep.subr.bf16.mxu0 0
    %1716 = vmatpush1.bf16.msra.mxu0 %v1696
    %1717 = vmatprep.subr.bf16.mxu0 0
    %1718 = vmatpush1.bf16.msra.mxu0 0
    %1719 = vmatprep.subr.bf16.mxu0 0
    %1720 = vmatpush1.bf16.msra.mxu0 0
    %1721 = vmatprep.subr.bf16.mxu0 0
    %1722 = vmatpush1.bf16.msra.mxu0 0
    %1723 = vmatprep.subr.bf16.mxu0 0
    %1724 = vmatpush1.bf16.msra.mxu0 0
    %1725 = vmatprep.subr.bf16.mxu0 0
    %1726 = vmatpush1.bf16.msra.mxu0 0
    %1727 = vmatprep.subr.bf16.mxu0 0
    %1728 = vmatpush1.bf16.msra.mxu0 0
    %1729 = vmatprep.subr.bf16.mxu0 0
    %1730 = vmatpush1.bf16.msra.mxu0 0
    %1731 = vmatprep.subr.bf16.mxu0 0
    %1732 = vmatpush1.bf16.msra.mxu0 0
    %1733 = vmatprep.subr.bf16.mxu0 0
    %1734 = vmatpush1.bf16.msra.mxu0 0
    %1735 = vmatprep.subr.bf16.mxu0 0
    %1736 = vmatpush1.bf16.msra.mxu0 0
    %1737 = vmatprep.subr.bf16.mxu0 0
    %1738 = vmatpush1.bf16.msra.mxu0 0
    %1739 = vmatprep.subr.bf16.mxu0 0
    %1740 = vmatpush1.bf16.msra.mxu0 0
    %1741 = vmatprep.mubr.bf16.mxu0 0
    %1742 = vmatmul.mubr.bf16.gmra.mrb[0].mxu0 %v1698
    %v1743 = vpop.f32.mrb[0].mxu0
    %v1744 = vadd.f32 0.0, %v1743
    %v1745 = vpop.f32.mrb[0].mxu0
    %v1746 = vpop.f32.mrb[0].mxu0
    %v1747 = vadd.f32 0.0, %v1746
    %v1748 = vpop.f32.mrb[0].mxu0
    %1749 = vmatprep.mubr.bf16.mxu0 0
    %1750 = vmatmul.mubr.bf16.gmra.mrb[0].mxu0 %v1701
    %v1751 = vpop.f32.mrb[0].mxu0
    %v1752 = vadd.f32 0.0, %v1751
    %v1753 = vpop.f32.mrb[0].mxu0
    %v1754 = vpop.f32.mrb[0].mxu0
    %v1755 = vadd.f32 0.0, %v1754
    %v1756 = vpop.f32.mrb[0].mxu0
    %1757 = vmatprep.mubr.bf16.mxu0 0
    %1758 = vmatmul.mubr.bf16.gmra.mrb[0].mxu0 %v1704
    %v1759 = vpop.f32.mrb[0].mxu0
    %v1760 = vadd.f32 0.0, %v1759
    %v1761 = vpop.f32.mrb[0].mxu0
    %v1762 = vpop.f32.mrb[0].mxu0
    %v1763 = vadd.f32 0.0, %v1762
    %v1764 = vpop.f32.mrb[0].mxu0
    %1765 = vmatprep.mubr.bf16.mxu0 0
    %1766 = vmatmul.mubr.bf16.gmra.mrb[0].mxu0 %v1707
    %v1767 = vpop.f32.mrb[0].mxu0
    %v1768 = vadd.f32 0.0, %v1767
    %v1769 = vpop.f32.mrb[0].mxu0
    %v1770 = vpop.f32.mrb[0].mxu0
    %v1771 = vadd.f32 0.0, %v1770
    %v1772 = vpop.f32.mrb[0].mxu0
    %1773 = vdwg.mxu0
    %v1774 = vadd.f32 %v1286, %v1744
    %v1775 = vadd.f32 %v1289, %v1747
    %v1776 = vadd.f32 %v1294, %v1752
    %v1777 = vadd.f32 %v1297, %v1755
    %v1778 = vadd.f32 %v1302, %v1760
    %v1779 = vadd.f32 %v1305, %v1763
    %v1780 = vadd.f32 %v1310, %v1768
    %v1781 = vadd.f32 %v1313, %v1771
    %s1782 = scalar_lea.vmem %s3, 96
    %v1783 = vld [vmem:[%s1782] sm:$0xf]
    %v1784 = vld [vmem:[%s1782 + $0x4] sm:$0xf]
    %v1785 = vld [vmem:[%s1782 + $0x8] sm:$0xf]
    %v1786 = vld [vmem:[%s1782 + $0xc] sm:$0xf]
    %v1787 = vld [vmem:[%s1782 + $0x10] sm:$0xf]
    %v1788 = vld [vmem:[%s1782 + $0x14] sm:$0xf]
    %v1789 = vld [vmem:[%s1782 + $0x18] sm:$0xf]
    %v1790 = vld [vmem:[%s1782 + $0x1c] sm:$0xf]
    %s1791 = scalar_lea.vmem [#allocation5], 3
    %v1792 = vld [vmem:[%s1791] sm:$0x1]
    %v1794 = vlaneseq
    %v1795 = vshrl.u32 %v1794, 7
    %v1796 = vsub.s32 0, %v1795
    %v1797 = vrot.slane %v1792, %v1796
    %v1807 = vunpack.c.l.b16 %v1783
    %v1808 = vunpack.c.l.b16 %v1784
    %v1809 = vunpack.c.l.b16 %v1785
    %v1810 = vunpack.c.l.b16 %v1786
    %v1811 = vunpack.c.l.b16 %v1787
    %v1812 = vunpack.c.l.b16 %v1788
    %v1813 = vunpack.c.l.b16 %v1789
    %v1814 = vunpack.c.l.b16 %v1790
    %v1815 = vpack.c.b16 %v1808, %v1807
    %v1816 = vpack.c.b16 %v1810, %v1809
    %v1817 = vpack.c.b16 %v1812, %v1811
    %v1818 = vpack.c.b16 %v1814, %v1813
    %1823 = vmatprep.subr.bf16.mxu0 0
    %1824 = vmatpush1.bf16.msra.mxu0 %v1815
    %1825 = vmatprep.subr.bf16.mxu0 0
    %1826 = vmatpush1.bf16.msra.mxu0 %v1816
    %1827 = vmatprep.subr.bf16.mxu0 0
    %1828 = vmatpush1.bf16.msra.mxu0 %v1817
    %1829 = vmatprep.subr.bf16.mxu0 0
    %1830 = vmatpush1.bf16.msra.mxu0 %v1818
    %1831 = vmatprep.subr.bf16.mxu0 0
    %1832 = vmatpush1.bf16.msra.mxu0 0
    %1833 = vmatprep.subr.bf16.mxu0 0
    %1834 = vmatpush1.bf16.msra.mxu0 0
    %1835 = vmatprep.subr.bf16.mxu0 0
    %1836 = vmatpush1.bf16.msra.mxu0 0
    %1837 = vmatprep.subr.bf16.mxu0 0
    %1838 = vmatpush1.bf16.msra.mxu0 0
    %1839 = vmatprep.subr.bf16.mxu0 0
    %1840 = vmatpush1.bf16.msra.mxu0 0
    %1841 = vmatprep.subr.bf16.mxu0 0
    %1842 = vmatpush1.bf16.msra.mxu0 0
    %1843 = vmatprep.subr.bf16.mxu0 0
    %1844 = vmatpush1.bf16.msra.mxu0 0
    %1845 = vmatprep.subr.bf16.mxu0 0
    %1846 = vmatpush1.bf16.msra.mxu0 0
    %1847 = vmatprep.subr.bf16.mxu0 0
    %1848 = vmatpush1.bf16.msra.mxu0 0
    %1849 = vmatprep.subr.bf16.mxu0 0
    %1850 = vmatpush1.bf16.msra.mxu0 0
    %1851 = vmatprep.subr.bf16.mxu0 0
    %1852 = vmatpush1.bf16.msra.mxu0 0
    %1853 = vmatprep.subr.bf16.mxu0 0
    %1854 = vmatpush1.bf16.msra.mxu0 0
    %1855 = vmatprep.mubr.bf16.mxu0 0
    %1856 = vmatmul.mubr.bf16.gmra.mrb[0].mxu0 %v290
    %v1857 = vpop.f32.mrb[0].mxu0
    %v1858 = vadd.f32 %v1797, %v1857
    %v1859 = vpop.f32.mrb[0].mxu0
    %v1860 = vpop.f32.mrb[0].mxu0
    %v1861 = vadd.f32 %v1797, %v1860
    %v1862 = vpop.f32.mrb[0].mxu0
    %1863 = vmatprep.mubr.bf16.mxu0 0
    %1864 = vmatmul.mubr.bf16.gmra.mrb[0].mxu0 %v293
    %v1865 = vpop.f32.mrb[0].mxu0
    %v1866 = vadd.f32 %v1797, %v1865
    %v1867 = vpop.f32.mrb[0].mxu0
    %v1868 = vpop.f32.mrb[0].mxu0
    %v1869 = vadd.f32 %v1797, %v1868
    %v1870 = vpop.f32.mrb[0].mxu0
    %1871 = vmatprep.mubr.bf16.mxu0 0
    %1872 = vmatmul.mubr.bf16.gmra.mrb[0].mxu0 %v296
    %v1873 = vpop.f32.mrb[0].mxu0
    %v1874 = vadd.f32 %v1797, %v1873
    %v1875 = vpop.f32.mrb[0].mxu0
    %v1876 = vpop.f32.mrb[0].mxu0
    %v1877 = vadd.f32 %v1797, %v1876
    %v1878 = vpop.f32.mrb[0].mxu0
    %1879 = vmatprep.mubr.bf16.mxu0 0
    %1880 = vmatmul.mubr.bf16.gmra.mrb[0].mxu0 %v299
    %v1881 = vpop.f32.mrb[0].mxu0
    %v1882 = vadd.f32 %v1797, %v1881
    %v1883 = vpop.f32.mrb[0].mxu0
    %v1884 = vpop.f32.mrb[0].mxu0
    %v1885 = vadd.f32 %v1797, %v1884
    %v1886 = vpop.f32.mrb[0].mxu0
    %1887 = vdwg.mxu0
    %v1888 = vpack.c.bf16 %v1861, %v1858
    %v1889 = vpack.c.bf16 %v1869, %v1866
    %v1890 = vpack.c.bf16 %v1877, %v1874
    %v1891 = vpack.c.bf16 %v1885, %v1882
    %v1893 = vsel %vm510, %v1888, 0
    %v1896 = vsel %vm510, %v1889, 0
    %v1899 = vsel %vm510, %v1890, 0
    %v1902 = vsel %vm510, %v1891, 0
    %1904 = vmatprep.subr.bf16.mxu0 0
    %1905 = vmatpush1.bf16.msra.mxu0 %v401
    %1906 = vmatprep.subr.bf16.mxu0 0
    %1907 = vmatpush1.bf16.msra.mxu0 0
    %1908 = vmatprep.subr.bf16.mxu0 0
    %1909 = vmatpush1.bf16.msra.mxu0 0
    %1910 = vmatprep.subr.bf16.mxu0 0
    %1911 = vmatpush1.bf16.msra.mxu0 0
    %1912 = vmatprep.subr.bf16.mxu0 0
    %1913 = vmatpush1.bf16.msra.mxu0 0
    %1914 = vmatprep.subr.bf16.mxu0 0
    %1915 = vmatpush1.bf16.msra.mxu0 0
    %1916 = vmatprep.subr.bf16.mxu0 0
    %1917 = vmatpush1.bf16.msra.mxu0 0
    %1918 = vmatprep.subr.bf16.mxu0 0
    %1919 = vmatpush1.bf16.msra.mxu0 0
    %1920 = vmatprep.subr.bf16.mxu0 0
    %1921 = vmatpush1.bf16.msra.mxu0 0
    %1922 = vmatprep.subr.bf16.mxu0 0
    %1923 = vmatpush1.bf16.msra.mxu0 0
    %1924 = vmatprep.subr.bf16.mxu0 0
    %1925 = vmatpush1.bf16.msra.mxu0 0
    %1926 = vmatprep.subr.bf16.mxu0 0
    %1927 = vmatpush1.bf16.msra.mxu0 0
    %1928 = vmatprep.subr.bf16.mxu0 0
    %1929 = vmatpush1.bf16.msra.mxu0 0
    %1930 = vmatprep.subr.bf16.mxu0 0
    %1931 = vmatpush1.bf16.msra.mxu0 0
    %1932 = vmatprep.subr.bf16.mxu0 0
    %1933 = vmatpush1.bf16.msra.mxu0 0
    %1934 = vmatprep.subr.bf16.mxu0 0
    %1935 = vmatpush1.bf16.msra.mxu0 0
    %1936 = vmatprep.mubr.bf16.mxu0 0
    %1937 = vmatmul.mubr.bf16.gmra.mrb[0].mxu0 %v1893
    %v1938 = vpop.f32.mrb[0].mxu0
    %v1939 = vadd.f32 %v237, %v1938
    %v1940 = vpop.f32.mrb[0].mxu0
    %v1941 = vpop.f32.mrb[0].mxu0
    %v1942 = vadd.f32 %v238, %v1941
    %v1943 = vpop.f32.mrb[0].mxu0
    %1944 = vmatprep.mubr.bf16.mxu0 0
    %1945 = vmatmul.mubr.bf16.gmra.mrb[0].mxu0 %v1896
    %v1946 = vpop.f32.mrb[0].mxu0
    %v1947 = vadd.f32 %v239, %v1946
    %v1948 = vpop.f32.mrb[0].mxu0
    %v1949 = vpop.f32.mrb[0].mxu0
    %v1950 = vadd.f32 %v240, %v1949
    %v1951 = vpop.f32.mrb[0].mxu0
    %1952 = vmatprep.mubr.bf16.mxu0 0
    %1953 = vmatmul.mubr.bf16.gmra.mrb[0].mxu0 %v1899
    %v1954 = vpop.f32.mrb[0].mxu0
    %v1955 = vadd.f32 %v241, %v1954
    %v1956 = vpop.f32.mrb[0].mxu0
    %v1957 = vpop.f32.mrb[0].mxu0
    %v1958 = vadd.f32 %v242, %v1957
    %v1959 = vpop.f32.mrb[0].mxu0
    %1960 = vmatprep.mubr.bf16.mxu0 0
    %1961 = vmatmul.mubr.bf16.gmra.mrb[0].mxu0 %v1902
    %v1962 = vpop.f32.mrb[0].mxu0
    %v1963 = vadd.f32 %v243, %v1962
    %v1964 = vpop.f32.mrb[0].mxu0
    %v1965 = vpop.f32.mrb[0].mxu0
    %v1966 = vadd.f32 %v244, %v1965
    %v1967 = vpop.f32.mrb[0].mxu0
    %1968 = vdwg.mxu0
    %v1969 = vsel %vm288, %v1939, -inf
    %1970 = vmax.xlane.f32.xlu0 %v1969
    %v1971 = vpop.xlane.xlu0 %1970
    %v1972 = vsel %vm288, %v1942, -inf
    %1973 = vmax.xlane.f32.xlu0 %v1972
    %v1974 = vpop.xlane.xlu0 %1973
    %v1975 = vsel %vm288, %v1947, -inf
    %1976 = vmax.xlane.f32.xlu0 %v1975
    %v1977 = vpop.xlane.xlu0 %1976
    %v1978 = vsel %vm288, %v1950, -inf
    %1979 = vmax.xlane.f32.xlu0 %v1978
    %v1980 = vpop.xlane.xlu0 %1979
    %v1981 = vsel %vm288, %v1955, -inf
    %1982 = vmax.xlane.f32.xlu0 %v1981
    %v1983 = vpop.xlane.xlu0 %1982
    %v1984 = vsel %vm288, %v1958, -inf
    %1985 = vmax.xlane.f32.xlu0 %v1984
    %v1986 = vpop.xlane.xlu0 %1985
    %v1987 = vsel %vm288, %v1963, -inf
    %1988 = vmax.xlane.f32.xlu0 %v1987
    %v1989 = vpop.xlane.xlu0 %1988
    %v1990 = vsel %vm288, %v1966, -inf
    %1991 = vmax.xlane.f32.xlu0 %v1990
    %v1992 = vpop.xlane.xlu0 %1991
    %v1993 = vsub.f32 %v1939, %v1971
    %v1994 = vsub.f32 %v1942, %v1974
    %v1995 = vsub.f32 %v1947, %v1977
    %v1996 = vsub.f32 %v1950, %v1980
    %v1997 = vsub.f32 %v1955, %v1983
    %v1998 = vsub.f32 %v1958, %v1986
    %v1999 = vsub.f32 %v1963, %v1989
    %v2000 = vsub.f32 %v1966, %v1992
    %v2001 = vmul.f32 %v1993, 1.442695
    %v2002 = vpow.pop %v2001
    %v2003 = vmul.f32 %v1994, 1.442695
    %v2004 = vpow.pop %v2003
    %v2005 = vmul.f32 %v1995, 1.442695
    %v2006 = vpow.pop %v2005
    %v2007 = vmul.f32 %v1996, 1.442695
    %v2008 = vpow.pop %v2007
    %v2009 = vmul.f32 %v1997, 1.442695
    %v2010 = vpow.pop %v2009
    %v2011 = vmul.f32 %v1998, 1.442695
    %v2012 = vpow.pop %v2011
    %v2013 = vmul.f32 %v1999, 1.442695
    %v2014 = vpow.pop %v2013
    %v2015 = vmul.f32 %v2000, 1.442695
    %v2016 = vpow.pop %v2015
    %v2017 = vsel %vm288, %v2002, 0.0
    %2018 = vadd.xlane.f32.xlu0 %v2017
    %v2019 = vpop.xlane.xlu0 %2018
    %v2020 = vsel %vm288, %v2004, 0.0
    %2021 = vadd.xlane.f32.xlu0 %v2020
    %v2022 = vpop.xlane.xlu0 %2021
    %v2023 = vsel %vm288, %v2006, 0.0
    %2024 = vadd.xlane.f32.xlu0 %v2023
    %v2025 = vpop.xlane.xlu0 %2024
    %v2026 = vsel %vm288, %v2008, 0.0
    %2027 = vadd.xlane.f32.xlu0 %v2026
    %v2028 = vpop.xlane.xlu0 %2027
    %v2029 = vsel %vm288, %v2010, 0.0
    %2030 = vadd.xlane.f32.xlu0 %v2029
    %v2031 = vpop.xlane.xlu0 %2030
    %v2032 = vsel %vm288, %v2012, 0.0
    %2033 = vadd.xlane.f32.xlu0 %v2032
    %v2034 = vpop.xlane.xlu0 %2033
    %v2035 = vsel %vm288, %v2014, 0.0
    %2036 = vadd.xlane.f32.xlu0 %v2035
    %v2037 = vpop.xlane.xlu0 %2036
    %v2038 = vsel %vm288, %v2016, 0.0
    %2039 = vadd.xlane.f32.xlu0 %v2038
    %v2040 = vpop.xlane.xlu0 %2039
    %v2041 = vrcp.pop %v2019
    %v2042 = vrcp.pop %v2022
    %v2043 = vrcp.pop %v2025
    %v2044 = vrcp.pop %v2028
    %v2045 = vrcp.pop %v2031
    %v2046 = vrcp.pop %v2034
    %v2047 = vrcp.pop %v2037
    %v2048 = vrcp.pop %v2040
    %v2049 = vmul.f32 %v2002, %v2041
    %v2050 = vmul.f32 %v2004, %v2042
    %v2051 = vmul.f32 %v2006, %v2043
    %v2052 = vmul.f32 %v2008, %v2044
    %v2053 = vmul.f32 %v2010, %v2045
    %v2054 = vmul.f32 %v2012, %v2046
    %v2055 = vmul.f32 %v2014, %v2047
    %v2056 = vmul.f32 %v2016, %v2048
    %s2057 = scalar_lea.vmem %s6, 96
    %v2058 = vld [vmem:[%s2057] sm:$0xf]
    %v2059 = vld [vmem:[%s2057 + $0x4] sm:$0xf]
    %v2060 = vld [vmem:[%s2057 + $0x8] sm:$0xf]
    %v2061 = vld [vmem:[%s2057 + $0xc] sm:$0xf]
    %v2062 = vld [vmem:[%s2057 + $0x10] sm:$0xf]
    %v2063 = vld [vmem:[%s2057 + $0x14] sm:$0xf]
    %v2064 = vld [vmem:[%s2057 + $0x18] sm:$0xf]
    %v2065 = vld [vmem:[%s2057 + $0x1c] sm:$0xf]
    %v2074 = vunpack.c.l.b16 %v2058
    %v2075 = vunpack.c.l.b16 %v2059
    %v2076 = vunpack.c.l.b16 %v2060
    %v2077 = vunpack.c.l.b16 %v2061
    %v2078 = vunpack.c.l.b16 %v2062
    %v2079 = vunpack.c.l.b16 %v2063
    %v2080 = vunpack.c.l.b16 %v2064
    %v2081 = vunpack.c.l.b16 %v2065
    %v2082 = vpack.c.b16 %v2075, %v2074
    %v2083 = vpack.c.b16 %v2077, %v2076
    %v2084 = vpack.c.b16 %v2079, %v2078
    %v2085 = vpack.c.b16 %v2081, %v2080
    %2090 = vmatprep.subr.bf16.mxu0 0
    %2091 = vmatpush1.bf16.msra.mxu0 %v2082
    %2092 = vmatprep.subr.bf16.mxu0 0
    %2093 = vmatpush1.bf16.msra.mxu0 %v2083
    %2094 = vmatprep.subr.bf16.mxu0 0
    %2095 = vmatpush1.bf16.msra.mxu0 %v2084
    %2096 = vmatprep.subr.bf16.mxu0 0
    %2097 = vmatpush1.bf16.msra.mxu0 %v2085
    %2098 = vmatprep.subr.bf16.mxu0 0
    %2099 = vmatpush1.bf16.msra.mxu0 0
    %2100 = vmatprep.subr.bf16.mxu0 0
    %2101 = vmatpush1.bf16.msra.mxu0 0
    %2102 = vmatprep.subr.bf16.mxu0 0
    %2103 = vmatpush1.bf16.msra.mxu0 0
    %2104 = vmatprep.subr.bf16.mxu0 0
    %2105 = vmatpush1.bf16.msra.mxu0 0
    %2106 = vmatprep.subr.bf16.mxu0 0
    %2107 = vmatpush1.bf16.msra.mxu0 0
    %2108 = vmatprep.subr.bf16.mxu0 0
    %2109 = vmatpush1.bf16.msra.mxu0 0
    %2110 = vmatprep.subr.bf16.mxu0 0
    %2111 = vmatpush1.bf16.msra.mxu0 0
    %2112 = vmatprep.subr.bf16.mxu0 0
    %2113 = vmatpush1.bf16.msra.mxu0 0
    %2114 = vmatprep.subr.bf16.mxu0 0
    %2115 = vmatpush1.bf16.msra.mxu0 0
    %2116 = vmatprep.subr.bf16.mxu0 0
    %2117 = vmatpush1.bf16.msra.mxu0 0
    %2118 = vmatprep.subr.bf16.mxu0 0
    %2119 = vmatpush1.bf16.msra.mxu0 0
    %2120 = vmatprep.subr.bf16.mxu0 0
    %2121 = vmatpush1.bf16.msra.mxu0 0
    %2122 = vmatprep.mubr.bf16.mxu0 0
    %2123 = vmatmul.mubr.bf16.gmra.mrb[0].mxu0 %v290
    %v2124 = vpop.f32.mrb[0].mxu0
    %v2125 = vadd.f32 0.0, %v2124
    %v2126 = vpop.f32.mrb[0].mxu0
    %v2127 = vpop.f32.mrb[0].mxu0
    %v2128 = vadd.f32 0.0, %v2127
    %v2129 = vpop.f32.mrb[0].mxu0
    %2130 = vmatprep.mubr.bf16.mxu0 0
    %2131 = vmatmul.mubr.bf16.gmra.mrb[0].mxu0 %v293
    %v2132 = vpop.f32.mrb[0].mxu0
    %v2133 = vadd.f32 0.0, %v2132
    %v2134 = vpop.f32.mrb[0].mxu0
    %v2135 = vpop.f32.mrb[0].mxu0
    %v2136 = vadd.f32 0.0, %v2135
    %v2137 = vpop.f32.mrb[0].mxu0
    %2138 = vmatprep.mubr.bf16.mxu0 0
    %2139 = vmatmul.mubr.bf16.gmra.mrb[0].mxu0 %v296
    %v2140 = vpop.f32.mrb[0].mxu0
    %v2141 = vadd.f32 0.0, %v2140
    %v2142 = vpop.f32.mrb[0].mxu0
    %v2143 = vpop.f32.mrb[0].mxu0
    %v2144 = vadd.f32 0.0, %v2143
    %v2145 = vpop.f32.mrb[0].mxu0
    %2146 = vmatprep.mubr.bf16.mxu0 0
    %2147 = vmatmul.mubr.bf16.gmra.mrb[0].mxu0 %v299
    %v2148 = vpop.f32.mrb[0].mxu0
    %v2149 = vadd.f32 0.0, %v2148
    %v2150 = vpop.f32.mrb[0].mxu0
    %v2151 = vpop.f32.mrb[0].mxu0
    %v2152 = vadd.f32 0.0, %v2151
    %v2153 = vpop.f32.mrb[0].mxu0
    %2154 = vdwg.mxu0
    %v2155 = vpack.c.bf16 %v2050, %v2049
    %v2156 = vpack.c.bf16 %v2052, %v2051
    %v2157 = vpack.c.bf16 %v2054, %v2053
    %v2158 = vpack.c.bf16 %v2056, %v2055
    %v2159 = vpack.c.bf16 %v2128, %v2125
    %v2160 = vpack.c.bf16 %v2136, %v2133
    %v2161 = vpack.c.bf16 %v2144, %v2141
    %v2162 = vpack.c.bf16 %v2152, %v2149
    %v2164 = vsel %vm288, %v2155, 0
    %v2167 = vsel %vm288, %v2156, 0
    %v2170 = vsel %vm288, %v2157, 0
    %v2173 = vsel %vm288, %v2158, 0
    %2175 = vmatprep.subr.bf16.mxu0 0
    %2176 = vmatpush1.bf16.msra.mxu0 %v2159
    %2177 = vmatprep.subr.bf16.mxu0 0
    %2178 = vmatpush1.bf16.msra.mxu0 %v2160
    %2179 = vmatprep.subr.bf16.mxu0 0
    %2180 = vmatpush1.bf16.msra.mxu0 %v2161
    %2181 = vmatprep.subr.bf16.mxu0 0
    %2182 = vmatpush1.bf16.msra.mxu0 %v2162
    %2183 = vmatprep.subr.bf16.mxu0 0
    %2184 = vmatpush1.bf16.msra.mxu0 0
    %2185 = vmatprep.subr.bf16.mxu0 0
    %2186 = vmatpush1.bf16.msra.mxu0 0
    %2187 = vmatprep.subr.bf16.mxu0 0
    %2188 = vmatpush1.bf16.msra.mxu0 0
    %2189 = vmatprep.subr.bf16.mxu0 0
    %2190 = vmatpush1.bf16.msra.mxu0 0
    %2191 = vmatprep.subr.bf16.mxu0 0
    %2192 = vmatpush1.bf16.msra.mxu0 0
    %2193 = vmatprep.subr.bf16.mxu0 0
    %2194 = vmatpush1.bf16.msra.mxu0 0
    %2195 = vmatprep.subr.bf16.mxu0 0
    %2196 = vmatpush1.bf16.msra.mxu0 0
    %2197 = vmatprep.subr.bf16.mxu0 0
    %2198 = vmatpush1.bf16.msra.mxu0 0
    %2199 = vmatprep.subr.bf16.mxu0 0
    %2200 = vmatpush1.bf16.msra.mxu0 0
    %2201 = vmatprep.subr.bf16.mxu0 0
    %2202 = vmatpush1.bf16.msra.mxu0 0
    %2203 = vmatprep.subr.bf16.mxu0 0
    %2204 = vmatpush1.bf16.msra.mxu0 0
    %2205 = vmatprep.subr.bf16.mxu0 0
    %2206 = vmatpush1.bf16.msra.mxu0 0
    %2207 = vmatprep.mubr.bf16.mxu0 0
    %2208 = vmatmul.mubr.bf16.gmra.mrb[0].mxu0 %v2164
    %v2209 = vpop.f32.mrb[0].mxu0
    %v2210 = vadd.f32 0.0, %v2209
    %v2211 = vpop.f32.mrb[0].mxu0
    %v2212 = vpop.f32.mrb[0].mxu0
    %v2213 = vadd.f32 0.0, %v2212
    %v2214 = vpop.f32.mrb[0].mxu0
    %2215 = vmatprep.mubr.bf16.mxu0 0
    %2216 = vmatmul.mubr.bf16.gmra.mrb[0].mxu0 %v2167
    %v2217 = vpop.f32.mrb[0].mxu0
    %v2218 = vadd.f32 0.0, %v2217
    %v2219 = vpop.f32.mrb[0].mxu0
    %v2220 = vpop.f32.mrb[0].mxu0
    %v2221 = vadd.f32 0.0, %v2220
    %v2222 = vpop.f32.mrb[0].mxu0
    %2223 = vmatprep.mubr.bf16.mxu0 0
    %2224 = vmatmul.mubr.bf16.gmra.mrb[0].mxu0 %v2170
    %v2225 = vpop.f32.mrb[0].mxu0
    %v2226 = vadd.f32 0.0, %v2225
    %v2227 = vpop.f32.mrb[0].mxu0
    %v2228 = vpop.f32.mrb[0].mxu0
    %v2229 = vadd.f32 0.0, %v2228
    %v2230 = vpop.f32.mrb[0].mxu0
    %2231 = vmatprep.mubr.bf16.mxu0 0
    %2232 = vmatmul.mubr.bf16.gmra.mrb[0].mxu0 %v2173
    %v2233 = vpop.f32.mrb[0].mxu0
    %v2234 = vadd.f32 0.0, %v2233
    %v2235 = vpop.f32.mrb[0].mxu0
    %v2236 = vpop.f32.mrb[0].mxu0
    %v2237 = vadd.f32 0.0, %v2236
    %v2238 = vpop.f32.mrb[0].mxu0
    %2239 = vdwg.mxu0
    %v2240 = vadd.f32 %v1774, %v2210
    %v2241 = vadd.f32 %v1775, %v2213
    %v2242 = vadd.f32 %v1776, %v2218
    %v2243 = vadd.f32 %v1777, %v2221
    %v2244 = vadd.f32 %v1778, %v2226
    %v2245 = vadd.f32 %v1779, %v2229
    %v2246 = vadd.f32 %v1780, %v2234
    %v2247 = vadd.f32 %v1781, %v2237
    %s2248 = scalar_lea.vmem [#allocation7], 1
    %v2249 = vld [vmem:[%s2248] sm:$0x1]
    %v2251 = vlaneseq
    %v2252 = vshrl.u32 %v2251, 7
    %v2253 = vsub.s32 0, %v2252
    %v2254 = vrot.slane %v2249, %v2253
    %v2256 = vadd.f32 %v2240, %v2254
    %v2257 = vadd.f32 %v2241, %v2254
    %v2258 = vadd.f32 %v2242, %v2254
    %v2259 = vadd.f32 %v2243, %v2254
    %v2260 = vadd.f32 %v2244, %v2254
    %v2261 = vadd.f32 %v2245, %v2254
    %v2262 = vadd.f32 %v2246, %v2254
    %v2263 = vadd.f32 %v2247, %v2254
    %v2264 = vadd.f32 %v199, %v2256
    %v2265 = vadd.f32 %v204, %v2257
    %v2266 = vadd.f32 %v209, %v2258
    %v2267 = vadd.f32 %v214, %v2259
    %v2268 = vadd.f32 %v219, %v2260
    %v2269 = vadd.f32 %v224, %v2261
    %v2270 = vadd.f32 %v229, %v2262
    %v2271 = vadd.f32 %v234, %v2263
    %s2272 = scalar_lea.vmem [#allocation7], 2
    %v2273 = vld [vmem:[%s2272] sm:$0x1]
    %s2274 = scalar_lea.vmem [#allocation7], 3
    %v2275 = vld [vmem:[%s2274] sm:$0x1]
    %v2276 = vsel %vm288, %v2264, 0.0
    %2277 = vadd.xlane.f32.xlu0 %v2276
    %v2278 = vpop.xlane.xlu0 %2277
    %v2279 = vsel %vm288, %v2265, 0.0
    %2280 = vadd.xlane.f32.xlu0 %v2279
    %v2281 = vpop.xlane.xlu0 %2280
    %v2282 = vsel %vm288, %v2266, 0.0
    %2283 = vadd.xlane.f32.xlu0 %v2282
    %v2284 = vpop.xlane.xlu0 %2283
    %v2285 = vsel %vm288, %v2267, 0.0
    %2286 = vadd.xlane.f32.xlu0 %v2285
    %v2287 = vpop.xlane.xlu0 %2286
    %v2288 = vsel %vm288, %v2268, 0.0
    %2289 = vadd.xlane.f32.xlu0 %v2288
    %v2290 = vpop.xlane.xlu0 %2289
    %v2291 = vsel %vm288, %v2269, 0.0
    %2292 = vadd.xlane.f32.xlu0 %v2291
    %v2293 = vpop.xlane.xlu0 %2292
    %v2294 = vsel %vm288, %v2270, 0.0
    %2295 = vadd.xlane.f32.xlu0 %v2294
    %v2296 = vpop.xlane.xlu0 %2295
    %v2297 = vsel %vm288, %v2271, 0.0
    %2298 = vadd.xlane.f32.xlu0 %v2297
    %v2299 = vpop.xlane.xlu0 %2298
    %v2300 = vrcp.pop 64.0
    %v2301 = vmul.f32 %v2278, %v2300
    %v2302 = vmul.f32 %v2281, %v2300
    %v2303 = vmul.f32 %v2284, %v2300
    %v2304 = vmul.f32 %v2287, %v2300
    %v2305 = vmul.f32 %v2290, %v2300
    %v2306 = vmul.f32 %v2293, %v2300
    %v2307 = vmul.f32 %v2296, %v2300
    %v2308 = vmul.f32 %v2299, %v2300
    %v2309 = vsub.f32 %v2264, %v2301
    %v2310 = vsub.f32 %v2265, %v2302
    %v2311 = vsub.f32 %v2266, %v2303
    %v2312 = vsub.f32 %v2267, %v2304
    %v2313 = vsub.f32 %v2268, %v2305
    %v2314 = vsub.f32 %v2269, %v2306
    %v2315 = vsub.f32 %v2270, %v2307
    %v2316 = vsub.f32 %v2271, %v2308
    %v2317 = vmul.f32 %v2309, %v2309
    %v2318 = vmul.f32 %v2310, %v2310
    %v2319 = vmul.f32 %v2311, %v2311
    %v2320 = vmul.f32 %v2312, %v2312
    %v2321 = vmul.f32 %v2313, %v2313
    %v2322 = vmul.f32 %v2314, %v2314
    %v2323 = vmul.f32 %v2315, %v2315
    %v2324 = vmul.f32 %v2316, %v2316
    %v2325 = vsel %vm288, %v2317, 0.0
    %2326 = vadd.xlane.f32.xlu0 %v2325
    %v2327 = vpop.xlane.xlu0 %2326
    %v2328 = vsel %vm288, %v2318, 0.0
    %2329 = vadd.xlane.f32.xlu0 %v2328
    %v2330 = vpop.xlane.xlu0 %2329
    %v2331 = vsel %vm288, %v2319, 0.0
    %2332 = vadd.xlane.f32.xlu0 %v2331
    %v2333 = vpop.xlane.xlu0 %2332
    %v2334 = vsel %vm288, %v2320, 0.0
    %2335 = vadd.xlane.f32.xlu0 %v2334
    %v2336 = vpop.xlane.xlu0 %2335
    %v2337 = vsel %vm288, %v2321, 0.0
    %2338 = vadd.xlane.f32.xlu0 %v2337
    %v2339 = vpop.xlane.xlu0 %2338
    %v2340 = vsel %vm288, %v2322, 0.0
    %2341 = vadd.xlane.f32.xlu0 %v2340
    %v2342 = vpop.xlane.xlu0 %2341
    %v2343 = vsel %vm288, %v2323, 0.0
    %2344 = vadd.xlane.f32.xlu0 %v2343
    %v2345 = vpop.xlane.xlu0 %2344
    %v2346 = vsel %vm288, %v2324, 0.0
    %2347 = vadd.xlane.f32.xlu0 %v2346
    %v2348 = vpop.xlane.xlu0 %2347
    %v2349 = vmul.f32 %v2327, %v2300
    %v2350 = vmul.f32 %v2330, %v2300
    %v2351 = vmul.f32 %v2333, %v2300
    %v2352 = vmul.f32 %v2336, %v2300
    %v2353 = vmul.f32 %v2339, %v2300
    %v2354 = vmul.f32 %v2342, %v2300
    %v2355 = vmul.f32 %v2345, %v2300
    %v2356 = vmul.f32 %v2348, %v2300
    %v2357 = vadd.f32 %v2349, 1e-05
    %v2358 = vadd.f32 %v2350, 1e-05
    %v2359 = vadd.f32 %v2351, 1e-05
    %v2360 = vadd.f32 %v2352, 1e-05
    %v2361 = vadd.f32 %v2353, 1e-05
    %v2362 = vadd.f32 %v2354, 1e-05
    %v2363 = vadd.f32 %v2355, 1e-05
    %v2364 = vadd.f32 %v2356, 1e-05
    %v2365 = vrsqrt.pop %v2357
    %v2366 = vrsqrt.pop %v2358
    %v2367 = vrsqrt.pop %v2359
    %v2368 = vrsqrt.pop %v2360
    %v2369 = vrsqrt.pop %v2361
    %v2370 = vrsqrt.pop %v2362
    %v2371 = vrsqrt.pop %v2363
    %v2372 = vrsqrt.pop %v2364
    %v2373 = vmul.f32 %v2309, %v2365
    %v2374 = vmul.f32 %v2310, %v2366
    %v2375 = vmul.f32 %v2311, %v2367
    %v2376 = vmul.f32 %v2312, %v2368
    %v2377 = vmul.f32 %v2313, %v2369
    %v2378 = vmul.f32 %v2314, %v2370
    %v2379 = vmul.f32 %v2315, %v2371
    %v2380 = vmul.f32 %v2316, %v2372
    %v2382 = vlaneseq
    %v2383 = vshrl.u32 %v2382, 7
    %v2384 = vsub.s32 0, %v2383
    %v2385 = vrot.slane %v2273, %v2384
    %v2387 = vmul.f32 %v2373, %v2385
    %v2388 = vmul.f32 %v2374, %v2385
    %v2389 = vmul.f32 %v2375, %v2385
    %v2390 = vmul.f32 %v2376, %v2385
    %v2391 = vmul.f32 %v2377, %v2385
    %v2392 = vmul.f32 %v2378, %v2385
    %v2393 = vmul.f32 %v2379, %v2385
    %v2394 = vmul.f32 %v2380, %v2385
    %v2396 = vlaneseq
    %v2397 = vshrl.u32 %v2396, 7
    %v2398 = vsub.s32 0, %v2397
    %v2399 = vrot.slane %v2275, %v2398
    %v2401 = vadd.f32 %v2387, %v2399
    %v2402 = vadd.f32 %v2388, %v2399
    %v2403 = vadd.f32 %v2389, %v2399
    %v2404 = vadd.f32 %v2390, %v2399
    %v2405 = vadd.f32 %v2391, %v2399
    %v2406 = vadd.f32 %v2392, %v2399
    %v2407 = vadd.f32 %v2393, %v2399
    %v2408 = vadd.f32 %v2394, %v2399
    %v2409 = vpack.c.bf16 %v2402, %v2401
    %v2410 = vpack.c.bf16 %v2404, %v2403
    %v2411 = vpack.c.bf16 %v2406, %v2405
    %v2412 = vpack.c.bf16 %v2408, %v2407
    %v2413 = vld [vmem:[%s7] sm:$0xf]
    %v2414 = vld [vmem:[%s7 + $0x4] sm:$0xf]
    %v2415 = vld [vmem:[%s7 + $0x8] sm:$0xf]
    %v2416 = vld [vmem:[%s7 + $0xc] sm:$0xf]
    %v2417 = vld [vmem:[%s7 + $0x10] sm:$0xf]
    %v2418 = vld [vmem:[%s7 + $0x14] sm:$0xf]
    %v2419 = vld [vmem:[%s7 + $0x18] sm:$0xf]
    %v2420 = vld [vmem:[%s7 + $0x1c] sm:$0xf]
    %v2421 = vld [vmem:[%s8] sm:$0x1]
    %v2423 = vlaneseq
    %v2424 = vshrl.u32 %v2423, 7
    %v2425 = vsub.s32 0, %v2424
    %v2426 = vrot.slane %v2421, %v2425
    %v2436 = vunpack.c.l.b16 %v2413
    %v2437 = vunpack.c.l.b16 %v2414
    %v2438 = vunpack.c.l.b16 %v2415
    %v2439 = vunpack.c.l.b16 %v2416
    %v2440 = vunpack.c.l.b16 %v2417
    %v2441 = vunpack.c.l.b16 %v2418
    %v2442 = vunpack.c.l.b16 %v2419
    %v2443 = vunpack.c.l.b16 %v2420
    %v2444 = vpack.c.b16 %v2437, %v2436
    %v2445 = vpack.c.b16 %v2439, %v2438
    %v2446 = vpack.c.b16 %v2441, %v2440
    %v2447 = vpack.c.b16 %v2443, %v2442
    %v2453 = vsel %vm288, %v2409, 0
    %v2456 = vsel %vm288, %v2410, 0
    %v2459 = vsel %vm288, %v2411, 0
    %v2462 = vsel %vm288, %v2412, 0
    %2464 = vmatprep.subr.bf16.mxu0 0
    %2465 = vmatpush1.bf16.msra.mxu0 %v2444
    %2466 = vmatprep.subr.bf16.mxu0 0
    %2467 = vmatpush1.bf16.msra.mxu0 %v2445
    %2468 = vmatprep.subr.bf16.mxu0 0
    %2469 = vmatpush1.bf16.msra.mxu0 %v2446
    %2470 = vmatprep.subr.bf16.mxu0 0
    %2471 = vmatpush1.bf16.msra.mxu0 %v2447
    %2472 = vmatprep.subr.bf16.mxu0 0
    %2473 = vmatpush1.bf16.msra.mxu0 0
    %2474 = vmatprep.subr.bf16.mxu0 0
    %2475 = vmatpush1.bf16.msra.mxu0 0
    %2476 = vmatprep.subr.bf16.mxu0 0
    %2477 = vmatpush1.bf16.msra.mxu0 0
    %2478 = vmatprep.subr.bf16.mxu0 0
    %2479 = vmatpush1.bf16.msra.mxu0 0
    %2480 = vmatprep.subr.bf16.mxu0 0
    %2481 = vmatpush1.bf16.msra.mxu0 0
    %2482 = vmatprep.subr.bf16.mxu0 0
    %2483 = vmatpush1.bf16.msra.mxu0 0
    %2484 = vmatprep.subr.bf16.mxu0 0
    %2485 = vmatpush1.bf16.msra.mxu0 0
    %2486 = vmatprep.subr.bf16.mxu0 0
    %2487 = vmatpush1.bf16.msra.mxu0 0
    %2488 = vmatprep.subr.bf16.mxu0 0
    %2489 = vmatpush1.bf16.msra.mxu0 0
    %2490 = vmatprep.subr.bf16.mxu0 0
    %2491 = vmatpush1.bf16.msra.mxu0 0
    %2492 = vmatprep.subr.bf16.mxu0 0
    %2493 = vmatpush1.bf16.msra.mxu0 0
    %2494 = vmatprep.subr.bf16.mxu0 0
    %2495 = vmatpush1.bf16.msra.mxu0 0
    %2496 = vmatprep.mubr.bf16.mxu0 0
    %2497 = vmatmul.mubr.bf16.gmra.mrb[0].mxu0 %v2453
    %v2498 = vpop.f32.mrb[0].mxu0
    %v2499 = vadd.f32 %v2426, %v2498
    %v2500 = vpop.f32.mrb[0].mxu0
    %v2501 = vpop.f32.mrb[0].mxu0
    %v2502 = vadd.f32 %v2426, %v2501
    %v2503 = vpop.f32.mrb[0].mxu0
    %2504 = vmatprep.mubr.bf16.mxu0 0
    %2505 = vmatmul.mubr.bf16.gmra.mrb[0].mxu0 %v2456
    %v2506 = vpop.f32.mrb[0].mxu0
    %v2507 = vadd.f32 %v2426, %v2506
    %v2508 = vpop.f32.mrb[0].mxu0
    %v2509 = vpop.f32.mrb[0].mxu0
    %v2510 = vadd.f32 %v2426, %v2509
    %v2511 = vpop.f32.mrb[0].mxu0
    %2512 = vmatprep.mubr.bf16.mxu0 0
    %2513 = vmatmul.mubr.bf16.gmra.mrb[0].mxu0 %v2459
    %v2514 = vpop.f32.mrb[0].mxu0
    %v2515 = vadd.f32 %v2426, %v2514
    %v2516 = vpop.f32.mrb[0].mxu0
    %v2517 = vpop.f32.mrb[0].mxu0
    %v2518 = vadd.f32 %v2426, %v2517
    %v2519 = vpop.f32.mrb[0].mxu0
    %2520 = vmatprep.mubr.bf16.mxu0 0
    %2521 = vmatmul.mubr.bf16.gmra.mrb[0].mxu0 %v2462
    %v2522 = vpop.f32.mrb[0].mxu0
    %v2523 = vadd.f32 %v2426, %v2522
    %v2524 = vpop.f32.mrb[0].mxu0
    %v2525 = vpop.f32.mrb[0].mxu0
    %v2526 = vadd.f32 %v2426, %v2525
    %v2527 = vpop.f32.mrb[0].mxu0
    %2528 = vdwg.mxu0
    %v2529 = vmax.f32 %v2499, 0.0
    %v2530 = vmax.f32 %v2502, 0.0
    %v2531 = vmax.f32 %v2507, 0.0
    %v2532 = vmax.f32 %v2510, 0.0
    %v2533 = vmax.f32 %v2515, 0.0
    %v2534 = vmax.f32 %v2518, 0.0
    %v2535 = vmax.f32 %v2523, 0.0
    %v2536 = vmax.f32 %v2526, 0.0
    %v2537 = vpack.c.bf16 %v2530, %v2529
    %v2538 = vpack.c.bf16 %v2532, %v2531
    %v2539 = vpack.c.bf16 %v2534, %v2533
    %v2540 = vpack.c.bf16 %v2536, %v2535
    %v2541 = vld [vmem:[%s9] sm:$0xf]
    %v2542 = vld [vmem:[%s9 + $0x4] sm:$0xf]
    %v2543 = vld [vmem:[%s9 + $0x8] sm:$0xf]
    %v2544 = vld [vmem:[%s9 + $0xc] sm:$0xf]
    %v2545 = vld [vmem:[%s9 + $0x10] sm:$0xf]
    %v2546 = vld [vmem:[%s9 + $0x14] sm:$0xf]
    %v2547 = vld [vmem:[%s9 + $0x18] sm:$0xf]
    %v2548 = vld [vmem:[%s9 + $0x1c] sm:$0xf]
    %v2549 = vld [vmem:[%s9 + $0x20] sm:$0xf]
    %v2550 = vld [vmem:[%s9 + $0x24] sm:$0xf]
    %v2551 = vld [vmem:[%s9 + $0x28] sm:$0xf]
    %v2552 = vld [vmem:[%s9 + $0x2c] sm:$0xf]
    %v2553 = vld [vmem:[%s9 + $0x30] sm:$0xf]
    %v2554 = vld [vmem:[%s9 + $0x34] sm:$0xf]
    %v2555 = vld [vmem:[%s9 + $0x38] sm:$0xf]
    %v2556 = vld [vmem:[%s9 + $0x3c] sm:$0xf]
    %s2557 = scalar_lea.vmem [#allocation7], 4
    %v2558 = vld [vmem:[%s2557] sm:$0x1]
    %v2560 = vlaneseq
    %v2561 = vshrl.u32 %v2560, 7
    %v2562 = vsub.s32 0, %v2561
    %v2563 = vrot.slane %v2558, %v2562
    %v2581 = vunpack.c.l.b16 %v2541
    %v2582 = vunpack.c.l.b16 %v2542
    %v2583 = vunpack.c.l.b16 %v2543
    %v2584 = vunpack.c.l.b16 %v2544
    %v2585 = vunpack.c.l.b16 %v2545
    %v2586 = vunpack.c.l.b16 %v2546
    %v2587 = vunpack.c.l.b16 %v2547
    %v2588 = vunpack.c.l.b16 %v2548
    %v2589 = vunpack.c.l.b16 %v2549
    %v2590 = vunpack.c.l.b16 %v2550
    %v2591 = vunpack.c.l.b16 %v2551
    %v2592 = vunpack.c.l.b16 %v2552
    %v2593 = vunpack.c.l.b16 %v2553
    %v2594 = vunpack.c.l.b16 %v2554
    %v2595 = vunpack.c.l.b16 %v2555
    %v2596 = vunpack.c.l.b16 %v2556
    %v2597 = vpack.c.b16 %v2582, %v2581
    %v2598 = vpack.c.b16 %v2584, %v2583
    %v2599 = vpack.c.b16 %v2586, %v2585
    %v2600 = vpack.c.b16 %v2588, %v2587
    %v2601 = vpack.c.b16 %v2590, %v2589
    %v2602 = vpack.c.b16 %v2592, %v2591
    %v2603 = vpack.c.b16 %v2594, %v2593
    %v2604 = vpack.c.b16 %v2596, %v2595
    %2613 = vmatprep.subr.bf16.mxu0 0
    %2614 = vmatpush1.bf16.msra.mxu0 %v2597
    %2615 = vmatprep.subr.bf16.mxu0 0
    %2616 = vmatpush1.bf16.msra.mxu0 %v2598
    %2617 = vmatprep.subr.bf16.mxu0 0
    %2618 = vmatpush1.bf16.msra.mxu0 %v2599
    %2619 = vmatprep.subr.bf16.mxu0 0
    %2620 = vmatpush1.bf16.msra.mxu0 %v2600
    %2621 = vmatprep.subr.bf16.mxu0 0
    %2622 = vmatpush1.bf16.msra.mxu0 %v2601
    %2623 = vmatprep.subr.bf16.mxu0 0
    %2624 = vmatpush1.bf16.msra.mxu0 %v2602
    %2625 = vmatprep.subr.bf16.mxu0 0
    %2626 = vmatpush1.bf16.msra.mxu0 %v2603
    %2627 = vmatprep.subr.bf16.mxu0 0
    %2628 = vmatpush1.bf16.msra.mxu0 %v2604
    %2629 = vmatprep.subr.bf16.mxu0 0
    %2630 = vmatpush1.bf16.msra.mxu0 0
    %2631 = vmatprep.subr.bf16.mxu0 0
    %2632 = vmatpush1.bf16.msra.mxu0 0
    %2633 = vmatprep.subr.bf16.mxu0 0
    %2634 = vmatpush1.bf16.msra.mxu0 0
    %2635 = vmatprep.subr.bf16.mxu0 0
    %2636 = vmatpush1.bf16.msra.mxu0 0
    %2637 = vmatprep.subr.bf16.mxu0 0
    %2638 = vmatpush1.bf16.msra.mxu0 0
    %2639 = vmatprep.subr.bf16.mxu0 0
    %2640 = vmatpush1.bf16.msra.mxu0 0
    %2641 = vmatprep.subr.bf16.mxu0 0
    %2642 = vmatpush1.bf16.msra.mxu0 0
    %2643 = vmatprep.subr.bf16.mxu0 0
    %2644 = vmatpush1.bf16.msra.mxu0 0
    %2645 = vmatprep.mubr.bf16.mxu0 0
    %2646 = vmatmul.mubr.bf16.gmra.mrb[0].mxu0 %v2537
    %v2647 = vpop.f32.mrb[0].mxu0
    %v2648 = vadd.f32 %v2563, %v2647
    %v2649 = vpop.f32.mrb[0].mxu0
    %v2650 = vpop.f32.mrb[0].mxu0
    %v2651 = vadd.f32 %v2563, %v2650
    %v2652 = vpop.f32.mrb[0].mxu0
    %2653 = vmatprep.mubr.bf16.mxu0 0
    %2654 = vmatmul.mubr.bf16.gmra.mrb[0].mxu0 %v2538
    %v2655 = vpop.f32.mrb[0].mxu0
    %v2656 = vadd.f32 %v2563, %v2655
    %v2657 = vpop.f32.mrb[0].mxu0
    %v2658 = vpop.f32.mrb[0].mxu0
    %v2659 = vadd.f32 %v2563, %v2658
    %v2660 = vpop.f32.mrb[0].mxu0
    %2661 = vmatprep.mubr.bf16.mxu0 0
    %2662 = vmatmul.mubr.bf16.gmra.mrb[0].mxu0 %v2539
    %v2663 = vpop.f32.mrb[0].mxu0
    %v2664 = vadd.f32 %v2563, %v2663
    %v2665 = vpop.f32.mrb[0].mxu0
    %v2666 = vpop.f32.mrb[0].mxu0
    %v2667 = vadd.f32 %v2563, %v2666
    %v2668 = vpop.f32.mrb[0].mxu0
    %2669 = vmatprep.mubr.bf16.mxu0 0
    %2670 = vmatmul.mubr.bf16.gmra.mrb[0].mxu0 %v2540
    %v2671 = vpop.f32.mrb[0].mxu0
    %v2672 = vadd.f32 %v2563, %v2671
    %v2673 = vpop.f32.mrb[0].mxu0
    %v2674 = vpop.f32.mrb[0].mxu0
    %v2675 = vadd.f32 %v2563, %v2674
    %v2676 = vpop.f32.mrb[0].mxu0
    %2677 = vdwg.mxu0
    %v2678 = vadd.f32 %v2401, %v2648
    %v2679 = vadd.f32 %v2402, %v2651
    %v2680 = vadd.f32 %v2403, %v2656
    %v2681 = vadd.f32 %v2404, %v2659
    %v2682 = vadd.f32 %v2405, %v2664
    %v2683 = vadd.f32 %v2406, %v2667
    %v2684 = vadd.f32 %v2407, %v2672
    %v2685 = vadd.f32 %v2408, %v2675
    %s2686 = scalar_lea.vmem [#allocation7], 5
    %v2687 = vld [vmem:[%s2686] sm:$0x1]
    %s2688 = scalar_lea.vmem [#allocation7], 6
    %v2689 = vld [vmem:[%s2688] sm:$0x1]
    %v2690 = vsel %vm288, %v2678, 0.0
    %2691 = vadd.xlane.f32.xlu0 %v2690
    %v2692 = vpop.xlane.xlu0 %2691
    %v2693 = vsel %vm288, %v2679, 0.0
    %2694 = vadd.xlane.f32.xlu0 %v2693
    %v2695 = vpop.xlane.xlu0 %2694
    %v2696 = vsel %vm288, %v2680, 0.0
    %2697 = vadd.xlane.f32.xlu0 %v2696
    %v2698 = vpop.xlane.xlu0 %2697
    %v2699 = vsel %vm288, %v2681, 0.0
    %2700 = vadd.xlane.f32.xlu0 %v2699
    %v2701 = vpop.xlane.xlu0 %2700
    %v2702 = vsel %vm288, %v2682, 0.0
    %2703 = vadd.xlane.f32.xlu0 %v2702
    %v2704 = vpop.xlane.xlu0 %2703
    %v2705 = vsel %vm288, %v2683, 0.0
    %2706 = vadd.xlane.f32.xlu0 %v2705
    %v2707 = vpop.xlane.xlu0 %2706
    %v2708 = vsel %vm288, %v2684, 0.0
    %2709 = vadd.xlane.f32.xlu0 %v2708
    %v2710 = vpop.xlane.xlu0 %2709
    %v2711 = vsel %vm288, %v2685, 0.0
    %2712 = vadd.xlane.f32.xlu0 %v2711
    %v2713 = vpop.xlane.xlu0 %2712
    %v2714 = vmul.f32 %v2692, %v2300
    %v2715 = vmul.f32 %v2695, %v2300
    %v2716 = vmul.f32 %v2698, %v2300
    %v2717 = vmul.f32 %v2701, %v2300
    %v2718 = vmul.f32 %v2704, %v2300
    %v2719 = vmul.f32 %v2707, %v2300
    %v2720 = vmul.f32 %v2710, %v2300
    %v2721 = vmul.f32 %v2713, %v2300
    %v2722 = vsub.f32 %v2678, %v2714
    %v2723 = vsub.f32 %v2679, %v2715
    %v2724 = vsub.f32 %v2680, %v2716
    %v2725 = vsub.f32 %v2681, %v2717
    %v2726 = vsub.f32 %v2682, %v2718
    %v2727 = vsub.f32 %v2683, %v2719
    %v2728 = vsub.f32 %v2684, %v2720
    %v2729 = vsub.f32 %v2685, %v2721
    %v2730 = vmul.f32 %v2722, %v2722
    %v2731 = vmul.f32 %v2723, %v2723
    %v2732 = vmul.f32 %v2724, %v2724
    %v2733 = vmul.f32 %v2725, %v2725
    %v2734 = vmul.f32 %v2726, %v2726
    %v2735 = vmul.f32 %v2727, %v2727
    %v2736 = vmul.f32 %v2728, %v2728
    %v2737 = vmul.f32 %v2729, %v2729
    %v2738 = vsel %vm288, %v2730, 0.0
    %2739 = vadd.xlane.f32.xlu0 %v2738
    %v2740 = vpop.xlane.xlu0 %2739
    %v2741 = vsel %vm288, %v2731, 0.0
    %2742 = vadd.xlane.f32.xlu0 %v2741
    %v2743 = vpop.xlane.xlu0 %2742
    %v2744 = vsel %vm288, %v2732, 0.0
    %2745 = vadd.xlane.f32.xlu0 %v2744
    %v2746 = vpop.xlane.xlu0 %2745
    %v2747 = vsel %vm288, %v2733, 0.0
    %2748 = vadd.xlane.f32.xlu0 %v2747
    %v2749 = vpop.xlane.xlu0 %2748
    %v2750 = vsel %vm288, %v2734, 0.0
    %2751 = vadd.xlane.f32.xlu0 %v2750
    %v2752 = vpop.xlane.xlu0 %2751
    %v2753 = vsel %vm288, %v2735, 0.0
    %2754 = vadd.xlane.f32.xlu0 %v2753
    %v2755 = vpop.xlane.xlu0 %2754
    %v2756 = vsel %vm288, %v2736, 0.0
    %2757 = vadd.xlane.f32.xlu0 %v2756
    %v2758 = vpop.xlane.xlu0 %2757
    %v2759 = vsel %vm288, %v2737, 0.0
    %2760 = vadd.xlane.f32.xlu0 %v2759
    %v2761 = vpop.xlane.xlu0 %2760
    %v2762 = vmul.f32 %v2740, %v2300
    %v2763 = vmul.f32 %v2743, %v2300
    %v2764 = vmul.f32 %v2746, %v2300
    %v2765 = vmul.f32 %v2749, %v2300
    %v2766 = vmul.f32 %v2752, %v2300
    %v2767 = vmul.f32 %v2755, %v2300
    %v2768 = vmul.f32 %v2758, %v2300
    %v2769 = vmul.f32 %v2761, %v2300
    %v2770 = vadd.f32 %v2762, 1e-05
    %v2771 = vadd.f32 %v2763, 1e-05
    %v2772 = vadd.f32 %v2764, 1e-05
    %v2773 = vadd.f32 %v2765, 1e-05
    %v2774 = vadd.f32 %v2766, 1e-05
    %v2775 = vadd.f32 %v2767, 1e-05
    %v2776 = vadd.f32 %v2768, 1e-05
    %v2777 = vadd.f32 %v2769, 1e-05
    %v2778 = vrsqrt.pop %v2770
    %v2779 = vrsqrt.pop %v2771
    %v2780 = vrsqrt.pop %v2772
    %v2781 = vrsqrt.pop %v2773
    %v2782 = vrsqrt.pop %v2774
    %v2783 = vrsqrt.pop %v2775
    %v2784 = vrsqrt.pop %v2776
    %v2785 = vrsqrt.pop %v2777
    %v2786 = vmul.f32 %v2722, %v2778
    %v2787 = vmul.f32 %v2723, %v2779
    %v2788 = vmul.f32 %v2724, %v2780
    %v2789 = vmul.f32 %v2725, %v2781
    %v2790 = vmul.f32 %v2726, %v2782
    %v2791 = vmul.f32 %v2727, %v2783
    %v2792 = vmul.f32 %v2728, %v2784
    %v2793 = vmul.f32 %v2729, %v2785
    %v2795 = vlaneseq
    %v2796 = vshrl.u32 %v2795, 7
    %v2797 = vsub.s32 0, %v2796
    %v2798 = vrot.slane %v2687, %v2797
    %v2800 = vmul.f32 %v2786, %v2798
    %v2801 = vmul.f32 %v2787, %v2798
    %v2802 = vmul.f32 %v2788, %v2798
    %v2803 = vmul.f32 %v2789, %v2798
    %v2804 = vmul.f32 %v2790, %v2798
    %v2805 = vmul.f32 %v2791, %v2798
    %v2806 = vmul.f32 %v2792, %v2798
    %v2807 = vmul.f32 %v2793, %v2798
    %v2809 = vlaneseq
    %v2810 = vshrl.u32 %v2809, 7
    %v2811 = vsub.s32 0, %v2810
    %v2812 = vrot.slane %v2689, %v2811
    %v2814 = vadd.f32 %v2800, %v2812
    %v2815 = vadd.f32 %v2801, %v2812
    %v2816 = vadd.f32 %v2802, %v2812
    %v2817 = vadd.f32 %v2803, %v2812
    %v2818 = vadd.f32 %v2804, %v2812
    %v2819 = vadd.f32 %v2805, %v2812
    %v2820 = vadd.f32 %v2806, %v2812
    %v2821 = vadd.f32 %v2807, %v2812
    %v2822 = vpack.c.bf16 %v2815, %v2814
    %v2823 = vpack.c.bf16 %v2817, %v2816
    %v2824 = vpack.c.bf16 %v2819, %v2818
    %v2825 = vpack.c.bf16 %v2821, %v2820
    %s2826 = scalar_lea.vmem %s5, 32
    %v2827 = vld [vmem:[%s2826] sm:$0xf]
    %v2828 = vld [vmem:[%s2826 + $0x4] sm:$0xf]
    %v2829 = vld [vmem:[%s2826 + $0x8] sm:$0xf]
    %v2830 = vld [vmem:[%s2826 + $0xc] sm:$0xf]
    %v2831 = vld [vmem:[%s2826 + $0x10] sm:$0xf]
    %v2832 = vld [vmem:[%s2826 + $0x14] sm:$0xf]
    %v2833 = vld [vmem:[%s2826 + $0x18] sm:$0xf]
    %v2834 = vld [vmem:[%s2826 + $0x1c] sm:$0xf]
    %s2835 = scalar_lea.vmem [#allocation7], 7
    %v2836 = vld [vmem:[%s2835] sm:$0x1]
    %v2838 = vlaneseq
    %v2839 = vshrl.u32 %v2838, 7
    %v2840 = vsub.s32 0, %v2839
    %v2841 = vrot.slane %v2836, %v2840
    %v2851 = vunpack.c.l.b16 %v2827
    %v2852 = vunpack.c.l.b16 %v2828
    %v2853 = vunpack.c.l.b16 %v2829
    %v2854 = vunpack.c.l.b16 %v2830
    %v2855 = vunpack.c.l.b16 %v2831
    %v2856 = vunpack.c.l.b16 %v2832
    %v2857 = vunpack.c.l.b16 %v2833
    %v2858 = vunpack.c.l.b16 %v2834
    %v2859 = vpack.c.b16 %v2852, %v2851
    %v2860 = vpack.c.b16 %v2854, %v2853
    %v2861 = vpack.c.b16 %v2856, %v2855
    %v2862 = vpack.c.b16 %v2858, %v2857
    %v2868 = vsel %vm288, %v2822, 0
    %v2871 = vsel %vm288, %v2823, 0
    %v2874 = vsel %vm288, %v2824, 0
    %v2877 = vsel %vm288, %v2825, 0
    %2879 = vmatprep.subr.bf16.mxu0 0
    %2880 = vmatpush1.bf16.msra.mxu0 %v2859
    %2881 = vmatprep.subr.bf16.mxu0 0
    %2882 = vmatpush1.bf16.msra.mxu0 %v2860
    %2883 = vmatprep.subr.bf16.mxu0 0
    %2884 = vmatpush1.bf16.msra.mxu0 %v2861
    %2885 = vmatprep.subr.bf16.mxu0 0
    %2886 = vmatpush1.bf16.msra.mxu0 %v2862
    %2887 = vmatprep.subr.bf16.mxu0 0
    %2888 = vmatpush1.bf16.msra.mxu0 0
    %2889 = vmatprep.subr.bf16.mxu0 0
    %2890 = vmatpush1.bf16.msra.mxu0 0
    %2891 = vmatprep.subr.bf16.mxu0 0
    %2892 = vmatpush1.bf16.msra.mxu0 0
    %2893 = vmatprep.subr.bf16.mxu0 0
    %2894 = vmatpush1.bf16.msra.mxu0 0
    %2895 = vmatprep.subr.bf16.mxu0 0
    %2896 = vmatpush1.bf16.msra.mxu0 0
    %2897 = vmatprep.subr.bf16.mxu0 0
    %2898 = vmatpush1.bf16.msra.mxu0 0
    %2899 = vmatprep.subr.bf16.mxu0 0
    %2900 = vmatpush1.bf16.msra.mxu0 0
    %2901 = vmatprep.subr.bf16.mxu0 0
    %2902 = vmatpush1.bf16.msra.mxu0 0
    %2903 = vmatprep.subr.bf16.mxu0 0
    %2904 = vmatpush1.bf16.msra.mxu0 0
    %2905 = vmatprep.subr.bf16.mxu0 0
    %2906 = vmatpush1.bf16.msra.mxu0 0
    %2907 = vmatprep.subr.bf16.mxu0 0
    %2908 = vmatpush1.bf16.msra.mxu0 0
    %2909 = vmatprep.subr.bf16.mxu0 0
    %2910 = vmatpush1.bf16.msra.mxu0 0
    %2911 = vmatprep.mubr.bf16.mxu0 0
    %2912 = vmatmul.mubr.bf16.gmra.mrb[0].mxu0 %v2868
    %v2913 = vpop.f32.mrb[0].mxu0
    %v2914 = vadd.f32 %v2841, %v2913
    %v2915 = vpop.f32.mrb[0].mxu0
    %v2916 = vpop.f32.mrb[0].mxu0
    %v2917 = vadd.f32 %v2841, %v2916
    %v2918 = vpop.f32.mrb[0].mxu0
    %2919 = vmatprep.mubr.bf16.mxu0 0
    %2920 = vmatmul.mubr.bf16.gmra.mrb[0].mxu0 %v2871
    %v2921 = vpop.f32.mrb[0].mxu0
    %v2922 = vadd.f32 %v2841, %v2921
    %v2923 = vpop.f32.mrb[0].mxu0
    %v2924 = vpop.f32.mrb[0].mxu0
    %v2925 = vadd.f32 %v2841, %v2924
    %v2926 = vpop.f32.mrb[0].mxu0
    %2927 = vmatprep.mubr.bf16.mxu0 0
    %2928 = vmatmul.mubr.bf16.gmra.mrb[0].mxu0 %v2874
    %v2929 = vpop.f32.mrb[0].mxu0
    %v2930 = vadd.f32 %v2841, %v2929
    %v2931 = vpop.f32.mrb[0].mxu0
    %v2932 = vpop.f32.mrb[0].mxu0
    %v2933 = vadd.f32 %v2841, %v2932
    %v2934 = vpop.f32.mrb[0].mxu0
    %2935 = vmatprep.mubr.bf16.mxu0 0
    %2936 = vmatmul.mubr.bf16.gmra.mrb[0].mxu0 %v2877
    %v2937 = vpop.f32.mrb[0].mxu0
    %v2938 = vadd.f32 %v2841, %v2937
    %v2939 = vpop.f32.mrb[0].mxu0
    %v2940 = vpop.f32.mrb[0].mxu0
    %v2941 = vadd.f32 %v2841, %v2940
    %v2942 = vpop.f32.mrb[0].mxu0
    %2943 = vdwg.mxu0
    %2944 = vxpose.xlu0.b32.start [1/16] %v2914, 128
    %2945 = vxpose.xlu0.b32.cont [2/16] %v2917, 128
    %2946 = vxpose.xlu0.b32.cont [3/16] %v2922, 128
    %2947 = vxpose.xlu0.b32.cont [4/16] %v2925, 128
    %2948 = vxpose.xlu0.b32.cont [5/16] %v2930, 128
    %2949 = vxpose.xlu0.b32.cont [6/16] %v2933, 128
    %2950 = vxpose.xlu0.b32.cont [7/16] %v2938, 128
    %2951 = vxpose.xlu0.b32.cont [8/16] %v2941, 128
    %2952 = vxpose.xlu0.b32.cont [9/16] 0.0, 128
    %2953 = vxpose.xlu0.b32.cont [10/16] 0.0, 128
    %2954 = vxpose.xlu0.b32.cont [11/16] 0.0, 128
    %2955 = vxpose.xlu0.b32.cont [12/16] 0.0, 128
    %2956 = vxpose.xlu0.b32.cont [13/16] 0.0, 128
    %2957 = vxpose.xlu0.b32.cont [14/16] 0.0, 128
    %2958 = vxpose.xlu0.b32.cont [15/16] 0.0, 128
    %2959 = vxpose.xlu0.b32.end [16/16] 0.0, 128
    %v2960 = vpop.trf.xlu0
    %v2961 = vpop.trf.xlu0
    %v2962 = vpop.trf.xlu0
    %v2963 = vpop.trf.xlu0
    %v2964 = vpop.trf.xlu0
    %v2965 = vpop.trf.xlu0
    %v2966 = vpop.trf.xlu0
    %v2967 = vpop.trf.xlu0
    %v2968 = vpop.trf.xlu0
    %v2969 = vpop.trf.xlu0
    %v2970 = vpop.trf.xlu0
    %v2971 = vpop.trf.xlu0
    %v2972 = vpop.trf.xlu0
    %v2973 = vpop.trf.xlu0
    %v2974 = vpop.trf.xlu0
    %v2975 = vpop.trf.xlu0
    %v2976 = vpack.c.bf16 %v2961, %v2960
    %v2977 = vpack.c.bf16 %v2963, %v2962
    %v2978 = vpack.c.bf16 %v2965, %v2964
    %v2979 = vpack.c.bf16 %v2967, %v2966
    %s2980 = scalar_lea.vmem %s3, 128
    %v2981 = vld [vmem:[%s2980] sm:$0xf]
    %v2982 = vld [vmem:[%s2980 + $0x4] sm:$0xf]
    %v2983 = vld [vmem:[%s2980 + $0x8] sm:$0xf]
    %v2984 = vld [vmem:[%s2980 + $0xc] sm:$0xf]
    %v2985 = vld [vmem:[%s2980 + $0x10] sm:$0xf]
    %v2986 = vld [vmem:[%s2980 + $0x14] sm:$0xf]
    %v2987 = vld [vmem:[%s2980 + $0x18] sm:$0xf]
    %v2988 = vld [vmem:[%s2980 + $0x1c] sm:$0xf]
    %s2989 = scalar_lea.vmem [#allocation5], 4
    %v2990 = vld [vmem:[%s2989] sm:$0x1]
    %v2992 = vlaneseq
    %v2993 = vshrl.u32 %v2992, 7
    %v2994 = vsub.s32 0, %v2993
    %v2995 = vrot.slane %v2990, %v2994
    %v3005 = vunpack.c.l.b16 %v2981
    %v3006 = vunpack.c.l.b16 %v2982
    %v3007 = vunpack.c.l.b16 %v2983
    %v3008 = vunpack.c.l.b16 %v2984
    %v3009 = vunpack.c.l.b16 %v2985
    %v3010 = vunpack.c.l.b16 %v2986
    %v3011 = vunpack.c.l.b16 %v2987
    %v3012 = vunpack.c.l.b16 %v2988
    %v3013 = vpack.c.b16 %v3006, %v3005
    %v3014 = vpack.c.b16 %v3008, %v3007
    %v3015 = vpack.c.b16 %v3010, %v3009
    %v3016 = vpack.c.b16 %v3012, %v3011
    %3021 = vmatprep.subr.bf16.mxu0 0
    %3022 = vmatpush1.bf16.msra.mxu0 %v3013
    %3023 = vmatprep.subr.bf16.mxu0 0
    %3024 = vmatpush1.bf16.msra.mxu0 %v3014
    %3025 = vmatprep.subr.bf16.mxu0 0
    %3026 = vmatpush1.bf16.msra.mxu0 %v3015
    %3027 = vmatprep.subr.bf16.mxu0 0
    %3028 = vmatpush1.bf16.msra.mxu0 %v3016
    %3029 = vmatprep.subr.bf16.mxu0 0
    %3030 = vmatpush1.bf16.msra.mxu0 0
    %3031 = vmatprep.subr.bf16.mxu0 0
    %3032 = vmatpush1.bf16.msra.mxu0 0
    %3033 = vmatprep.subr.bf16.mxu0 0
    %3034 = vmatpush1.bf16.msra.mxu0 0
    %3035 = vmatprep.subr.bf16.mxu0 0
    %3036 = vmatpush1.bf16.msra.mxu0 0
    %3037 = vmatprep.subr.bf16.mxu0 0
    %3038 = vmatpush1.bf16.msra.mxu0 0
    %3039 = vmatprep.subr.bf16.mxu0 0
    %3040 = vmatpush1.bf16.msra.mxu0 0
    %3041 = vmatprep.subr.bf16.mxu0 0
    %3042 = vmatpush1.bf16.msra.mxu0 0
    %3043 = vmatprep.subr.bf16.mxu0 0
    %3044 = vmatpush1.bf16.msra.mxu0 0
    %3045 = vmatprep.subr.bf16.mxu0 0
    %3046 = vmatpush1.bf16.msra.mxu0 0
    %3047 = vmatprep.subr.bf16.mxu0 0
    %3048 = vmatpush1.bf16.msra.mxu0 0
    %3049 = vmatprep.subr.bf16.mxu0 0
    %3050 = vmatpush1.bf16.msra.mxu0 0
    %3051 = vmatprep.subr.bf16.mxu0 0
    %3052 = vmatpush1.bf16.msra.mxu0 0
    %3053 = vmatprep.mubr.bf16.mxu0 0
    %3054 = vmatmul.mubr.bf16.gmra.mrb[0].mxu0 %v2868
    %v3055 = vpop.f32.mrb[0].mxu0
    %v3056 = vadd.f32 %v2995, %v3055
    %v3057 = vpop.f32.mrb[0].mxu0
    %v3058 = vpop.f32.mrb[0].mxu0
    %v3059 = vadd.f32 %v2995, %v3058
    %v3060 = vpop.f32.mrb[0].mxu0
    %3061 = vmatprep.mubr.bf16.mxu0 0
    %3062 = vmatmul.mubr.bf16.gmra.mrb[0].mxu0 %v2871
    %v3063 = vpop.f32.mrb[0].mxu0
    %v3064 = vadd.f32 %v2995, %v3063
    %v3065 = vpop.f32.mrb[0].mxu0
    %v3066 = vpop.f32.mrb[0].mxu0
    %v3067 = vadd.f32 %v2995, %v3066
    %v3068 = vpop.f32.mrb[0].mxu0
    %3069 = vmatprep.mubr.bf16.mxu0 0
    %3070 = vmatmul.mubr.bf16.gmra.mrb[0].mxu0 %v2874
    %v3071 = vpop.f32.mrb[0].mxu0
    %v3072 = vadd.f32 %v2995, %v3071
    %v3073 = vpop.f32.mrb[0].mxu0
    %v3074 = vpop.f32.mrb[0].mxu0
    %v3075 = vadd.f32 %v2995, %v3074
    %v3076 = vpop.f32.mrb[0].mxu0
    %3077 = vmatprep.mubr.bf16.mxu0 0
    %3078 = vmatmul.mubr.bf16.gmra.mrb[0].mxu0 %v2877
    %v3079 = vpop.f32.mrb[0].mxu0
    %v3080 = vadd.f32 %v2995, %v3079
    %v3081 = vpop.f32.mrb[0].mxu0
    %v3082 = vpop.f32.mrb[0].mxu0
    %v3083 = vadd.f32 %v2995, %v3082
    %v3084 = vpop.f32.mrb[0].mxu0
    %3085 = vdwg.mxu0
    %v3086 = vpack.c.bf16 %v3059, %v3056
    %v3087 = vpack.c.bf16 %v3067, %v3064
    %v3088 = vpack.c.bf16 %v3075, %v3072
    %v3089 = vpack.c.bf16 %v3083, %v3080
    %v3091 = vsel %vm510, %v3086, 0
    %v3094 = vsel %vm510, %v3087, 0
    %v3097 = vsel %vm510, %v3088, 0
    %v3100 = vsel %vm510, %v3089, 0
    %3102 = vmatprep.subr.bf16.mxu0 0
    %3103 = vmatpush1.bf16.msra.mxu0 %v2976
    %3104 = vmatprep.subr.bf16.mxu0 0
    %3105 = vmatpush1.bf16.msra.mxu0 0
    %3106 = vmatprep.subr.bf16.mxu0 0
    %3107 = vmatpush1.bf16.msra.mxu0 0
    %3108 = vmatprep.subr.bf16.mxu0 0
    %3109 = vmatpush1.bf16.msra.mxu0 0
    %3110 = vmatprep.subr.bf16.mxu0 0
    %3111 = vmatpush1.bf16.msra.mxu0 0
    %3112 = vmatprep.subr.bf16.mxu0 0
    %3113 = vmatpush1.bf16.msra.mxu0 0
    %3114 = vmatprep.subr.bf16.mxu0 0
    %3115 = vmatpush1.bf16.msra.mxu0 0
    %3116 = vmatprep.subr.bf16.mxu0 0
    %3117 = vmatpush1.bf16.msra.mxu0 0
    %3118 = vmatprep.subr.bf16.mxu0 0
    %3119 = vmatpush1.bf16.msra.mxu0 0
    %3120 = vmatprep.subr.bf16.mxu0 0
    %3121 = vmatpush1.bf16.msra.mxu0 0
    %3122 = vmatprep.subr.bf16.mxu0 0
    %3123 = vmatpush1.bf16.msra.mxu0 0
    %3124 = vmatprep.subr.bf16.mxu0 0
    %3125 = vmatpush1.bf16.msra.mxu0 0
    %3126 = vmatprep.subr.bf16.mxu0 0
    %3127 = vmatpush1.bf16.msra.mxu0 0
    %3128 = vmatprep.subr.bf16.mxu0 0
    %3129 = vmatpush1.bf16.msra.mxu0 0
    %3130 = vmatprep.subr.bf16.mxu0 0
    %3131 = vmatpush1.bf16.msra.mxu0 0
    %3132 = vmatprep.subr.bf16.mxu0 0
    %3133 = vmatpush1.bf16.msra.mxu0 0
    %3134 = vmatprep.mubr.bf16.mxu0 0
    %3135 = vmatmul.mubr.bf16.gmra.mrb[0].mxu0 %v3091
    %v3136 = vpop.f32.mrb[0].mxu0
    %v3137 = vadd.f32 %v237, %v3136
    %v3138 = vpop.f32.mrb[0].mxu0
    %v3139 = vpop.f32.mrb[0].mxu0
    %v3140 = vadd.f32 %v238, %v3139
    %v3141 = vpop.f32.mrb[0].mxu0
    %3142 = vmatprep.mubr.bf16.mxu0 0
    %3143 = vmatmul.mubr.bf16.gmra.mrb[0].mxu0 %v3094
    %v3144 = vpop.f32.mrb[0].mxu0
    %v3145 = vadd.f32 %v239, %v3144
    %v3146 = vpop.f32.mrb[0].mxu0
    %v3147 = vpop.f32.mrb[0].mxu0
    %v3148 = vadd.f32 %v240, %v3147
    %v3149 = vpop.f32.mrb[0].mxu0
    %3150 = vmatprep.mubr.bf16.mxu0 0
    %3151 = vmatmul.mubr.bf16.gmra.mrb[0].mxu0 %v3097
    %v3152 = vpop.f32.mrb[0].mxu0
    %v3153 = vadd.f32 %v241, %v3152
    %v3154 = vpop.f32.mrb[0].mxu0
    %v3155 = vpop.f32.mrb[0].mxu0
    %v3156 = vadd.f32 %v242, %v3155
    %v3157 = vpop.f32.mrb[0].mxu0
    %3158 = vmatprep.mubr.bf16.mxu0 0
    %3159 = vmatmul.mubr.bf16.gmra.mrb[0].mxu0 %v3100
    %v3160 = vpop.f32.mrb[0].mxu0
    %v3161 = vadd.f32 %v243, %v3160
    %v3162 = vpop.f32.mrb[0].mxu0
    %v3163 = vpop.f32.mrb[0].mxu0
    %v3164 = vadd.f32 %v244, %v3163
    %v3165 = vpop.f32.mrb[0].mxu0
    %3166 = vdwg.mxu0
    %v3167 = vsel %vm288, %v3137, -inf
    %3168 = vmax.xlane.f32.xlu0 %v3167
    %v3169 = vpop.xlane.xlu0 %3168
    %v3170 = vsel %vm288, %v3140, -inf
    %3171 = vmax.xlane.f32.xlu0 %v3170
    %v3172 = vpop.xlane.xlu0 %3171
    %v3173 = vsel %vm288, %v3145, -inf
    %3174 = vmax.xlane.f32.xlu0 %v3173
    %v3175 = vpop.xlane.xlu0 %3174
    %v3176 = vsel %vm288, %v3148, -inf
    %3177 = vmax.xlane.f32.xlu0 %v3176
    %v3178 = vpop.xlane.xlu0 %3177
    %v3179 = vsel %vm288, %v3153, -inf
    %3180 = vmax.xlane.f32.xlu0 %v3179
    %v3181 = vpop.xlane.xlu0 %3180
    %v3182 = vsel %vm288, %v3156, -inf
    %3183 = vmax.xlane.f32.xlu0 %v3182
    %v3184 = vpop.xlane.xlu0 %3183
    %v3185 = vsel %vm288, %v3161, -inf
    %3186 = vmax.xlane.f32.xlu0 %v3185
    %v3187 = vpop.xlane.xlu0 %3186
    %v3188 = vsel %vm288, %v3164, -inf
    %3189 = vmax.xlane.f32.xlu0 %v3188
    %v3190 = vpop.xlane.xlu0 %3189
    %v3191 = vsub.f32 %v3137, %v3169
    %v3192 = vsub.f32 %v3140, %v3172
    %v3193 = vsub.f32 %v3145, %v3175
    %v3194 = vsub.f32 %v3148, %v3178
    %v3195 = vsub.f32 %v3153, %v3181
    %v3196 = vsub.f32 %v3156, %v3184
    %v3197 = vsub.f32 %v3161, %v3187
    %v3198 = vsub.f32 %v3164, %v3190
    %v3199 = vmul.f32 %v3191, 1.442695
    %v3200 = vpow.pop %v3199
    %v3201 = vmul.f32 %v3192, 1.442695
    %v3202 = vpow.pop %v3201
    %v3203 = vmul.f32 %v3193, 1.442695
    %v3204 = vpow.pop %v3203
    %v3205 = vmul.f32 %v3194, 1.442695
    %v3206 = vpow.pop %v3205
    %v3207 = vmul.f32 %v3195, 1.442695
    %v3208 = vpow.pop %v3207
    %v3209 = vmul.f32 %v3196, 1.442695
    %v3210 = vpow.pop %v3209
    %v3211 = vmul.f32 %v3197, 1.442695
    %v3212 = vpow.pop %v3211
    %v3213 = vmul.f32 %v3198, 1.442695
    %v3214 = vpow.pop %v3213
    %v3215 = vsel %vm288, %v3200, 0.0
    %3216 = vadd.xlane.f32.xlu0 %v3215
    %v3217 = vpop.xlane.xlu0 %3216
    %v3218 = vsel %vm288, %v3202, 0.0
    %3219 = vadd.xlane.f32.xlu0 %v3218
    %v3220 = vpop.xlane.xlu0 %3219
    %v3221 = vsel %vm288, %v3204, 0.0
    %3222 = vadd.xlane.f32.xlu0 %v3221
    %v3223 = vpop.xlane.xlu0 %3222
    %v3224 = vsel %vm288, %v3206, 0.0
    %3225 = vadd.xlane.f32.xlu0 %v3224
    %v3226 = vpop.xlane.xlu0 %3225
    %v3227 = vsel %vm288, %v3208, 0.0
    %3228 = vadd.xlane.f32.xlu0 %v3227
    %v3229 = vpop.xlane.xlu0 %3228
    %v3230 = vsel %vm288, %v3210, 0.0
    %3231 = vadd.xlane.f32.xlu0 %v3230
    %v3232 = vpop.xlane.xlu0 %3231
    %v3233 = vsel %vm288, %v3212, 0.0
    %3234 = vadd.xlane.f32.xlu0 %v3233
    %v3235 = vpop.xlane.xlu0 %3234
    %v3236 = vsel %vm288, %v3214, 0.0
    %3237 = vadd.xlane.f32.xlu0 %v3236
    %v3238 = vpop.xlane.xlu0 %3237
    %v3239 = vrcp.pop %v3217
    %v3240 = vrcp.pop %v3220
    %v3241 = vrcp.pop %v3223
    %v3242 = vrcp.pop %v3226
    %v3243 = vrcp.pop %v3229
    %v3244 = vrcp.pop %v3232
    %v3245 = vrcp.pop %v3235
    %v3246 = vrcp.pop %v3238
    %v3247 = vmul.f32 %v3200, %v3239
    %v3248 = vmul.f32 %v3202, %v3240
    %v3249 = vmul.f32 %v3204, %v3241
    %v3250 = vmul.f32 %v3206, %v3242
    %v3251 = vmul.f32 %v3208, %v3243
    %v3252 = vmul.f32 %v3210, %v3244
    %v3253 = vmul.f32 %v3212, %v3245
    %v3254 = vmul.f32 %v3214, %v3246
    %s3255 = scalar_lea.vmem %s6, 128
    %v3256 = vld [vmem:[%s3255] sm:$0xf]
    %v3257 = vld [vmem:[%s3255 + $0x4] sm:$0xf]
    %v3258 = vld [vmem:[%s3255 + $0x8] sm:$0xf]
    %v3259 = vld [vmem:[%s3255 + $0xc] sm:$0xf]
    %v3260 = vld [vmem:[%s3255 + $0x10] sm:$0xf]
    %v3261 = vld [vmem:[%s3255 + $0x14] sm:$0xf]
    %v3262 = vld [vmem:[%s3255 + $0x18] sm:$0xf]
    %v3263 = vld [vmem:[%s3255 + $0x1c] sm:$0xf]
    %v3272 = vunpack.c.l.b16 %v3256
    %v3273 = vunpack.c.l.b16 %v3257
    %v3274 = vunpack.c.l.b16 %v3258
    %v3275 = vunpack.c.l.b16 %v3259
    %v3276 = vunpack.c.l.b16 %v3260
    %v3277 = vunpack.c.l.b16 %v3261
    %v3278 = vunpack.c.l.b16 %v3262
    %v3279 = vunpack.c.l.b16 %v3263
    %v3280 = vpack.c.b16 %v3273, %v3272
    %v3281 = vpack.c.b16 %v3275, %v3274
    %v3282 = vpack.c.b16 %v3277, %v3276
    %v3283 = vpack.c.b16 %v3279, %v3278
    %3288 = vmatprep.subr.bf16.mxu0 0
    %3289 = vmatpush1.bf16.msra.mxu0 %v3280
    %3290 = vmatprep.subr.bf16.mxu0 0
    %3291 = vmatpush1.bf16.msra.mxu0 %v3281
    %3292 = vmatprep.subr.bf16.mxu0 0
    %3293 = vmatpush1.bf16.msra.mxu0 %v3282
    %3294 = vmatprep.subr.bf16.mxu0 0
    %3295 = vmatpush1.bf16.msra.mxu0 %v3283
    %3296 = vmatprep.subr.bf16.mxu0 0
    %3297 = vmatpush1.bf16.msra.mxu0 0
    %3298 = vmatprep.subr.bf16.mxu0 0
    %3299 = vmatpush1.bf16.msra.mxu0 0
    %3300 = vmatprep.subr.bf16.mxu0 0
    %3301 = vmatpush1.bf16.msra.mxu0 0
    %3302 = vmatprep.subr.bf16.mxu0 0
    %3303 = vmatpush1.bf16.msra.mxu0 0
    %3304 = vmatprep.subr.bf16.mxu0 0
    %3305 = vmatpush1.bf16.msra.mxu0 0
    %3306 = vmatprep.subr.bf16.mxu0 0
    %3307 = vmatpush1.bf16.msra.mxu0 0
    %3308 = vmatprep.subr.bf16.mxu0 0
    %3309 = vmatpush1.bf16.msra.mxu0 0
    %3310 = vmatprep.subr.bf16.mxu0 0
    %3311 = vmatpush1.bf16.msra.mxu0 0
    %3312 = vmatprep.subr.bf16.mxu0 0
    %3313 = vmatpush1.bf16.msra.mxu0 0
    %3314 = vmatprep.subr.bf16.mxu0 0
    %3315 = vmatpush1.bf16.msra.mxu0 0
    %3316 = vmatprep.subr.bf16.mxu0 0
    %3317 = vmatpush1.bf16.msra.mxu0 0
    %3318 = vmatprep.subr.bf16.mxu0 0
    %3319 = vmatpush1.bf16.msra.mxu0 0
    %3320 = vmatprep.mubr.bf16.mxu0 0
    %3321 = vmatmul.mubr.bf16.gmra.mrb[0].mxu0 %v2868
    %v3322 = vpop.f32.mrb[0].mxu0
    %v3323 = vadd.f32 0.0, %v3322
    %v3324 = vpop.f32.mrb[0].mxu0
    %v3325 = vpop.f32.mrb[0].mxu0
    %v3326 = vadd.f32 0.0, %v3325
    %v3327 = vpop.f32.mrb[0].mxu0
    %3328 = vmatprep.mubr.bf16.mxu0 0
    %3329 = vmatmul.mubr.bf16.gmra.mrb[0].mxu0 %v2871
    %v3330 = vpop.f32.mrb[0].mxu0
    %v3331 = vadd.f32 0.0, %v3330
    %v3332 = vpop.f32.mrb[0].mxu0
    %v3333 = vpop.f32.mrb[0].mxu0
    %v3334 = vadd.f32 0.0, %v3333
    %v3335 = vpop.f32.mrb[0].mxu0
    %3336 = vmatprep.mubr.bf16.mxu0 0
    %3337 = vmatmul.mubr.bf16.gmra.mrb[0].mxu0 %v2874
    %v3338 = vpop.f32.mrb[0].mxu0
    %v3339 = vadd.f32 0.0, %v3338
    %v3340 = vpop.f32.mrb[0].mxu0
    %v3341 = vpop.f32.mrb[0].mxu0
    %v3342 = vadd.f32 0.0, %v3341
    %v3343 = vpop.f32.mrb[0].mxu0
    %3344 = vmatprep.mubr.bf16.mxu0 0
    %3345 = vmatmul.mubr.bf16.gmra.mrb[0].mxu0 %v2877
    %v3346 = vpop.f32.mrb[0].mxu0
    %v3347 = vadd.f32 0.0, %v3346
    %v3348 = vpop.f32.mrb[0].mxu0
    %v3349 = vpop.f32.mrb[0].mxu0
    %v3350 = vadd.f32 0.0, %v3349
    %v3351 = vpop.f32.mrb[0].mxu0
    %3352 = vdwg.mxu0
    %v3353 = vpack.c.bf16 %v3248, %v3247
    %v3354 = vpack.c.bf16 %v3250, %v3249
    %v3355 = vpack.c.bf16 %v3252, %v3251
    %v3356 = vpack.c.bf16 %v3254, %v3253
    %v3357 = vpack.c.bf16 %v3326, %v3323
    %v3358 = vpack.c.bf16 %v3334, %v3331
    %v3359 = vpack.c.bf16 %v3342, %v3339
    %v3360 = vpack.c.bf16 %v3350, %v3347
    %s3361 = scalar_lea.vmem %s3, 160
    %v3362 = vld [vmem:[%s3361] sm:$0xf]
    %v3363 = vld [vmem:[%s3361 + $0x4] sm:$0xf]
    %v3364 = vld [vmem:[%s3361 + $0x8] sm:$0xf]
    %v3365 = vld [vmem:[%s3361 + $0xc] sm:$0xf]
    %v3366 = vld [vmem:[%s3361 + $0x10] sm:$0xf]
    %v3367 = vld [vmem:[%s3361 + $0x14] sm:$0xf]
    %v3368 = vld [vmem:[%s3361 + $0x18] sm:$0xf]
    %v3369 = vld [vmem:[%s3361 + $0x1c] sm:$0xf]
    %s3370 = scalar_lea.vmem [#allocation5], 5
    %v3371 = vld [vmem:[%s3370] sm:$0x1]
    %v3373 = vlaneseq
    %v3374 = vshrl.u32 %v3373, 7
    %v3375 = vsub.s32 0, %v3374
    %v3376 = vrot.slane %v3371, %v3375
    %v3386 = vunpack.c.l.b16 %v3362
    %v3387 = vunpack.c.l.b16 %v3363
    %v3388 = vunpack.c.l.b16 %v3364
    %v3389 = vunpack.c.l.b16 %v3365
    %v3390 = vunpack.c.l.b16 %v3366
    %v3391 = vunpack.c.l.b16 %v3367
    %v3392 = vunpack.c.l.b16 %v3368
    %v3393 = vunpack.c.l.b16 %v3369
    %v3394 = vpack.c.b16 %v3387, %v3386
    %v3395 = vpack.c.b16 %v3389, %v3388
    %v3396 = vpack.c.b16 %v3391, %v3390
    %v3397 = vpack.c.b16 %v3393, %v3392
    %3402 = vmatprep.subr.bf16.mxu0 0
    %3403 = vmatpush1.bf16.msra.mxu0 %v3394
    %3404 = vmatprep.subr.bf16.mxu0 0
    %3405 = vmatpush1.bf16.msra.mxu0 %v3395
    %3406 = vmatprep.subr.bf16.mxu0 0
    %3407 = vmatpush1.bf16.msra.mxu0 %v3396
    %3408 = vmatprep.subr.bf16.mxu0 0
    %3409 = vmatpush1.bf16.msra.mxu0 %v3397
    %3410 = vmatprep.subr.bf16.mxu0 0
    %3411 = vmatpush1.bf16.msra.mxu0 0
    %3412 = vmatprep.subr.bf16.mxu0 0
    %3413 = vmatpush1.bf16.msra.mxu0 0
    %3414 = vmatprep.subr.bf16.mxu0 0
    %3415 = vmatpush1.bf16.msra.mxu0 0
    %3416 = vmatprep.subr.bf16.mxu0 0
    %3417 = vmatpush1.bf16.msra.mxu0 0
    %3418 = vmatprep.subr.bf16.mxu0 0
    %3419 = vmatpush1.bf16.msra.mxu0 0
    %3420 = vmatprep.subr.bf16.mxu0 0
    %3421 = vmatpush1.bf16.msra.mxu0 0
    %3422 = vmatprep.subr.bf16.mxu0 0
    %3423 = vmatpush1.bf16.msra.mxu0 0
    %3424 = vmatprep.subr.bf16.mxu0 0
    %3425 = vmatpush1.bf16.msra.mxu0 0
    %3426 = vmatprep.subr.bf16.mxu0 0
    %3427 = vmatpush1.bf16.msra.mxu0 0
    %3428 = vmatprep.subr.bf16.mxu0 0
    %3429 = vmatpush1.bf16.msra.mxu0 0
    %3430 = vmatprep.subr.bf16.mxu0 0
    %3431 = vmatpush1.bf16.msra.mxu0 0
    %3432 = vmatprep.subr.bf16.mxu0 0
    %3433 = vmatpush1.bf16.msra.mxu0 0
    %3434 = vmatprep.mubr.bf16.mxu0 0
    %3435 = vmatmul.mubr.bf16.gmra.mrb[0].mxu0 %v2868
    %v3436 = vpop.f32.mrb[0].mxu0
    %v3437 = vadd.f32 %v3376, %v3436
    %v3438 = vpop.f32.mrb[0].mxu0
    %v3439 = vpop.f32.mrb[0].mxu0
    %v3440 = vadd.f32 %v3376, %v3439
    %v3441 = vpop.f32.mrb[0].mxu0
    %3442 = vmatprep.mubr.bf16.mxu0 0
    %3443 = vmatmul.mubr.bf16.gmra.mrb[0].mxu0 %v2871
    %v3444 = vpop.f32.mrb[0].mxu0
    %v3445 = vadd.f32 %v3376, %v3444
    %v3446 = vpop.f32.mrb[0].mxu0
    %v3447 = vpop.f32.mrb[0].mxu0
    %v3448 = vadd.f32 %v3376, %v3447
    %v3449 = vpop.f32.mrb[0].mxu0
    %3450 = vmatprep.mubr.bf16.mxu0 0
    %3451 = vmatmul.mubr.bf16.gmra.mrb[0].mxu0 %v2874
    %v3452 = vpop.f32.mrb[0].mxu0
    %v3453 = vadd.f32 %v3376, %v3452
    %v3454 = vpop.f32.mrb[0].mxu0
    %v3455 = vpop.f32.mrb[0].mxu0
    %v3456 = vadd.f32 %v3376, %v3455
    %v3457 = vpop.f32.mrb[0].mxu0
    %3458 = vmatprep.mubr.bf16.mxu0 0
    %3459 = vmatmul.mubr.bf16.gmra.mrb[0].mxu0 %v2877
    %v3460 = vpop.f32.mrb[0].mxu0
    %v3461 = vadd.f32 %v3376, %v3460
    %v3462 = vpop.f32.mrb[0].mxu0
    %v3463 = vpop.f32.mrb[0].mxu0
    %v3464 = vadd.f32 %v3376, %v3463
    %v3465 = vpop.f32.mrb[0].mxu0
    %3466 = vdwg.mxu0
    %v3467 = vpack.c.bf16 %v3440, %v3437
    %v3468 = vpack.c.bf16 %v3448, %v3445
    %v3469 = vpack.c.bf16 %v3456, %v3453
    %v3470 = vpack.c.bf16 %v3464, %v3461
    %v3472 = vsel %vm510, %v3467, 0
    %v3475 = vsel %vm510, %v3468, 0
    %v3478 = vsel %vm510, %v3469, 0
    %v3481 = vsel %vm510, %v3470, 0
    %3483 = vmatprep.subr.bf16.mxu0 0
    %3484 = vmatpush1.bf16.msra.mxu0 %v2977
    %3485 = vmatprep.subr.bf16.mxu0 0
    %3486 = vmatpush1.bf16.msra.mxu0 0
    %3487 = vmatprep.subr.bf16.mxu0 0
    %3488 = vmatpush1.bf16.msra.mxu0 0
    %3489 = vmatprep.subr.bf16.mxu0 0
    %3490 = vmatpush1.bf16.msra.mxu0 0
    %3491 = vmatprep.subr.bf16.mxu0 0
    %3492 = vmatpush1.bf16.msra.mxu0 0
    %3493 = vmatprep.subr.bf16.mxu0 0
    %3494 = vmatpush1.bf16.msra.mxu0 0
    %3495 = vmatprep.subr.bf16.mxu0 0
    %3496 = vmatpush1.bf16.msra.mxu0 0
    %3497 = vmatprep.subr.bf16.mxu0 0
    %3498 = vmatpush1.bf16.msra.mxu0 0
    %3499 = vmatprep.subr.bf16.mxu0 0
    %3500 = vmatpush1.bf16.msra.mxu0 0
    %3501 = vmatprep.subr.bf16.mxu0 0
    %3502 = vmatpush1.bf16.msra.mxu0 0
    %3503 = vmatprep.subr.bf16.mxu0 0
    %3504 = vmatpush1.bf16.msra.mxu0 0
    %3505 = vmatprep.subr.bf16.mxu0 0
    %3506 = vmatpush1.bf16.msra.mxu0 0
    %3507 = vmatprep.subr.bf16.mxu0 0
    %3508 = vmatpush1.bf16.msra.mxu0 0
    %3509 = vmatprep.subr.bf16.mxu0 0
    %3510 = vmatpush1.bf16.msra.mxu0 0
    %3511 = vmatprep.subr.bf16.mxu0 0
    %3512 = vmatpush1.bf16.msra.mxu0 0
    %3513 = vmatprep.subr.bf16.mxu0 0
    %3514 = vmatpush1.bf16.msra.mxu0 0
    %3515 = vmatprep.mubr.bf16.mxu0 0
    %3516 = vmatmul.mubr.bf16.gmra.mrb[0].mxu0 %v3472
    %v3517 = vpop.f32.mrb[0].mxu0
    %v3518 = vadd.f32 %v237, %v3517
    %v3519 = vpop.f32.mrb[0].mxu0
    %v3520 = vpop.f32.mrb[0].mxu0
    %v3521 = vadd.f32 %v238, %v3520
    %v3522 = vpop.f32.mrb[0].mxu0
    %3523 = vmatprep.mubr.bf16.mxu0 0
    %3524 = vmatmul.mubr.bf16.gmra.mrb[0].mxu0 %v3475
    %v3525 = vpop.f32.mrb[0].mxu0
    %v3526 = vadd.f32 %v239, %v3525
    %v3527 = vpop.f32.mrb[0].mxu0
    %v3528 = vpop.f32.mrb[0].mxu0
    %v3529 = vadd.f32 %v240, %v3528
    %v3530 = vpop.f32.mrb[0].mxu0
    %3531 = vmatprep.mubr.bf16.mxu0 0
    %3532 = vmatmul.mubr.bf16.gmra.mrb[0].mxu0 %v3478
    %v3533 = vpop.f32.mrb[0].mxu0
    %v3534 = vadd.f32 %v241, %v3533
    %v3535 = vpop.f32.mrb[0].mxu0
    %v3536 = vpop.f32.mrb[0].mxu0
    %v3537 = vadd.f32 %v242, %v3536
    %v3538 = vpop.f32.mrb[0].mxu0
    %3539 = vmatprep.mubr.bf16.mxu0 0
    %3540 = vmatmul.mubr.bf16.gmra.mrb[0].mxu0 %v3481
    %v3541 = vpop.f32.mrb[0].mxu0
    %v3542 = vadd.f32 %v243, %v3541
    %v3543 = vpop.f32.mrb[0].mxu0
    %v3544 = vpop.f32.mrb[0].mxu0
    %v3545 = vadd.f32 %v244, %v3544
    %v3546 = vpop.f32.mrb[0].mxu0
    %3547 = vdwg.mxu0
    %v3548 = vsel %vm288, %v3518, -inf
    %3549 = vmax.xlane.f32.xlu0 %v3548
    %v3550 = vpop.xlane.xlu0 %3549
    %v3551 = vsel %vm288, %v3521, -inf
    %3552 = vmax.xlane.f32.xlu0 %v3551
    %v3553 = vpop.xlane.xlu0 %3552
    %v3554 = vsel %vm288, %v3526, -inf
    %3555 = vmax.xlane.f32.xlu0 %v3554
    %v3556 = vpop.xlane.xlu0 %3555
    %v3557 = vsel %vm288, %v3529, -inf
    %3558 = vmax.xlane.f32.xlu0 %v3557
    %v3559 = vpop.xlane.xlu0 %3558
    %v3560 = vsel %vm288, %v3534, -inf
    %3561 = vmax.xlane.f32.xlu0 %v3560
    %v3562 = vpop.xlane.xlu0 %3561
    %v3563 = vsel %vm288, %v3537, -inf
    %3564 = vmax.xlane.f32.xlu0 %v3563
    %v3565 = vpop.xlane.xlu0 %3564
    %v3566 = vsel %vm288, %v3542, -inf
    %3567 = vmax.xlane.f32.xlu0 %v3566
    %v3568 = vpop.xlane.xlu0 %3567
    %v3569 = vsel %vm288, %v3545, -inf
    %3570 = vmax.xlane.f32.xlu0 %v3569
    %v3571 = vpop.xlane.xlu0 %3570
    %v3572 = vsub.f32 %v3518, %v3550
    %v3573 = vsub.f32 %v3521, %v3553
    %v3574 = vsub.f32 %v3526, %v3556
    %v3575 = vsub.f32 %v3529, %v3559
    %v3576 = vsub.f32 %v3534, %v3562
    %v3577 = vsub.f32 %v3537, %v3565
    %v3578 = vsub.f32 %v3542, %v3568
    %v3579 = vsub.f32 %v3545, %v3571
    %v3580 = vmul.f32 %v3572, 1.442695
    %v3581 = vpow.pop %v3580
    %v3582 = vmul.f32 %v3573, 1.442695
    %v3583 = vpow.pop %v3582
    %v3584 = vmul.f32 %v3574, 1.442695
    %v3585 = vpow.pop %v3584
    %v3586 = vmul.f32 %v3575, 1.442695
    %v3587 = vpow.pop %v3586
    %v3588 = vmul.f32 %v3576, 1.442695
    %v3589 = vpow.pop %v3588
    %v3590 = vmul.f32 %v3577, 1.442695
    %v3591 = vpow.pop %v3590
    %v3592 = vmul.f32 %v3578, 1.442695
    %v3593 = vpow.pop %v3592
    %v3594 = vmul.f32 %v3579, 1.442695
    %v3595 = vpow.pop %v3594
    %v3596 = vsel %vm288, %v3581, 0.0
    %3597 = vadd.xlane.f32.xlu0 %v3596
    %v3598 = vpop.xlane.xlu0 %3597
    %v3599 = vsel %vm288, %v3583, 0.0
    %3600 = vadd.xlane.f32.xlu0 %v3599
    %v3601 = vpop.xlane.xlu0 %3600
    %v3602 = vsel %vm288, %v3585, 0.0
    %3603 = vadd.xlane.f32.xlu0 %v3602
    %v3604 = vpop.xlane.xlu0 %3603
    %v3605 = vsel %vm288, %v3587, 0.0
    %3606 = vadd.xlane.f32.xlu0 %v3605
    %v3607 = vpop.xlane.xlu0 %3606
    %v3608 = vsel %vm288, %v3589, 0.0
    %3609 = vadd.xlane.f32.xlu0 %v3608
    %v3610 = vpop.xlane.xlu0 %3609
    %v3611 = vsel %vm288, %v3591, 0.0
    %3612 = vadd.xlane.f32.xlu0 %v3611
    %v3613 = vpop.xlane.xlu0 %3612
    %v3614 = vsel %vm288, %v3593, 0.0
    %3615 = vadd.xlane.f32.xlu0 %v3614
    %v3616 = vpop.xlane.xlu0 %3615
    %v3617 = vsel %vm288, %v3595, 0.0
    %3618 = vadd.xlane.f32.xlu0 %v3617
    %v3619 = vpop.xlane.xlu0 %3618
    %v3620 = vrcp.pop %v3598
    %v3621 = vrcp.pop %v3601
    %v3622 = vrcp.pop %v3604
    %v3623 = vrcp.pop %v3607
    %v3624 = vrcp.pop %v3610
    %v3625 = vrcp.pop %v3613
    %v3626 = vrcp.pop %v3616
    %v3627 = vrcp.pop %v3619
    %v3628 = vmul.f32 %v3581, %v3620
    %v3629 = vmul.f32 %v3583, %v3621
    %v3630 = vmul.f32 %v3585, %v3622
    %v3631 = vmul.f32 %v3587, %v3623
    %v3632 = vmul.f32 %v3589, %v3624
    %v3633 = vmul.f32 %v3591, %v3625
    %v3634 = vmul.f32 %v3593, %v3626
    %v3635 = vmul.f32 %v3595, %v3627
    %s3636 = scalar_lea.vmem %s6, 160
    %v3637 = vld [vmem:[%s3636] sm:$0xf]
    %v3638 = vld [vmem:[%s3636 + $0x4] sm:$0xf]
    %v3639 = vld [vmem:[%s3636 + $0x8] sm:$0xf]
    %v3640 = vld [vmem:[%s3636 + $0xc] sm:$0xf]
    %v3641 = vld [vmem:[%s3636 + $0x10] sm:$0xf]
    %v3642 = vld [vmem:[%s3636 + $0x14] sm:$0xf]
    %v3643 = vld [vmem:[%s3636 + $0x18] sm:$0xf]
    %v3644 = vld [vmem:[%s3636 + $0x1c] sm:$0xf]
    %v3653 = vunpack.c.l.b16 %v3637
    %v3654 = vunpack.c.l.b16 %v3638
    %v3655 = vunpack.c.l.b16 %v3639
    %v3656 = vunpack.c.l.b16 %v3640
    %v3657 = vunpack.c.l.b16 %v3641
    %v3658 = vunpack.c.l.b16 %v3642
    %v3659 = vunpack.c.l.b16 %v3643
    %v3660 = vunpack.c.l.b16 %v3644
    %v3661 = vpack.c.b16 %v3654, %v3653
    %v3662 = vpack.c.b16 %v3656, %v3655
    %v3663 = vpack.c.b16 %v3658, %v3657
    %v3664 = vpack.c.b16 %v3660, %v3659
    %3669 = vmatprep.subr.bf16.mxu0 0
    %3670 = vmatpush1.bf16.msra.mxu0 %v3661
    %3671 = vmatprep.subr.bf16.mxu0 0
    %3672 = vmatpush1.bf16.msra.mxu0 %v3662
    %3673 = vmatprep.subr.bf16.mxu0 0
    %3674 = vmatpush1.bf16.msra.mxu0 %v3663
    %3675 = vmatprep.subr.bf16.mxu0 0
    %3676 = vmatpush1.bf16.msra.mxu0 %v3664
    %3677 = vmatprep.subr.bf16.mxu0 0
    %3678 = vmatpush1.bf16.msra.mxu0 0
    %3679 = vmatprep.subr.bf16.mxu0 0
    %3680 = vmatpush1.bf16.msra.mxu0 0
    %3681 = vmatprep.subr.bf16.mxu0 0
    %3682 = vmatpush1.bf16.msra.mxu0 0
    %3683 = vmatprep.subr.bf16.mxu0 0
    %3684 = vmatpush1.bf16.msra.mxu0 0
    %3685 = vmatprep.subr.bf16.mxu0 0
    %3686 = vmatpush1.bf16.msra.mxu0 0
    %3687 = vmatprep.subr.bf16.mxu0 0
    %3688 = vmatpush1.bf16.msra.mxu0 0
    %3689 = vmatprep.subr.bf16.mxu0 0
    %3690 = vmatpush1.bf16.msra.mxu0 0
    %3691 = vmatprep.subr.bf16.mxu0 0
    %3692 = vmatpush1.bf16.msra.mxu0 0
    %3693 = vmatprep.subr.bf16.mxu0 0
    %3694 = vmatpush1.bf16.msra.mxu0 0
    %3695 = vmatprep.subr.bf16.mxu0 0
    %3696 = vmatpush1.bf16.msra.mxu0 0
    %3697 = vmatprep.subr.bf16.mxu0 0
    %3698 = vmatpush1.bf16.msra.mxu0 0
    %3699 = vmatprep.subr.bf16.mxu0 0
    %3700 = vmatpush1.bf16.msra.mxu0 0
    %3701 = vmatprep.mubr.bf16.mxu0 0
    %3702 = vmatmul.mubr.bf16.gmra.mrb[0].mxu0 %v2868
    %v3703 = vpop.f32.mrb[0].mxu0
    %v3704 = vadd.f32 0.0, %v3703
    %v3705 = vpop.f32.mrb[0].mxu0
    %v3706 = vpop.f32.mrb[0].mxu0
    %v3707 = vadd.f32 0.0, %v3706
    %v3708 = vpop.f32.mrb[0].mxu0
    %3709 = vmatprep.mubr.bf16.mxu0 0
    %3710 = vmatmul.mubr.bf16.gmra.mrb[0].mxu0 %v2871
    %v3711 = vpop.f32.mrb[0].mxu0
    %v3712 = vadd.f32 0.0, %v3711
    %v3713 = vpop.f32.mrb[0].mxu0
    %v3714 = vpop.f32.mrb[0].mxu0
    %v3715 = vadd.f32 0.0, %v3714
    %v3716 = vpop.f32.mrb[0].mxu0
    %3717 = vmatprep.mubr.bf16.mxu0 0
    %3718 = vmatmul.mubr.bf16.gmra.mrb[0].mxu0 %v2874
    %v3719 = vpop.f32.mrb[0].mxu0
    %v3720 = vadd.f32 0.0, %v3719
    %v3721 = vpop.f32.mrb[0].mxu0
    %v3722 = vpop.f32.mrb[0].mxu0
    %v3723 = vadd.f32 0.0, %v3722
    %v3724 = vpop.f32.mrb[0].mxu0
    %3725 = vmatprep.mubr.bf16.mxu0 0
    %3726 = vmatmul.mubr.bf16.gmra.mrb[0].mxu0 %v2877
    %v3727 = vpop.f32.mrb[0].mxu0
    %v3728 = vadd.f32 0.0, %v3727
    %v3729 = vpop.f32.mrb[0].mxu0
    %v3730 = vpop.f32.mrb[0].mxu0
    %v3731 = vadd.f32 0.0, %v3730
    %v3732 = vpop.f32.mrb[0].mxu0
    %3733 = vdwg.mxu0
    %v3734 = vpack.c.bf16 %v3629, %v3628
    %v3735 = vpack.c.bf16 %v3631, %v3630
    %v3736 = vpack.c.bf16 %v3633, %v3632
    %v3737 = vpack.c.bf16 %v3635, %v3634
    %v3738 = vpack.c.bf16 %v3707, %v3704
    %v3739 = vpack.c.bf16 %v3715, %v3712
    %v3740 = vpack.c.bf16 %v3723, %v3720
    %v3741 = vpack.c.bf16 %v3731, %v3728
    %v3743 = vsel %vm288, %v3734, 0
    %v3746 = vsel %vm288, %v3735, 0
    %v3749 = vsel %vm288, %v3736, 0
    %v3752 = vsel %vm288, %v3737, 0
    %3754 = vmatprep.subr.bf16.mxu0 0
    %3755 = vmatpush1.bf16.msra.mxu0 %v3738
    %3756 = vmatprep.subr.bf16.mxu0 0
    %3757 = vmatpush1.bf16.msra.mxu0 %v3739
    %3758 = vmatprep.subr.bf16.mxu0 0
    %3759 = vmatpush1.bf16.msra.mxu0 %v3740
    %3760 = vmatprep.subr.bf16.mxu0 0
    %3761 = vmatpush1.bf16.msra.mxu0 %v3741
    %3762 = vmatprep.subr.bf16.mxu0 0
    %3763 = vmatpush1.bf16.msra.mxu0 0
    %3764 = vmatprep.subr.bf16.mxu0 0
    %3765 = vmatpush1.bf16.msra.mxu0 0
    %3766 = vmatprep.subr.bf16.mxu0 0
    %3767 = vmatpush1.bf16.msra.mxu0 0
    %3768 = vmatprep.subr.bf16.mxu0 0
    %3769 = vmatpush1.bf16.msra.mxu0 0
    %3770 = vmatprep.subr.bf16.mxu0 0
    %3771 = vmatpush1.bf16.msra.mxu0 0
    %3772 = vmatprep.subr.bf16.mxu0 0
    %3773 = vmatpush1.bf16.msra.mxu0 0
    %3774 = vmatprep.subr.bf16.mxu0 0
    %3775 = vmatpush1.bf16.msra.mxu0 0
    %3776 = vmatprep.subr.bf16.mxu0 0
    %3777 = vmatpush1.bf16.msra.mxu0 0
    %3778 = vmatprep.subr.bf16.mxu0 0
    %3779 = vmatpush1.bf16.msra.mxu0 0
    %3780 = vmatprep.subr.bf16.mxu0 0
    %3781 = vmatpush1.bf16.msra.mxu0 0
    %3782 = vmatprep.subr.bf16.mxu0 0
    %3783 = vmatpush1.bf16.msra.mxu0 0
    %3784 = vmatprep.subr.bf16.mxu0 0
    %3785 = vmatpush1.bf16.msra.mxu0 0
    %3786 = vmatprep.mubr.bf16.mxu0 0
    %3787 = vmatmul.mubr.bf16.gmra.mrb[0].mxu0 %v3743
    %v3788 = vpop.f32.mrb[0].mxu0
    %v3789 = vadd.f32 0.0, %v3788
    %v3790 = vpop.f32.mrb[0].mxu0
    %v3791 = vpop.f32.mrb[0].mxu0
    %v3792 = vadd.f32 0.0, %v3791
    %v3793 = vpop.f32.mrb[0].mxu0
    %3794 = vmatprep.mubr.bf16.mxu0 0
    %3795 = vmatmul.mubr.bf16.gmra.mrb[0].mxu0 %v3746
    %v3796 = vpop.f32.mrb[0].mxu0
    %v3797 = vadd.f32 0.0, %v3796
    %v3798 = vpop.f32.mrb[0].mxu0
    %v3799 = vpop.f32.mrb[0].mxu0
    %v3800 = vadd.f32 0.0, %v3799
    %v3801 = vpop.f32.mrb[0].mxu0
    %3802 = vmatprep.mubr.bf16.mxu0 0
    %3803 = vmatmul.mubr.bf16.gmra.mrb[0].mxu0 %v3749
    %v3804 = vpop.f32.mrb[0].mxu0
    %v3805 = vadd.f32 0.0, %v3804
    %v3806 = vpop.f32.mrb[0].mxu0
    %v3807 = vpop.f32.mrb[0].mxu0
    %v3808 = vadd.f32 0.0, %v3807
    %v3809 = vpop.f32.mrb[0].mxu0
    %3810 = vmatprep.mubr.bf16.mxu0 0
    %3811 = vmatmul.mubr.bf16.gmra.mrb[0].mxu0 %v3752
    %v3812 = vpop.f32.mrb[0].mxu0
    %v3813 = vadd.f32 0.0, %v3812
    %v3814 = vpop.f32.mrb[0].mxu0
    %v3815 = vpop.f32.mrb[0].mxu0
    %v3816 = vadd.f32 0.0, %v3815
    %v3817 = vpop.f32.mrb[0].mxu0
    %3818 = vdwg.mxu0
    %v3820 = vsel %vm288, %v3353, 0
    %v3823 = vsel %vm288, %v3354, 0
    %v3826 = vsel %vm288, %v3355, 0
    %v3829 = vsel %vm288, %v3356, 0
    %3831 = vmatprep.subr.bf16.mxu0 0
    %3832 = vmatpush1.bf16.msra.mxu0 %v3357
    %3833 = vmatprep.subr.bf16.mxu0 0
    %3834 = vmatpush1.bf16.msra.mxu0 %v3358
    %3835 = vmatprep.subr.bf16.mxu0 0
    %3836 = vmatpush1.bf16.msra.mxu0 %v3359
    %3837 = vmatprep.subr.bf16.mxu0 0
    %3838 = vmatpush1.bf16.msra.mxu0 %v3360
    %3839 = vmatprep.subr.bf16.mxu0 0
    %3840 = vmatpush1.bf16.msra.mxu0 0
    %3841 = vmatprep.subr.bf16.mxu0 0
    %3842 = vmatpush1.bf16.msra.mxu0 0
    %3843 = vmatprep.subr.bf16.mxu0 0
    %3844 = vmatpush1.bf16.msra.mxu0 0
    %3845 = vmatprep.subr.bf16.mxu0 0
    %3846 = vmatpush1.bf16.msra.mxu0 0
    %3847 = vmatprep.subr.bf16.mxu0 0
    %3848 = vmatpush1.bf16.msra.mxu0 0
    %3849 = vmatprep.subr.bf16.mxu0 0
    %3850 = vmatpush1.bf16.msra.mxu0 0
    %3851 = vmatprep.subr.bf16.mxu0 0
    %3852 = vmatpush1.bf16.msra.mxu0 0
    %3853 = vmatprep.subr.bf16.mxu0 0
    %3854 = vmatpush1.bf16.msra.mxu0 0
    %3855 = vmatprep.subr.bf16.mxu0 0
    %3856 = vmatpush1.bf16.msra.mxu0 0
    %3857 = vmatprep.subr.bf16.mxu0 0
    %3858 = vmatpush1.bf16.msra.mxu0 0
    %3859 = vmatprep.subr.bf16.mxu0 0
    %3860 = vmatpush1.bf16.msra.mxu0 0
    %3861 = vmatprep.subr.bf16.mxu0 0
    %3862 = vmatpush1.bf16.msra.mxu0 0
    %3863 = vmatprep.mubr.bf16.mxu0 0
    %3864 = vmatmul.mubr.bf16.gmra.mrb[0].mxu0 %v3820
    %v3865 = vpop.f32.mrb[0].mxu0
    %v3866 = vadd.f32 %v3789, %v3865
    %v3867 = vpop.f32.mrb[0].mxu0
    %v3868 = vpop.f32.mrb[0].mxu0
    %v3869 = vadd.f32 %v3792, %v3868
    %v3870 = vpop.f32.mrb[0].mxu0
    %3871 = vmatprep.mubr.bf16.mxu0 0
    %3872 = vmatmul.mubr.bf16.gmra.mrb[0].mxu0 %v3823
    %v3873 = vpop.f32.mrb[0].mxu0
    %v3874 = vadd.f32 %v3797, %v3873
    %v3875 = vpop.f32.mrb[0].mxu0
    %v3876 = vpop.f32.mrb[0].mxu0
    %v3877 = vadd.f32 %v3800, %v3876
    %v3878 = vpop.f32.mrb[0].mxu0
    %3879 = vmatprep.mubr.bf16.mxu0 0
    %3880 = vmatmul.mubr.bf16.gmra.mrb[0].mxu0 %v3826
    %v3881 = vpop.f32.mrb[0].mxu0
    %v3882 = vadd.f32 %v3805, %v3881
    %v3883 = vpop.f32.mrb[0].mxu0
    %v3884 = vpop.f32.mrb[0].mxu0
    %v3885 = vadd.f32 %v3808, %v3884
    %v3886 = vpop.f32.mrb[0].mxu0
    %3887 = vmatprep.mubr.bf16.mxu0 0
    %3888 = vmatmul.mubr.bf16.gmra.mrb[0].mxu0 %v3829
    %v3889 = vpop.f32.mrb[0].mxu0
    %v3890 = vadd.f32 %v3813, %v3889
    %v3891 = vpop.f32.mrb[0].mxu0
    %v3892 = vpop.f32.mrb[0].mxu0
    %v3893 = vadd.f32 %v3816, %v3892
    %v3894 = vpop.f32.mrb[0].mxu0
    %3895 = vdwg.mxu0
    %s3896 = scalar_lea.vmem %s3, 192
    %v3897 = vld [vmem:[%s3896] sm:$0xf]
    %v3898 = vld [vmem:[%s3896 + $0x4] sm:$0xf]
    %v3899 = vld [vmem:[%s3896 + $0x8] sm:$0xf]
    %v3900 = vld [vmem:[%s3896 + $0xc] sm:$0xf]
    %v3901 = vld [vmem:[%s3896 + $0x10] sm:$0xf]
    %v3902 = vld [vmem:[%s3896 + $0x14] sm:$0xf]
    %v3903 = vld [vmem:[%s3896 + $0x18] sm:$0xf]
    %v3904 = vld [vmem:[%s3896 + $0x1c] sm:$0xf]
    %s3905 = scalar_lea.vmem [#allocation5], 6
    %v3906 = vld [vmem:[%s3905] sm:$0x1]
    %v3908 = vlaneseq
    %v3909 = vshrl.u32 %v3908, 7
    %v3910 = vsub.s32 0, %v3909
    %v3911 = vrot.slane %v3906, %v3910
    %v3921 = vunpack.c.l.b16 %v3897
    %v3922 = vunpack.c.l.b16 %v3898
    %v3923 = vunpack.c.l.b16 %v3899
    %v3924 = vunpack.c.l.b16 %v3900
    %v3925 = vunpack.c.l.b16 %v3901
    %v3926 = vunpack.c.l.b16 %v3902
    %v3927 = vunpack.c.l.b16 %v3903
    %v3928 = vunpack.c.l.b16 %v3904
    %v3929 = vpack.c.b16 %v3922, %v3921
    %v3930 = vpack.c.b16 %v3924, %v3923
    %v3931 = vpack.c.b16 %v3926, %v3925
    %v3932 = vpack.c.b16 %v3928, %v3927
    %3937 = vmatprep.subr.bf16.mxu0 0
    %3938 = vmatpush1.bf16.msra.mxu0 %v3929
    %3939 = vmatprep.subr.bf16.mxu0 0
    %3940 = vmatpush1.bf16.msra.mxu0 %v3930
    %3941 = vmatprep.subr.bf16.mxu0 0
    %3942 = vmatpush1.bf16.msra.mxu0 %v3931
    %3943 = vmatprep.subr.bf16.mxu0 0
    %3944 = vmatpush1.bf16.msra.mxu0 %v3932
    %3945 = vmatprep.subr.bf16.mxu0 0
    %3946 = vmatpush1.bf16.msra.mxu0 0
    %3947 = vmatprep.subr.bf16.mxu0 0
    %3948 = vmatpush1.bf16.msra.mxu0 0
    %3949 = vmatprep.subr.bf16.mxu0 0
    %3950 = vmatpush1.bf16.msra.mxu0 0
    %3951 = vmatprep.subr.bf16.mxu0 0
    %3952 = vmatpush1.bf16.msra.mxu0 0
    %3953 = vmatprep.subr.bf16.mxu0 0
    %3954 = vmatpush1.bf16.msra.mxu0 0
    %3955 = vmatprep.subr.bf16.mxu0 0
    %3956 = vmatpush1.bf16.msra.mxu0 0
    %3957 = vmatprep.subr.bf16.mxu0 0
    %3958 = vmatpush1.bf16.msra.mxu0 0
    %3959 = vmatprep.subr.bf16.mxu0 0
    %3960 = vmatpush1.bf16.msra.mxu0 0
    %3961 = vmatprep.subr.bf16.mxu0 0
    %3962 = vmatpush1.bf16.msra.mxu0 0
    %3963 = vmatprep.subr.bf16.mxu0 0
    %3964 = vmatpush1.bf16.msra.mxu0 0
    %3965 = vmatprep.subr.bf16.mxu0 0
    %3966 = vmatpush1.bf16.msra.mxu0 0
    %3967 = vmatprep.subr.bf16.mxu0 0
    %3968 = vmatpush1.bf16.msra.mxu0 0
    %3969 = vmatprep.mubr.bf16.mxu0 0
    %3970 = vmatmul.mubr.bf16.gmra.mrb[0].mxu0 %v2868
    %v3971 = vpop.f32.mrb[0].mxu0
    %v3972 = vadd.f32 %v3911, %v3971
    %v3973 = vpop.f32.mrb[0].mxu0
    %v3974 = vpop.f32.mrb[0].mxu0
    %v3975 = vadd.f32 %v3911, %v3974
    %v3976 = vpop.f32.mrb[0].mxu0
    %3977 = vmatprep.mubr.bf16.mxu0 0
    %3978 = vmatmul.mubr.bf16.gmra.mrb[0].mxu0 %v2871
    %v3979 = vpop.f32.mrb[0].mxu0
    %v3980 = vadd.f32 %v3911, %v3979
    %v3981 = vpop.f32.mrb[0].mxu0
    %v3982 = vpop.f32.mrb[0].mxu0
    %v3983 = vadd.f32 %v3911, %v3982
    %v3984 = vpop.f32.mrb[0].mxu0
    %3985 = vmatprep.mubr.bf16.mxu0 0
    %3986 = vmatmul.mubr.bf16.gmra.mrb[0].mxu0 %v2874
    %v3987 = vpop.f32.mrb[0].mxu0
    %v3988 = vadd.f32 %v3911, %v3987
    %v3989 = vpop.f32.mrb[0].mxu0
    %v3990 = vpop.f32.mrb[0].mxu0
    %v3991 = vadd.f32 %v3911, %v3990
    %v3992 = vpop.f32.mrb[0].mxu0
    %3993 = vmatprep.mubr.bf16.mxu0 0
    %3994 = vmatmul.mubr.bf16.gmra.mrb[0].mxu0 %v2877
    %v3995 = vpop.f32.mrb[0].mxu0
    %v3996 = vadd.f32 %v3911, %v3995
    %v3997 = vpop.f32.mrb[0].mxu0
    %v3998 = vpop.f32.mrb[0].mxu0
    %v3999 = vadd.f32 %v3911, %v3998
    %v4000 = vpop.f32.mrb[0].mxu0
    %4001 = vdwg.mxu0
    %v4002 = vpack.c.bf16 %v3975, %v3972
    %v4003 = vpack.c.bf16 %v3983, %v3980
    %v4004 = vpack.c.bf16 %v3991, %v3988
    %v4005 = vpack.c.bf16 %v3999, %v3996
    %v4007 = vsel %vm510, %v4002, 0
    %v4010 = vsel %vm510, %v4003, 0
    %v4013 = vsel %vm510, %v4004, 0
    %v4016 = vsel %vm510, %v4005, 0
    %4018 = vmatprep.subr.bf16.mxu0 0
    %4019 = vmatpush1.bf16.msra.mxu0 %v2978
    %4020 = vmatprep.subr.bf16.mxu0 0
    %4021 = vmatpush1.bf16.msra.mxu0 0
    %4022 = vmatprep.subr.bf16.mxu0 0
    %4023 = vmatpush1.bf16.msra.mxu0 0
    %4024 = vmatprep.subr.bf16.mxu0 0
    %4025 = vmatpush1.bf16.msra.mxu0 0
    %4026 = vmatprep.subr.bf16.mxu0 0
    %4027 = vmatpush1.bf16.msra.mxu0 0
    %4028 = vmatprep.subr.bf16.mxu0 0
    %4029 = vmatpush1.bf16.msra.mxu0 0
    %4030 = vmatprep.subr.bf16.mxu0 0
    %4031 = vmatpush1.bf16.msra.mxu0 0
    %4032 = vmatprep.subr.bf16.mxu0 0
    %4033 = vmatpush1.bf16.msra.mxu0 0
    %4034 = vmatprep.subr.bf16.mxu0 0
    %4035 = vmatpush1.bf16.msra.mxu0 0
    %4036 = vmatprep.subr.bf16.mxu0 0
    %4037 = vmatpush1.bf16.msra.mxu0 0
    %4038 = vmatprep.subr.bf16.mxu0 0
    %4039 = vmatpush1.bf16.msra.mxu0 0
    %4040 = vmatprep.subr.bf16.mxu0 0
    %4041 = vmatpush1.bf16.msra.mxu0 0
    %4042 = vmatprep.subr.bf16.mxu0 0
    %4043 = vmatpush1.bf16.msra.mxu0 0
    %4044 = vmatprep.subr.bf16.mxu0 0
    %4045 = vmatpush1.bf16.msra.mxu0 0
    %4046 = vmatprep.subr.bf16.mxu0 0
    %4047 = vmatpush1.bf16.msra.mxu0 0
    %4048 = vmatprep.subr.bf16.mxu0 0
    %4049 = vmatpush1.bf16.msra.mxu0 0
    %4050 = vmatprep.mubr.bf16.mxu0 0
    %4051 = vmatmul.mubr.bf16.gmra.mrb[0].mxu0 %v4007
    %v4052 = vpop.f32.mrb[0].mxu0
    %v4053 = vadd.f32 %v237, %v4052
    %v4054 = vpop.f32.mrb[0].mxu0
    %v4055 = vpop.f32.mrb[0].mxu0
    %v4056 = vadd.f32 %v238, %v4055
    %v4057 = vpop.f32.mrb[0].mxu0
    %4058 = vmatprep.mubr.bf16.mxu0 0
    %4059 = vmatmul.mubr.bf16.gmra.mrb[0].mxu0 %v4010
    %v4060 = vpop.f32.mrb[0].mxu0
    %v4061 = vadd.f32 %v239, %v4060
    %v4062 = vpop.f32.mrb[0].mxu0
    %v4063 = vpop.f32.mrb[0].mxu0
    %v4064 = vadd.f32 %v240, %v4063
    %v4065 = vpop.f32.mrb[0].mxu0
    %4066 = vmatprep.mubr.bf16.mxu0 0
    %4067 = vmatmul.mubr.bf16.gmra.mrb[0].mxu0 %v4013
    %v4068 = vpop.f32.mrb[0].mxu0
    %v4069 = vadd.f32 %v241, %v4068
    %v4070 = vpop.f32.mrb[0].mxu0
    %v4071 = vpop.f32.mrb[0].mxu0
    %v4072 = vadd.f32 %v242, %v4071
    %v4073 = vpop.f32.mrb[0].mxu0
    %4074 = vmatprep.mubr.bf16.mxu0 0
    %4075 = vmatmul.mubr.bf16.gmra.mrb[0].mxu0 %v4016
    %v4076 = vpop.f32.mrb[0].mxu0
    %v4077 = vadd.f32 %v243, %v4076
    %v4078 = vpop.f32.mrb[0].mxu0
    %v4079 = vpop.f32.mrb[0].mxu0
    %v4080 = vadd.f32 %v244, %v4079
    %v4081 = vpop.f32.mrb[0].mxu0
    %4082 = vdwg.mxu0
    %v4083 = vsel %vm288, %v4053, -inf
    %4084 = vmax.xlane.f32.xlu0 %v4083
    %v4085 = vpop.xlane.xlu0 %4084
    %v4086 = vsel %vm288, %v4056, -inf
    %4087 = vmax.xlane.f32.xlu0 %v4086
    %v4088 = vpop.xlane.xlu0 %4087
    %v4089 = vsel %vm288, %v4061, -inf
    %4090 = vmax.xlane.f32.xlu0 %v4089
    %v4091 = vpop.xlane.xlu0 %4090
    %v4092 = vsel %vm288, %v4064, -inf
    %4093 = vmax.xlane.f32.xlu0 %v4092
    %v4094 = vpop.xlane.xlu0 %4093
    %v4095 = vsel %vm288, %v4069, -inf
    %4096 = vmax.xlane.f32.xlu0 %v4095
    %v4097 = vpop.xlane.xlu0 %4096
    %v4098 = vsel %vm288, %v4072, -inf
    %4099 = vmax.xlane.f32.xlu0 %v4098
    %v4100 = vpop.xlane.xlu0 %4099
    %v4101 = vsel %vm288, %v4077, -inf
    %4102 = vmax.xlane.f32.xlu0 %v4101
    %v4103 = vpop.xlane.xlu0 %4102
    %v4104 = vsel %vm288, %v4080, -inf
    %4105 = vmax.xlane.f32.xlu0 %v4104
    %v4106 = vpop.xlane.xlu0 %4105
    %v4107 = vsub.f32 %v4053, %v4085
    %v4108 = vsub.f32 %v4056, %v4088
    %v4109 = vsub.f32 %v4061, %v4091
    %v4110 = vsub.f32 %v4064, %v4094
    %v4111 = vsub.f32 %v4069, %v4097
    %v4112 = vsub.f32 %v4072, %v4100
    %v4113 = vsub.f32 %v4077, %v4103
    %v4114 = vsub.f32 %v4080, %v4106
    %v4115 = vmul.f32 %v4107, 1.442695
    %v4116 = vpow.pop %v4115
    %v4117 = vmul.f32 %v4108, 1.442695
    %v4118 = vpow.pop %v4117
    %v4119 = vmul.f32 %v4109, 1.442695
    %v4120 = vpow.pop %v4119
    %v4121 = vmul.f32 %v4110, 1.442695
    %v4122 = vpow.pop %v4121
    %v4123 = vmul.f32 %v4111, 1.442695
    %v4124 = vpow.pop %v4123
    %v4125 = vmul.f32 %v4112, 1.442695
    %v4126 = vpow.pop %v4125
    %v4127 = vmul.f32 %v4113, 1.442695
    %v4128 = vpow.pop %v4127
    %v4129 = vmul.f32 %v4114, 1.442695
    %v4130 = vpow.pop %v4129
    %v4131 = vsel %vm288, %v4116, 0.0
    %4132 = vadd.xlane.f32.xlu0 %v4131
    %v4133 = vpop.xlane.xlu0 %4132
    %v4134 = vsel %vm288, %v4118, 0.0
    %4135 = vadd.xlane.f32.xlu0 %v4134
    %v4136 = vpop.xlane.xlu0 %4135
    %v4137 = vsel %vm288, %v4120, 0.0
    %4138 = vadd.xlane.f32.xlu0 %v4137
    %v4139 = vpop.xlane.xlu0 %4138
    %v4140 = vsel %vm288, %v4122, 0.0
    %4141 = vadd.xlane.f32.xlu0 %v4140
    %v4142 = vpop.xlane.xlu0 %4141
    %v4143 = vsel %vm288, %v4124, 0.0
    %4144 = vadd.xlane.f32.xlu0 %v4143
    %v4145 = vpop.xlane.xlu0 %4144
    %v4146 = vsel %vm288, %v4126, 0.0
    %4147 = vadd.xlane.f32.xlu0 %v4146
    %v4148 = vpop.xlane.xlu0 %4147
    %v4149 = vsel %vm288, %v4128, 0.0
    %4150 = vadd.xlane.f32.xlu0 %v4149
    %v4151 = vpop.xlane.xlu0 %4150
    %v4152 = vsel %vm288, %v4130, 0.0
    %4153 = vadd.xlane.f32.xlu0 %v4152
    %v4154 = vpop.xlane.xlu0 %4153
    %v4155 = vrcp.pop %v4133
    %v4156 = vrcp.pop %v4136
    %v4157 = vrcp.pop %v4139
    %v4158 = vrcp.pop %v4142
    %v4159 = vrcp.pop %v4145
    %v4160 = vrcp.pop %v4148
    %v4161 = vrcp.pop %v4151
    %v4162 = vrcp.pop %v4154
    %v4163 = vmul.f32 %v4116, %v4155
    %v4164 = vmul.f32 %v4118, %v4156
    %v4165 = vmul.f32 %v4120, %v4157
    %v4166 = vmul.f32 %v4122, %v4158
    %v4167 = vmul.f32 %v4124, %v4159
    %v4168 = vmul.f32 %v4126, %v4160
    %v4169 = vmul.f32 %v4128, %v4161
    %v4170 = vmul.f32 %v4130, %v4162
    %s4171 = scalar_lea.vmem %s6, 192
    %v4172 = vld [vmem:[%s4171] sm:$0xf]
    %v4173 = vld [vmem:[%s4171 + $0x4] sm:$0xf]
    %v4174 = vld [vmem:[%s4171 + $0x8] sm:$0xf]
    %v4175 = vld [vmem:[%s4171 + $0xc] sm:$0xf]
    %v4176 = vld [vmem:[%s4171 + $0x10] sm:$0xf]
    %v4177 = vld [vmem:[%s4171 + $0x14] sm:$0xf]
    %v4178 = vld [vmem:[%s4171 + $0x18] sm:$0xf]
    %v4179 = vld [vmem:[%s4171 + $0x1c] sm:$0xf]
    %v4188 = vunpack.c.l.b16 %v4172
    %v4189 = vunpack.c.l.b16 %v4173
    %v4190 = vunpack.c.l.b16 %v4174
    %v4191 = vunpack.c.l.b16 %v4175
    %v4192 = vunpack.c.l.b16 %v4176
    %v4193 = vunpack.c.l.b16 %v4177
    %v4194 = vunpack.c.l.b16 %v4178
    %v4195 = vunpack.c.l.b16 %v4179
    %v4196 = vpack.c.b16 %v4189, %v4188
    %v4197 = vpack.c.b16 %v4191, %v4190
    %v4198 = vpack.c.b16 %v4193, %v4192
    %v4199 = vpack.c.b16 %v4195, %v4194
    %4204 = vmatprep.subr.bf16.mxu0 0
    %4205 = vmatpush1.bf16.msra.mxu0 %v4196
    %4206 = vmatprep.subr.bf16.mxu0 0
    %4207 = vmatpush1.bf16.msra.mxu0 %v4197
    %4208 = vmatprep.subr.bf16.mxu0 0
    %4209 = vmatpush1.bf16.msra.mxu0 %v4198
    %4210 = vmatprep.subr.bf16.mxu0 0
    %4211 = vmatpush1.bf16.msra.mxu0 %v4199
    %4212 = vmatprep.subr.bf16.mxu0 0
    %4213 = vmatpush1.bf16.msra.mxu0 0
    %4214 = vmatprep.subr.bf16.mxu0 0
    %4215 = vmatpush1.bf16.msra.mxu0 0
    %4216 = vmatprep.subr.bf16.mxu0 0
    %4217 = vmatpush1.bf16.msra.mxu0 0
    %4218 = vmatprep.subr.bf16.mxu0 0
    %4219 = vmatpush1.bf16.msra.mxu0 0
    %4220 = vmatprep.subr.bf16.mxu0 0
    %4221 = vmatpush1.bf16.msra.mxu0 0
    %4222 = vmatprep.subr.bf16.mxu0 0
    %4223 = vmatpush1.bf16.msra.mxu0 0
    %4224 = vmatprep.subr.bf16.mxu0 0
    %4225 = vmatpush1.bf16.msra.mxu0 0
    %4226 = vmatprep.subr.bf16.mxu0 0
    %4227 = vmatpush1.bf16.msra.mxu0 0
    %4228 = vmatprep.subr.bf16.mxu0 0
    %4229 = vmatpush1.bf16.msra.mxu0 0
    %4230 = vmatprep.subr.bf16.mxu0 0
    %4231 = vmatpush1.bf16.msra.mxu0 0
    %4232 = vmatprep.subr.bf16.mxu0 0
    %4233 = vmatpush1.bf16.msra.mxu0 0
    %4234 = vmatprep.subr.bf16.mxu0 0
    %4235 = vmatpush1.bf16.msra.mxu0 0
    %4236 = vmatprep.mubr.bf16.mxu0 0
    %4237 = vmatmul.mubr.bf16.gmra.mrb[0].mxu0 %v2868
    %v4238 = vpop.f32.mrb[0].mxu0
    %v4239 = vadd.f32 0.0, %v4238
    %v4240 = vpop.f32.mrb[0].mxu0
    %v4241 = vpop.f32.mrb[0].mxu0
    %v4242 = vadd.f32 0.0, %v4241
    %v4243 = vpop.f32.mrb[0].mxu0
    %4244 = vmatprep.mubr.bf16.mxu0 0
    %4245 = vmatmul.mubr.bf16.gmra.mrb[0].mxu0 %v2871
    %v4246 = vpop.f32.mrb[0].mxu0
    %v4247 = vadd.f32 0.0, %v4246
    %v4248 = vpop.f32.mrb[0].mxu0
    %v4249 = vpop.f32.mrb[0].mxu0
    %v4250 = vadd.f32 0.0, %v4249
    %v4251 = vpop.f32.mrb[0].mxu0
    %4252 = vmatprep.mubr.bf16.mxu0 0
    %4253 = vmatmul.mubr.bf16.gmra.mrb[0].mxu0 %v2874
    %v4254 = vpop.f32.mrb[0].mxu0
    %v4255 = vadd.f32 0.0, %v4254
    %v4256 = vpop.f32.mrb[0].mxu0
    %v4257 = vpop.f32.mrb[0].mxu0
    %v4258 = vadd.f32 0.0, %v4257
    %v4259 = vpop.f32.mrb[0].mxu0
    %4260 = vmatprep.mubr.bf16.mxu0 0
    %4261 = vmatmul.mubr.bf16.gmra.mrb[0].mxu0 %v2877
    %v4262 = vpop.f32.mrb[0].mxu0
    %v4263 = vadd.f32 0.0, %v4262
    %v4264 = vpop.f32.mrb[0].mxu0
    %v4265 = vpop.f32.mrb[0].mxu0
    %v4266 = vadd.f32 0.0, %v4265
    %v4267 = vpop.f32.mrb[0].mxu0
    %4268 = vdwg.mxu0
    %v4269 = vpack.c.bf16 %v4164, %v4163
    %v4270 = vpack.c.bf16 %v4166, %v4165
    %v4271 = vpack.c.bf16 %v4168, %v4167
    %v4272 = vpack.c.bf16 %v4170, %v4169
    %v4273 = vpack.c.bf16 %v4242, %v4239
    %v4274 = vpack.c.bf16 %v4250, %v4247
    %v4275 = vpack.c.bf16 %v4258, %v4255
    %v4276 = vpack.c.bf16 %v4266, %v4263
    %v4278 = vsel %vm288, %v4269, 0
    %v4281 = vsel %vm288, %v4270, 0
    %v4284 = vsel %vm288, %v4271, 0
    %v4287 = vsel %vm288, %v4272, 0
    %4289 = vmatprep.subr.bf16.mxu0 0
    %4290 = vmatpush1.bf16.msra.mxu0 %v4273
    %4291 = vmatprep.subr.bf16.mxu0 0
    %4292 = vmatpush1.bf16.msra.mxu0 %v4274
    %4293 = vmatprep.subr.bf16.mxu0 0
    %4294 = vmatpush1.bf16.msra.mxu0 %v4275
    %4295 = vmatprep.subr.bf16.mxu0 0
    %4296 = vmatpush1.bf16.msra.mxu0 %v4276
    %4297 = vmatprep.subr.bf16.mxu0 0
    %4298 = vmatpush1.bf16.msra.mxu0 0
    %4299 = vmatprep.subr.bf16.mxu0 0
    %4300 = vmatpush1.bf16.msra.mxu0 0
    %4301 = vmatprep.subr.bf16.mxu0 0
    %4302 = vmatpush1.bf16.msra.mxu0 0
    %4303 = vmatprep.subr.bf16.mxu0 0
    %4304 = vmatpush1.bf16.msra.mxu0 0
    %4305 = vmatprep.subr.bf16.mxu0 0
    %4306 = vmatpush1.bf16.msra.mxu0 0
    %4307 = vmatprep.subr.bf16.mxu0 0
    %4308 = vmatpush1.bf16.msra.mxu0 0
    %4309 = vmatprep.subr.bf16.mxu0 0
    %4310 = vmatpush1.bf16.msra.mxu0 0
    %4311 = vmatprep.subr.bf16.mxu0 0
    %4312 = vmatpush1.bf16.msra.mxu0 0
    %4313 = vmatprep.subr.bf16.mxu0 0
    %4314 = vmatpush1.bf16.msra.mxu0 0
    %4315 = vmatprep.subr.bf16.mxu0 0
    %4316 = vmatpush1.bf16.msra.mxu0 0
    %4317 = vmatprep.subr.bf16.mxu0 0
    %4318 = vmatpush1.bf16.msra.mxu0 0
    %4319 = vmatprep.subr.bf16.mxu0 0
    %4320 = vmatpush1.bf16.msra.mxu0 0
    %4321 = vmatprep.mubr.bf16.mxu0 0
    %4322 = vmatmul.mubr.bf16.gmra.mrb[0].mxu0 %v4278
    %v4323 = vpop.f32.mrb[0].mxu0
    %v4324 = vadd.f32 0.0, %v4323
    %v4325 = vpop.f32.mrb[0].mxu0
    %v4326 = vpop.f32.mrb[0].mxu0
    %v4327 = vadd.f32 0.0, %v4326
    %v4328 = vpop.f32.mrb[0].mxu0
    %4329 = vmatprep.mubr.bf16.mxu0 0
    %4330 = vmatmul.mubr.bf16.gmra.mrb[0].mxu0 %v4281
    %v4331 = vpop.f32.mrb[0].mxu0
    %v4332 = vadd.f32 0.0, %v4331
    %v4333 = vpop.f32.mrb[0].mxu0
    %v4334 = vpop.f32.mrb[0].mxu0
    %v4335 = vadd.f32 0.0, %v4334
    %v4336 = vpop.f32.mrb[0].mxu0
    %4337 = vmatprep.mubr.bf16.mxu0 0
    %4338 = vmatmul.mubr.bf16.gmra.mrb[0].mxu0 %v4284
    %v4339 = vpop.f32.mrb[0].mxu0
    %v4340 = vadd.f32 0.0, %v4339
    %v4341 = vpop.f32.mrb[0].mxu0
    %v4342 = vpop.f32.mrb[0].mxu0
    %v4343 = vadd.f32 0.0, %v4342
    %v4344 = vpop.f32.mrb[0].mxu0
    %4345 = vmatprep.mubr.bf16.mxu0 0
    %4346 = vmatmul.mubr.bf16.gmra.mrb[0].mxu0 %v4287
    %v4347 = vpop.f32.mrb[0].mxu0
    %v4348 = vadd.f32 0.0, %v4347
    %v4349 = vpop.f32.mrb[0].mxu0
    %v4350 = vpop.f32.mrb[0].mxu0
    %v4351 = vadd.f32 0.0, %v4350
    %v4352 = vpop.f32.mrb[0].mxu0
    %4353 = vdwg.mxu0
    %v4354 = vadd.f32 %v3866, %v4324
    %v4355 = vadd.f32 %v3869, %v4327
    %v4356 = vadd.f32 %v3874, %v4332
    %v4357 = vadd.f32 %v3877, %v4335
    %v4358 = vadd.f32 %v3882, %v4340
    %v4359 = vadd.f32 %v3885, %v4343
    %v4360 = vadd.f32 %v3890, %v4348
    %v4361 = vadd.f32 %v3893, %v4351
    %s4362 = scalar_lea.vmem %s3, 224
    %v4363 = vld [vmem:[%s4362] sm:$0xf]
    %v4364 = vld [vmem:[%s4362 + $0x4] sm:$0xf]
    %v4365 = vld [vmem:[%s4362 + $0x8] sm:$0xf]
    %v4366 = vld [vmem:[%s4362 + $0xc] sm:$0xf]
    %v4367 = vld [vmem:[%s4362 + $0x10] sm:$0xf]
    %v4368 = vld [vmem:[%s4362 + $0x14] sm:$0xf]
    %v4369 = vld [vmem:[%s4362 + $0x18] sm:$0xf]
    %v4370 = vld [vmem:[%s4362 + $0x1c] sm:$0xf]
    %s4371 = scalar_lea.vmem [#allocation5], 7
    %v4372 = vld [vmem:[%s4371] sm:$0x1]
    %v4374 = vlaneseq
    %v4375 = vshrl.u32 %v4374, 7
    %v4376 = vsub.s32 0, %v4375
    %v4377 = vrot.slane %v4372, %v4376
    %v4387 = vunpack.c.l.b16 %v4363
    %v4388 = vunpack.c.l.b16 %v4364
    %v4389 = vunpack.c.l.b16 %v4365
    %v4390 = vunpack.c.l.b16 %v4366
    %v4391 = vunpack.c.l.b16 %v4367
    %v4392 = vunpack.c.l.b16 %v4368
    %v4393 = vunpack.c.l.b16 %v4369
    %v4394 = vunpack.c.l.b16 %v4370
    %v4395 = vpack.c.b16 %v4388, %v4387
    %v4396 = vpack.c.b16 %v4390, %v4389
    %v4397 = vpack.c.b16 %v4392, %v4391
    %v4398 = vpack.c.b16 %v4394, %v4393
    %4403 = vmatprep.subr.bf16.mxu0 0
    %4404 = vmatpush1.bf16.msra.mxu0 %v4395
    %4405 = vmatprep.subr.bf16.mxu0 0
    %4406 = vmatpush1.bf16.msra.mxu0 %v4396
    %4407 = vmatprep.subr.bf16.mxu0 0
    %4408 = vmatpush1.bf16.msra.mxu0 %v4397
    %4409 = vmatprep.subr.bf16.mxu0 0
    %4410 = vmatpush1.bf16.msra.mxu0 %v4398
    %4411 = vmatprep.subr.bf16.mxu0 0
    %4412 = vmatpush1.bf16.msra.mxu0 0
    %4413 = vmatprep.subr.bf16.mxu0 0
    %4414 = vmatpush1.bf16.msra.mxu0 0
    %4415 = vmatprep.subr.bf16.mxu0 0
    %4416 = vmatpush1.bf16.msra.mxu0 0
    %4417 = vmatprep.subr.bf16.mxu0 0
    %4418 = vmatpush1.bf16.msra.mxu0 0
    %4419 = vmatprep.subr.bf16.mxu0 0
    %4420 = vmatpush1.bf16.msra.mxu0 0
    %4421 = vmatprep.subr.bf16.mxu0 0
    %4422 = vmatpush1.bf16.msra.mxu0 0
    %4423 = vmatprep.subr.bf16.mxu0 0
    %4424 = vmatpush1.bf16.msra.mxu0 0
    %4425 = vmatprep.subr.bf16.mxu0 0
    %4426 = vmatpush1.bf16.msra.mxu0 0
    %4427 = vmatprep.subr.bf16.mxu0 0
    %4428 = vmatpush1.bf16.msra.mxu0 0
    %4429 = vmatprep.subr.bf16.mxu0 0
    %4430 = vmatpush1.bf16.msra.mxu0 0
    %4431 = vmatprep.subr.bf16.mxu0 0
    %4432 = vmatpush1.bf16.msra.mxu0 0
    %4433 = vmatprep.subr.bf16.mxu0 0
    %4434 = vmatpush1.bf16.msra.mxu0 0
    %4435 = vmatprep.mubr.bf16.mxu0 0
    %4436 = vmatmul.mubr.bf16.gmra.mrb[0].mxu0 %v2868
    %v4437 = vpop.f32.mrb[0].mxu0
    %v4438 = vadd.f32 %v4377, %v4437
    %v4439 = vpop.f32.mrb[0].mxu0
    %v4440 = vpop.f32.mrb[0].mxu0
    %v4441 = vadd.f32 %v4377, %v4440
    %v4442 = vpop.f32.mrb[0].mxu0
    %4443 = vmatprep.mubr.bf16.mxu0 0
    %4444 = vmatmul.mubr.bf16.gmra.mrb[0].mxu0 %v2871
    %v4445 = vpop.f32.mrb[0].mxu0
    %v4446 = vadd.f32 %v4377, %v4445
    %v4447 = vpop.f32.mrb[0].mxu0
    %v4448 = vpop.f32.mrb[0].mxu0
    %v4449 = vadd.f32 %v4377, %v4448
    %v4450 = vpop.f32.mrb[0].mxu0
    %4451 = vmatprep.mubr.bf16.mxu0 0
    %4452 = vmatmul.mubr.bf16.gmra.mrb[0].mxu0 %v2874
    %v4453 = vpop.f32.mrb[0].mxu0
    %v4454 = vadd.f32 %v4377, %v4453
    %v4455 = vpop.f32.mrb[0].mxu0
    %v4456 = vpop.f32.mrb[0].mxu0
    %v4457 = vadd.f32 %v4377, %v4456
    %v4458 = vpop.f32.mrb[0].mxu0
    %4459 = vmatprep.mubr.bf16.mxu0 0
    %4460 = vmatmul.mubr.bf16.gmra.mrb[0].mxu0 %v2877
    %v4461 = vpop.f32.mrb[0].mxu0
    %v4462 = vadd.f32 %v4377, %v4461
    %v4463 = vpop.f32.mrb[0].mxu0
    %v4464 = vpop.f32.mrb[0].mxu0
    %v4465 = vadd.f32 %v4377, %v4464
    %v4466 = vpop.f32.mrb[0].mxu0
    %4467 = vdwg.mxu0
    %v4468 = vpack.c.bf16 %v4441, %v4438
    %v4469 = vpack.c.bf16 %v4449, %v4446
    %v4470 = vpack.c.bf16 %v4457, %v4454
    %v4471 = vpack.c.bf16 %v4465, %v4462
    %v4473 = vsel %vm510, %v4468, 0
    %v4476 = vsel %vm510, %v4469, 0
    %v4479 = vsel %vm510, %v4470, 0
    %v4482 = vsel %vm510, %v4471, 0
    %4484 = vmatprep.subr.bf16.mxu0 0
    %4485 = vmatpush1.bf16.msra.mxu0 %v2979
    %4486 = vmatprep.subr.bf16.mxu0 0
    %4487 = vmatpush1.bf16.msra.mxu0 0
    %4488 = vmatprep.subr.bf16.mxu0 0
    %4489 = vmatpush1.bf16.msra.mxu0 0
    %4490 = vmatprep.subr.bf16.mxu0 0
    %4491 = vmatpush1.bf16.msra.mxu0 0
    %4492 = vmatprep.subr.bf16.mxu0 0
    %4493 = vmatpush1.bf16.msra.mxu0 0
    %4494 = vmatprep.subr.bf16.mxu0 0
    %4495 = vmatpush1.bf16.msra.mxu0 0
    %4496 = vmatprep.subr.bf16.mxu0 0
    %4497 = vmatpush1.bf16.msra.mxu0 0
    %4498 = vmatprep.subr.bf16.mxu0 0
    %4499 = vmatpush1.bf16.msra.mxu0 0
    %4500 = vmatprep.subr.bf16.mxu0 0
    %4501 = vmatpush1.bf16.msra.mxu0 0
    %4502 = vmatprep.subr.bf16.mxu0 0
    %4503 = vmatpush1.bf16.msra.mxu0 0
    %4504 = vmatprep.subr.bf16.mxu0 0
    %4505 = vmatpush1.bf16.msra.mxu0 0
    %4506 = vmatprep.subr.bf16.mxu0 0
    %4507 = vmatpush1.bf16.msra.mxu0 0
    %4508 = vmatprep.subr.bf16.mxu0 0
    %4509 = vmatpush1.bf16.msra.mxu0 0
    %4510 = vmatprep.subr.bf16.mxu0 0
    %4511 = vmatpush1.bf16.msra.mxu0 0
    %4512 = vmatprep.subr.bf16.mxu0 0
    %4513 = vmatpush1.bf16.msra.mxu0 0
    %4514 = vmatprep.subr.bf16.mxu0 0
    %4515 = vmatpush1.bf16.msra.mxu0 0
    %4516 = vmatprep.mubr.bf16.mxu0 0
    %4517 = vmatmul.mubr.bf16.gmra.mrb[0].mxu0 %v4473
    %v4518 = vpop.f32.mrb[0].mxu0
    %v4519 = vadd.f32 %v237, %v4518
    %v4520 = vpop.f32.mrb[0].mxu0
    %v4521 = vpop.f32.mrb[0].mxu0
    %v4522 = vadd.f32 %v238, %v4521
    %v4523 = vpop.f32.mrb[0].mxu0
    %4524 = vmatprep.mubr.bf16.mxu0 0
    %4525 = vmatmul.mubr.bf16.gmra.mrb[0].mxu0 %v4476
    %v4526 = vpop.f32.mrb[0].mxu0
    %v4527 = vadd.f32 %v239, %v4526
    %v4528 = vpop.f32.mrb[0].mxu0
    %v4529 = vpop.f32.mrb[0].mxu0
    %v4530 = vadd.f32 %v240, %v4529
    %v4531 = vpop.f32.mrb[0].mxu0
    %4532 = vmatprep.mubr.bf16.mxu0 0
    %4533 = vmatmul.mubr.bf16.gmra.mrb[0].mxu0 %v4479
    %v4534 = vpop.f32.mrb[0].mxu0
    %v4535 = vadd.f32 %v241, %v4534
    %v4536 = vpop.f32.mrb[0].mxu0
    %v4537 = vpop.f32.mrb[0].mxu0
    %v4538 = vadd.f32 %v242, %v4537
    %v4539 = vpop.f32.mrb[0].mxu0
    %4540 = vmatprep.mubr.bf16.mxu0 0
    %4541 = vmatmul.mubr.bf16.gmra.mrb[0].mxu0 %v4482
    %v4542 = vpop.f32.mrb[0].mxu0
    %v4543 = vadd.f32 %v243, %v4542
    %v4544 = vpop.f32.mrb[0].mxu0
    %v4545 = vpop.f32.mrb[0].mxu0
    %v4546 = vadd.f32 %v244, %v4545
    %v4547 = vpop.f32.mrb[0].mxu0
    %4548 = vdwg.mxu0
    %v4549 = vsel %vm288, %v4519, -inf
    %4550 = vmax.xlane.f32.xlu0 %v4549
    %v4551 = vpop.xlane.xlu0 %4550
    %v4552 = vsel %vm288, %v4522, -inf
    %4553 = vmax.xlane.f32.xlu0 %v4552
    %v4554 = vpop.xlane.xlu0 %4553
    %v4555 = vsel %vm288, %v4527, -inf
    %4556 = vmax.xlane.f32.xlu0 %v4555
    %v4557 = vpop.xlane.xlu0 %4556
    %v4558 = vsel %vm288, %v4530, -inf
    %4559 = vmax.xlane.f32.xlu0 %v4558
    %v4560 = vpop.xlane.xlu0 %4559
    %v4561 = vsel %vm288, %v4535, -inf
    %4562 = vmax.xlane.f32.xlu0 %v4561
    %v4563 = vpop.xlane.xlu0 %4562
    %v4564 = vsel %vm288, %v4538, -inf
    %4565 = vmax.xlane.f32.xlu0 %v4564
    %v4566 = vpop.xlane.xlu0 %4565
    %v4567 = vsel %vm288, %v4543, -inf
    %4568 = vmax.xlane.f32.xlu0 %v4567
    %v4569 = vpop.xlane.xlu0 %4568
    %v4570 = vsel %vm288, %v4546, -inf
    %4571 = vmax.xlane.f32.xlu0 %v4570
    %v4572 = vpop.xlane.xlu0 %4571
    %v4573 = vsub.f32 %v4519, %v4551
    %v4574 = vsub.f32 %v4522, %v4554
    %v4575 = vsub.f32 %v4527, %v4557
    %v4576 = vsub.f32 %v4530, %v4560
    %v4577 = vsub.f32 %v4535, %v4563
    %v4578 = vsub.f32 %v4538, %v4566
    %v4579 = vsub.f32 %v4543, %v4569
    %v4580 = vsub.f32 %v4546, %v4572
    %v4581 = vmul.f32 %v4573, 1.442695
    %v4582 = vpow.pop %v4581
    %v4583 = vmul.f32 %v4574, 1.442695
    %v4584 = vpow.pop %v4583
    %v4585 = vmul.f32 %v4575, 1.442695
    %v4586 = vpow.pop %v4585
    %v4587 = vmul.f32 %v4576, 1.442695
    %v4588 = vpow.pop %v4587
    %v4589 = vmul.f32 %v4577, 1.442695
    %v4590 = vpow.pop %v4589
    %v4591 = vmul.f32 %v4578, 1.442695
    %v4592 = vpow.pop %v4591
    %v4593 = vmul.f32 %v4579, 1.442695
    %v4594 = vpow.pop %v4593
    %v4595 = vmul.f32 %v4580, 1.442695
    %v4596 = vpow.pop %v4595
    %v4597 = vsel %vm288, %v4582, 0.0
    %4598 = vadd.xlane.f32.xlu0 %v4597
    %v4599 = vpop.xlane.xlu0 %4598
    %v4600 = vsel %vm288, %v4584, 0.0
    %4601 = vadd.xlane.f32.xlu0 %v4600
    %v4602 = vpop.xlane.xlu0 %4601
    %v4603 = vsel %vm288, %v4586, 0.0
    %4604 = vadd.xlane.f32.xlu0 %v4603
    %v4605 = vpop.xlane.xlu0 %4604
    %v4606 = vsel %vm288, %v4588, 0.0
    %4607 = vadd.xlane.f32.xlu0 %v4606
    %v4608 = vpop.xlane.xlu0 %4607
    %v4609 = vsel %vm288, %v4590, 0.0
    %4610 = vadd.xlane.f32.xlu0 %v4609
    %v4611 = vpop.xlane.xlu0 %4610
    %v4612 = vsel %vm288, %v4592, 0.0
    %4613 = vadd.xlane.f32.xlu0 %v4612
    %v4614 = vpop.xlane.xlu0 %4613
    %v4615 = vsel %vm288, %v4594, 0.0
    %4616 = vadd.xlane.f32.xlu0 %v4615
    %v4617 = vpop.xlane.xlu0 %4616
    %v4618 = vsel %vm288, %v4596, 0.0
    %4619 = vadd.xlane.f32.xlu0 %v4618
    %v4620 = vpop.xlane.xlu0 %4619
    %v4621 = vrcp.pop %v4599
    %v4622 = vrcp.pop %v4602
    %v4623 = vrcp.pop %v4605
    %v4624 = vrcp.pop %v4608
    %v4625 = vrcp.pop %v4611
    %v4626 = vrcp.pop %v4614
    %v4627 = vrcp.pop %v4617
    %v4628 = vrcp.pop %v4620
    %v4629 = vmul.f32 %v4582, %v4621
    %v4630 = vmul.f32 %v4584, %v4622
    %v4631 = vmul.f32 %v4586, %v4623
    %v4632 = vmul.f32 %v4588, %v4624
    %v4633 = vmul.f32 %v4590, %v4625
    %v4634 = vmul.f32 %v4592, %v4626
    %v4635 = vmul.f32 %v4594, %v4627
    %v4636 = vmul.f32 %v4596, %v4628
    %s4637 = scalar_lea.vmem %s6, 224
    %v4638 = vld [vmem:[%s4637] sm:$0xf]
    %v4639 = vld [vmem:[%s4637 + $0x4] sm:$0xf]
    %v4640 = vld [vmem:[%s4637 + $0x8] sm:$0xf]
    %v4641 = vld [vmem:[%s4637 + $0xc] sm:$0xf]
    %v4642 = vld [vmem:[%s4637 + $0x10] sm:$0xf]
    %v4643 = vld [vmem:[%s4637 + $0x14] sm:$0xf]
    %v4644 = vld [vmem:[%s4637 + $0x18] sm:$0xf]
    %v4645 = vld [vmem:[%s4637 + $0x1c] sm:$0xf]
    %v4654 = vunpack.c.l.b16 %v4638
    %v4655 = vunpack.c.l.b16 %v4639
    %v4656 = vunpack.c.l.b16 %v4640
    %v4657 = vunpack.c.l.b16 %v4641
    %v4658 = vunpack.c.l.b16 %v4642
    %v4659 = vunpack.c.l.b16 %v4643
    %v4660 = vunpack.c.l.b16 %v4644
    %v4661 = vunpack.c.l.b16 %v4645
    %v4662 = vpack.c.b16 %v4655, %v4654
    %v4663 = vpack.c.b16 %v4657, %v4656
    %v4664 = vpack.c.b16 %v4659, %v4658
    %v4665 = vpack.c.b16 %v4661, %v4660
    %4670 = vmatprep.subr.bf16.mxu0 0
    %4671 = vmatpush1.bf16.msra.mxu0 %v4662
    %4672 = vmatprep.subr.bf16.mxu0 0
    %4673 = vmatpush1.bf16.msra.mxu0 %v4663
    %4674 = vmatprep.subr.bf16.mxu0 0
    %4675 = vmatpush1.bf16.msra.mxu0 %v4664
    %4676 = vmatprep.subr.bf16.mxu0 0
    %4677 = vmatpush1.bf16.msra.mxu0 %v4665
    %4678 = vmatprep.subr.bf16.mxu0 0
    %4679 = vmatpush1.bf16.msra.mxu0 0
    %4680 = vmatprep.subr.bf16.mxu0 0
    %4681 = vmatpush1.bf16.msra.mxu0 0
    %4682 = vmatprep.subr.bf16.mxu0 0
    %4683 = vmatpush1.bf16.msra.mxu0 0
    %4684 = vmatprep.subr.bf16.mxu0 0
    %4685 = vmatpush1.bf16.msra.mxu0 0
    %4686 = vmatprep.subr.bf16.mxu0 0
    %4687 = vmatpush1.bf16.msra.mxu0 0
    %4688 = vmatprep.subr.bf16.mxu0 0
    %4689 = vmatpush1.bf16.msra.mxu0 0
    %4690 = vmatprep.subr.bf16.mxu0 0
    %4691 = vmatpush1.bf16.msra.mxu0 0
    %4692 = vmatprep.subr.bf16.mxu0 0
    %4693 = vmatpush1.bf16.msra.mxu0 0
    %4694 = vmatprep.subr.bf16.mxu0 0
    %4695 = vmatpush1.bf16.msra.mxu0 0
    %4696 = vmatprep.subr.bf16.mxu0 0
    %4697 = vmatpush1.bf16.msra.mxu0 0
    %4698 = vmatprep.subr.bf16.mxu0 0
    %4699 = vmatpush1.bf16.msra.mxu0 0
    %4700 = vmatprep.subr.bf16.mxu0 0
    %4701 = vmatpush1.bf16.msra.mxu0 0
    %4702 = vmatprep.mubr.bf16.mxu0 0
    %4703 = vmatmul.mubr.bf16.gmra.mrb[0].mxu0 %v2868
    %v4704 = vpop.f32.mrb[0].mxu0
    %v4705 = vadd.f32 0.0, %v4704
    %v4706 = vpop.f32.mrb[0].mxu0
    %v4707 = vpop.f32.mrb[0].mxu0
    %v4708 = vadd.f32 0.0, %v4707
    %v4709 = vpop.f32.mrb[0].mxu0
    %4710 = vmatprep.mubr.bf16.mxu0 0
    %4711 = vmatmul.mubr.bf16.gmra.mrb[0].mxu0 %v2871
    %v4712 = vpop.f32.mrb[0].mxu0
    %v4713 = vadd.f32 0.0, %v4712
    %v4714 = vpop.f32.mrb[0].mxu0
    %v4715 = vpop.f32.mrb[0].mxu0
    %v4716 = vadd.f32 0.0, %v4715
    %v4717 = vpop.f32.mrb[0].mxu0
    %4718 = vmatprep.mubr.bf16.mxu0 0
    %4719 = vmatmul.mubr.bf16.gmra.mrb[0].mxu0 %v2874
    %v4720 = vpop.f32.mrb[0].mxu0
    %v4721 = vadd.f32 0.0, %v4720
    %v4722 = vpop.f32.mrb[0].mxu0
    %v4723 = vpop.f32.mrb[0].mxu0
    %v4724 = vadd.f32 0.0, %v4723
    %v4725 = vpop.f32.mrb[0].mxu0
    %4726 = vmatprep.mubr.bf16.mxu0 0
    %4727 = vmatmul.mubr.bf16.gmra.mrb[0].mxu0 %v2877
    %v4728 = vpop.f32.mrb[0].mxu0
    %v4729 = vadd.f32 0.0, %v4728
    %v4730 = vpop.f32.mrb[0].mxu0
    %v4731 = vpop.f32.mrb[0].mxu0
    %v4732 = vadd.f32 0.0, %v4731
    %v4733 = vpop.f32.mrb[0].mxu0
    %4734 = vdwg.mxu0
    %v4735 = vpack.c.bf16 %v4630, %v4629
    %v4736 = vpack.c.bf16 %v4632, %v4631
    %v4737 = vpack.c.bf16 %v4634, %v4633
    %v4738 = vpack.c.bf16 %v4636, %v4635
    %v4739 = vpack.c.bf16 %v4708, %v4705
    %v4740 = vpack.c.bf16 %v4716, %v4713
    %v4741 = vpack.c.bf16 %v4724, %v4721
    %v4742 = vpack.c.bf16 %v4732, %v4729
    %v4744 = vsel %vm288, %v4735, 0
    %v4747 = vsel %vm288, %v4736, 0
    %v4750 = vsel %vm288, %v4737, 0
    %v4753 = vsel %vm288, %v4738, 0
    %4755 = vmatprep.subr.bf16.mxu0 0
    %4756 = vmatpush1.bf16.msra.mxu0 %v4739
    %4757 = vmatprep.subr.bf16.mxu0 0
    %4758 = vmatpush1.bf16.msra.mxu0 %v4740
    %4759 = vmatprep.subr.bf16.mxu0 0
    %4760 = vmatpush1.bf16.msra.mxu0 %v4741
    %4761 = vmatprep.subr.bf16.mxu0 0
    %4762 = vmatpush1.bf16.msra.mxu0 %v4742
    %4763 = vmatprep.subr.bf16.mxu0 0
    %4764 = vmatpush1.bf16.msra.mxu0 0
    %4765 = vmatprep.subr.bf16.mxu0 0
    %4766 = vmatpush1.bf16.msra.mxu0 0
    %4767 = vmatprep.subr.bf16.mxu0 0
    %4768 = vmatpush1.bf16.msra.mxu0 0
    %4769 = vmatprep.subr.bf16.mxu0 0
    %4770 = vmatpush1.bf16.msra.mxu0 0
    %4771 = vmatprep.subr.bf16.mxu0 0
    %4772 = vmatpush1.bf16.msra.mxu0 0
    %4773 = vmatprep.subr.bf16.mxu0 0
    %4774 = vmatpush1.bf16.msra.mxu0 0
    %4775 = vmatprep.subr.bf16.mxu0 0
    %4776 = vmatpush1.bf16.msra.mxu0 0
    %4777 = vmatprep.subr.bf16.mxu0 0
    %4778 = vmatpush1.bf16.msra.mxu0 0
    %4779 = vmatprep.subr.bf16.mxu0 0
    %4780 = vmatpush1.bf16.msra.mxu0 0
    %4781 = vmatprep.subr.bf16.mxu0 0
    %4782 = vmatpush1.bf16.msra.mxu0 0
    %4783 = vmatprep.subr.bf16.mxu0 0
    %4784 = vmatpush1.bf16.msra.mxu0 0
    %4785 = vmatprep.subr.bf16.mxu0 0
    %4786 = vmatpush1.bf16.msra.mxu0 0
    %4787 = vmatprep.mubr.bf16.mxu0 0
    %4788 = vmatmul.mubr.bf16.gmra.mrb[0].mxu0 %v4744
    %v4789 = vpop.f32.mrb[0].mxu0
    %v4790 = vadd.f32 0.0, %v4789
    %v4791 = vpop.f32.mrb[0].mxu0
    %v4792 = vpop.f32.mrb[0].mxu0
    %v4793 = vadd.f32 0.0, %v4792
    %v4794 = vpop.f32.mrb[0].mxu0
    %4795 = vmatprep.mubr.bf16.mxu0 0
    %4796 = vmatmul.mubr.bf16.gmra.mrb[0].mxu0 %v4747
    %v4797 = vpop.f32.mrb[0].mxu0
    %v4798 = vadd.f32 0.0, %v4797
    %v4799 = vpop.f32.mrb[0].mxu0
    %v4800 = vpop.f32.mrb[0].mxu0
    %v4801 = vadd.f32 0.0, %v4800
    %v4802 = vpop.f32.mrb[0].mxu0
    %4803 = vmatprep.mubr.bf16.mxu0 0
    %4804 = vmatmul.mubr.bf16.gmra.mrb[0].mxu0 %v4750
    %v4805 = vpop.f32.mrb[0].mxu0
    %v4806 = vadd.f32 0.0, %v4805
    %v4807 = vpop.f32.mrb[0].mxu0
    %v4808 = vpop.f32.mrb[0].mxu0
    %v4809 = vadd.f32 0.0, %v4808
    %v4810 = vpop.f32.mrb[0].mxu0
    %4811 = vmatprep.mubr.bf16.mxu0 0
    %4812 = vmatmul.mubr.bf16.gmra.mrb[0].mxu0 %v4753
    %v4813 = vpop.f32.mrb[0].mxu0
    %v4814 = vadd.f32 0.0, %v4813
    %v4815 = vpop.f32.mrb[0].mxu0
    %v4816 = vpop.f32.mrb[0].mxu0
    %v4817 = vadd.f32 0.0, %v4816
    %v4818 = vpop.f32.mrb[0].mxu0
    %4819 = vdwg.mxu0
    %v4820 = vadd.f32 %v4354, %v4790
    %v4821 = vadd.f32 %v4355, %v4793
    %v4822 = vadd.f32 %v4356, %v4798
    %v4823 = vadd.f32 %v4357, %v4801
    %v4824 = vadd.f32 %v4358, %v4806
    %v4825 = vadd.f32 %v4359, %v4809
    %v4826 = vadd.f32 %v4360, %v4814
    %v4827 = vadd.f32 %v4361, %v4817
    %s4828 = scalar_lea.vmem [#allocation7], 8
    %v4829 = vld [vmem:[%s4828] sm:$0x1]
    %v4831 = vlaneseq
    %v4832 = vshrl.u32 %v4831, 7
    %v4833 = vsub.s32 0, %v4832
    %v4834 = vrot.slane %v4829, %v4833
    %v4836 = vadd.f32 %v4820, %v4834
    %v4837 = vadd.f32 %v4821, %v4834
    %v4838 = vadd.f32 %v4822, %v4834
    %v4839 = vadd.f32 %v4823, %v4834
    %v4840 = vadd.f32 %v4824, %v4834
    %v4841 = vadd.f32 %v4825, %v4834
    %v4842 = vadd.f32 %v4826, %v4834
    %v4843 = vadd.f32 %v4827, %v4834
    %v4844 = vadd.f32 %v2814, %v4836
    %v4845 = vadd.f32 %v2815, %v4837
    %v4846 = vadd.f32 %v2816, %v4838
    %v4847 = vadd.f32 %v2817, %v4839
    %v4848 = vadd.f32 %v2818, %v4840
    %v4849 = vadd.f32 %v2819, %v4841
    %v4850 = vadd.f32 %v2820, %v4842
    %v4851 = vadd.f32 %v2821, %v4843
    %s4852 = scalar_lea.vmem [#allocation7], 9
    %v4853 = vld [vmem:[%s4852] sm:$0x1]
    %s4854 = scalar_lea.vmem [#allocation7], 10
    %v4855 = vld [vmem:[%s4854] sm:$0x1]
    %v4856 = vsel %vm288, %v4844, 0.0
    %4857 = vadd.xlane.f32.xlu0 %v4856
    %v4858 = vpop.xlane.xlu0 %4857
    %v4859 = vsel %vm288, %v4845, 0.0
    %4860 = vadd.xlane.f32.xlu0 %v4859
    %v4861 = vpop.xlane.xlu0 %4860
    %v4862 = vsel %vm288, %v4846, 0.0
    %4863 = vadd.xlane.f32.xlu0 %v4862
    %v4864 = vpop.xlane.xlu0 %4863
    %v4865 = vsel %vm288, %v4847, 0.0
    %4866 = vadd.xlane.f32.xlu0 %v4865
    %v4867 = vpop.xlane.xlu0 %4866
    %v4868 = vsel %vm288, %v4848, 0.0
    %4869 = vadd.xlane.f32.xlu0 %v4868
    %v4870 = vpop.xlane.xlu0 %4869
    %v4871 = vsel %vm288, %v4849, 0.0
    %4872 = vadd.xlane.f32.xlu0 %v4871
    %v4873 = vpop.xlane.xlu0 %4872
    %v4874 = vsel %vm288, %v4850, 0.0
    %4875 = vadd.xlane.f32.xlu0 %v4874
    %v4876 = vpop.xlane.xlu0 %4875
    %v4877 = vsel %vm288, %v4851, 0.0
    %4878 = vadd.xlane.f32.xlu0 %v4877
    %v4879 = vpop.xlane.xlu0 %4878
    %v4880 = vmul.f32 %v4858, %v2300
    %v4881 = vmul.f32 %v4861, %v2300
    %v4882 = vmul.f32 %v4864, %v2300
    %v4883 = vmul.f32 %v4867, %v2300
    %v4884 = vmul.f32 %v4870, %v2300
    %v4885 = vmul.f32 %v4873, %v2300
    %v4886 = vmul.f32 %v4876, %v2300
    %v4887 = vmul.f32 %v4879, %v2300
    %v4888 = vsub.f32 %v4844, %v4880
    %v4889 = vsub.f32 %v4845, %v4881
    %v4890 = vsub.f32 %v4846, %v4882
    %v4891 = vsub.f32 %v4847, %v4883
    %v4892 = vsub.f32 %v4848, %v4884
    %v4893 = vsub.f32 %v4849, %v4885
    %v4894 = vsub.f32 %v4850, %v4886
    %v4895 = vsub.f32 %v4851, %v4887
    %v4896 = vmul.f32 %v4888, %v4888
    %v4897 = vmul.f32 %v4889, %v4889
    %v4898 = vmul.f32 %v4890, %v4890
    %v4899 = vmul.f32 %v4891, %v4891
    %v4900 = vmul.f32 %v4892, %v4892
    %v4901 = vmul.f32 %v4893, %v4893
    %v4902 = vmul.f32 %v4894, %v4894
    %v4903 = vmul.f32 %v4895, %v4895
    %v4904 = vsel %vm288, %v4896, 0.0
    %4905 = vadd.xlane.f32.xlu0 %v4904
    %v4906 = vpop.xlane.xlu0 %4905
    %v4907 = vsel %vm288, %v4897, 0.0
    %4908 = vadd.xlane.f32.xlu0 %v4907
    %v4909 = vpop.xlane.xlu0 %4908
    %v4910 = vsel %vm288, %v4898, 0.0
    %4911 = vadd.xlane.f32.xlu0 %v4910
    %v4912 = vpop.xlane.xlu0 %4911
    %v4913 = vsel %vm288, %v4899, 0.0
    %4914 = vadd.xlane.f32.xlu0 %v4913
    %v4915 = vpop.xlane.xlu0 %4914
    %v4916 = vsel %vm288, %v4900, 0.0
    %4917 = vadd.xlane.f32.xlu0 %v4916
    %v4918 = vpop.xlane.xlu0 %4917
    %v4919 = vsel %vm288, %v4901, 0.0
    %4920 = vadd.xlane.f32.xlu0 %v4919
    %v4921 = vpop.xlane.xlu0 %4920
    %v4922 = vsel %vm288, %v4902, 0.0
    %4923 = vadd.xlane.f32.xlu0 %v4922
    %v4924 = vpop.xlane.xlu0 %4923
    %v4925 = vsel %vm288, %v4903, 0.0
    %4926 = vadd.xlane.f32.xlu0 %v4925
    %v4927 = vpop.xlane.xlu0 %4926
    %v4928 = vmul.f32 %v4906, %v2300
    %v4929 = vmul.f32 %v4909, %v2300
    %v4930 = vmul.f32 %v4912, %v2300
    %v4931 = vmul.f32 %v4915, %v2300
    %v4932 = vmul.f32 %v4918, %v2300
    %v4933 = vmul.f32 %v4921, %v2300
    %v4934 = vmul.f32 %v4924, %v2300
    %v4935 = vmul.f32 %v4927, %v2300
    %v4936 = vadd.f32 %v4928, 1e-05
    %v4937 = vadd.f32 %v4929, 1e-05
    %v4938 = vadd.f32 %v4930, 1e-05
    %v4939 = vadd.f32 %v4931, 1e-05
    %v4940 = vadd.f32 %v4932, 1e-05
    %v4941 = vadd.f32 %v4933, 1e-05
    %v4942 = vadd.f32 %v4934, 1e-05
    %v4943 = vadd.f32 %v4935, 1e-05
    %v4944 = vrsqrt.pop %v4936
    %v4945 = vrsqrt.pop %v4937
    %v4946 = vrsqrt.pop %v4938
    %v4947 = vrsqrt.pop %v4939
    %v4948 = vrsqrt.pop %v4940
    %v4949 = vrsqrt.pop %v4941
    %v4950 = vrsqrt.pop %v4942
    %v4951 = vrsqrt.pop %v4943
    %v4952 = vmul.f32 %v4888, %v4944
    %v4953 = vmul.f32 %v4889, %v4945
    %v4954 = vmul.f32 %v4890, %v4946
    %v4955 = vmul.f32 %v4891, %v4947
    %v4956 = vmul.f32 %v4892, %v4948
    %v4957 = vmul.f32 %v4893, %v4949
    %v4958 = vmul.f32 %v4894, %v4950
    %v4959 = vmul.f32 %v4895, %v4951
    %v4961 = vlaneseq
    %v4962 = vshrl.u32 %v4961, 7
    %v4963 = vsub.s32 0, %v4962
    %v4964 = vrot.slane %v4853, %v4963
    %v4966 = vmul.f32 %v4952, %v4964
    %v4967 = vmul.f32 %v4953, %v4964
    %v4968 = vmul.f32 %v4954, %v4964
    %v4969 = vmul.f32 %v4955, %v4964
    %v4970 = vmul.f32 %v4956, %v4964
    %v4971 = vmul.f32 %v4957, %v4964
    %v4972 = vmul.f32 %v4958, %v4964
    %v4973 = vmul.f32 %v4959, %v4964
    %v4975 = vlaneseq
    %v4976 = vshrl.u32 %v4975, 7
    %v4977 = vsub.s32 0, %v4976
    %v4978 = vrot.slane %v4855, %v4977
    %v4980 = vadd.f32 %v4966, %v4978
    %v4981 = vadd.f32 %v4967, %v4978
    %v4982 = vadd.f32 %v4968, %v4978
    %v4983 = vadd.f32 %v4969, %v4978
    %v4984 = vadd.f32 %v4970, %v4978
    %v4985 = vadd.f32 %v4971, %v4978
    %v4986 = vadd.f32 %v4972, %v4978
    %v4987 = vadd.f32 %v4973, %v4978
    %v4988 = vpack.c.bf16 %v4981, %v4980
    %v4989 = vpack.c.bf16 %v4983, %v4982
    %v4990 = vpack.c.bf16 %v4985, %v4984
    %v4991 = vpack.c.bf16 %v4987, %v4986
    %s4992 = scalar_lea.vmem %s7, 32
    %v4993 = vld [vmem:[%s4992] sm:$0xf]
    %v4994 = vld [vmem:[%s4992 + $0x4] sm:$0xf]
    %v4995 = vld [vmem:[%s4992 + $0x8] sm:$0xf]
    %v4996 = vld [vmem:[%s4992 + $0xc] sm:$0xf]
    %v4997 = vld [vmem:[%s4992 + $0x10] sm:$0xf]
    %v4998 = vld [vmem:[%s4992 + $0x14] sm:$0xf]
    %v4999 = vld [vmem:[%s4992 + $0x18] sm:$0xf]
    %v5000 = vld [vmem:[%s4992 + $0x1c] sm:$0xf]
    %s5001 = scalar_lea.vmem %s8, 1
    %v5002 = vld [vmem:[%s5001] sm:$0x1]
    %v5004 = vlaneseq
    %v5005 = vshrl.u32 %v5004, 7
    %v5006 = vsub.s32 0, %v5005
    %v5007 = vrot.slane %v5002, %v5006
    %v5017 = vunpack.c.l.b16 %v4993
    %v5018 = vunpack.c.l.b16 %v4994
    %v5019 = vunpack.c.l.b16 %v4995
    %v5020 = vunpack.c.l.b16 %v4996
    %v5021 = vunpack.c.l.b16 %v4997
    %v5022 = vunpack.c.l.b16 %v4998
    %v5023 = vunpack.c.l.b16 %v4999
    %v5024 = vunpack.c.l.b16 %v5000
    %v5025 = vpack.c.b16 %v5018, %v5017
    %v5026 = vpack.c.b16 %v5020, %v5019
    %v5027 = vpack.c.b16 %v5022, %v5021
    %v5028 = vpack.c.b16 %v5024, %v5023
    %v5034 = vsel %vm288, %v4988, 0
    %v5037 = vsel %vm288, %v4989, 0
    %v5040 = vsel %vm288, %v4990, 0
    %v5043 = vsel %vm288, %v4991, 0
    %5045 = vmatprep.subr.bf16.mxu0 0
    %5046 = vmatpush1.bf16.msra.mxu0 %v5025
    %5047 = vmatprep.subr.bf16.mxu0 0
    %5048 = vmatpush1.bf16.msra.mxu0 %v5026
    %5049 = vmatprep.subr.bf16.mxu0 0
    %5050 = vmatpush1.bf16.msra.mxu0 %v5027
    %5051 = vmatprep.subr.bf16.mxu0 0
    %5052 = vmatpush1.bf16.msra.mxu0 %v5028
    %5053 = vmatprep.subr.bf16.mxu0 0
    %5054 = vmatpush1.bf16.msra.mxu0 0
    %5055 = vmatprep.subr.bf16.mxu0 0
    %5056 = vmatpush1.bf16.msra.mxu0 0
    %5057 = vmatprep.subr.bf16.mxu0 0
    %5058 = vmatpush1.bf16.msra.mxu0 0
    %5059 = vmatprep.subr.bf16.mxu0 0
    %5060 = vmatpush1.bf16.msra.mxu0 0
    %5061 = vmatprep.subr.bf16.mxu0 0
    %5062 = vmatpush1.bf16.msra.mxu0 0
    %5063 = vmatprep.subr.bf16.mxu0 0
    %5064 = vmatpush1.bf16.msra.mxu0 0
    %5065 = vmatprep.subr.bf16.mxu0 0
    %5066 = vmatpush1.bf16.msra.mxu0 0
    %5067 = vmatprep.subr.bf16.mxu0 0
    %5068 = vmatpush1.bf16.msra.mxu0 0
    %5069 = vmatprep.subr.bf16.mxu0 0
    %5070 = vmatpush1.bf16.msra.mxu0 0
    %5071 = vmatprep.subr.bf16.mxu0 0
    %5072 = vmatpush1.bf16.msra.mxu0 0
    %5073 = vmatprep.subr.bf16.mxu0 0
    %5074 = vmatpush1.bf16.msra.mxu0 0
    %5075 = vmatprep.subr.bf16.mxu0 0
    %5076 = vmatpush1.bf16.msra.mxu0 0
    %5077 = vmatprep.mubr.bf16.mxu0 0
    %5078 = vmatmul.mubr.bf16.gmra.mrb[0].mxu0 %v5034
    %v5079 = vpop.f32.mrb[0].mxu0
    %v5080 = vadd.f32 %v5007, %v5079
    %v5081 = vpop.f32.mrb[0].mxu0
    %v5082 = vpop.f32.mrb[0].mxu0
    %v5083 = vadd.f32 %v5007, %v5082
    %v5084 = vpop.f32.mrb[0].mxu0
    %5085 = vmatprep.mubr.bf16.mxu0 0
    %5086 = vmatmul.mubr.bf16.gmra.mrb[0].mxu0 %v5037
    %v5087 = vpop.f32.mrb[0].mxu0
    %v5088 = vadd.f32 %v5007, %v5087
    %v5089 = vpop.f32.mrb[0].mxu0
    %v5090 = vpop.f32.mrb[0].mxu0
    %v5091 = vadd.f32 %v5007, %v5090
    %v5092 = vpop.f32.mrb[0].mxu0
    %5093 = vmatprep.mubr.bf16.mxu0 0
    %5094 = vmatmul.mubr.bf16.gmra.mrb[0].mxu0 %v5040
    %v5095 = vpop.f32.mrb[0].mxu0
    %v5096 = vadd.f32 %v5007, %v5095
    %v5097 = vpop.f32.mrb[0].mxu0
    %v5098 = vpop.f32.mrb[0].mxu0
    %v5099 = vadd.f32 %v5007, %v5098
    %v5100 = vpop.f32.mrb[0].mxu0
    %5101 = vmatprep.mubr.bf16.mxu0 0
    %5102 = vmatmul.mubr.bf16.gmra.mrb[0].mxu0 %v5043
    %v5103 = vpop.f32.mrb[0].mxu0
    %v5104 = vadd.f32 %v5007, %v5103
    %v5105 = vpop.f32.mrb[0].mxu0
    %v5106 = vpop.f32.mrb[0].mxu0
    %v5107 = vadd.f32 %v5007, %v5106
    %v5108 = vpop.f32.mrb[0].mxu0
    %5109 = vdwg.mxu0
    %v5110 = vmax.f32 %v5080, 0.0
    %v5111 = vmax.f32 %v5083, 0.0
    %v5112 = vmax.f32 %v5088, 0.0
    %v5113 = vmax.f32 %v5091, 0.0
    %v5114 = vmax.f32 %v5096, 0.0
    %v5115 = vmax.f32 %v5099, 0.0
    %v5116 = vmax.f32 %v5104, 0.0
    %v5117 = vmax.f32 %v5107, 0.0
    %v5118 = vpack.c.bf16 %v5111, %v5110
    %v5119 = vpack.c.bf16 %v5113, %v5112
    %v5120 = vpack.c.bf16 %v5115, %v5114
    %v5121 = vpack.c.bf16 %v5117, %v5116
    %s5122 = scalar_lea.vmem %s9, 64
    %v5123 = vld [vmem:[%s5122] sm:$0xf]
    %v5124 = vld [vmem:[%s5122 + $0x4] sm:$0xf]
    %v5125 = vld [vmem:[%s5122 + $0x8] sm:$0xf]
    %v5126 = vld [vmem:[%s5122 + $0xc] sm:$0xf]
    %v5127 = vld [vmem:[%s5122 + $0x10] sm:$0xf]
    %v5128 = vld [vmem:[%s5122 + $0x14] sm:$0xf]
    %v5129 = vld [vmem:[%s5122 + $0x18] sm:$0xf]
    %v5130 = vld [vmem:[%s5122 + $0x1c] sm:$0xf]
    %v5131 = vld [vmem:[%s5122 + $0x20] sm:$0xf]
    %v5132 = vld [vmem:[%s5122 + $0x24] sm:$0xf]
    %v5133 = vld [vmem:[%s5122 + $0x28] sm:$0xf]
    %v5134 = vld [vmem:[%s5122 + $0x2c] sm:$0xf]
    %v5135 = vld [vmem:[%s5122 + $0x30] sm:$0xf]
    %v5136 = vld [vmem:[%s5122 + $0x34] sm:$0xf]
    %v5137 = vld [vmem:[%s5122 + $0x38] sm:$0xf]
    %v5138 = vld [vmem:[%s5122 + $0x3c] sm:$0xf]
    %s5139 = scalar_lea.vmem [#allocation7], 11
    %v5140 = vld [vmem:[%s5139] sm:$0x1]
    %v5142 = vlaneseq
    %v5143 = vshrl.u32 %v5142, 7
    %v5144 = vsub.s32 0, %v5143
    %v5145 = vrot.slane %v5140, %v5144
    %v5163 = vunpack.c.l.b16 %v5123
    %v5164 = vunpack.c.l.b16 %v5124
    %v5165 = vunpack.c.l.b16 %v5125
    %v5166 = vunpack.c.l.b16 %v5126
    %v5167 = vunpack.c.l.b16 %v5127
    %v5168 = vunpack.c.l.b16 %v5128
    %v5169 = vunpack.c.l.b16 %v5129
    %v5170 = vunpack.c.l.b16 %v5130
    %v5171 = vunpack.c.l.b16 %v5131
    %v5172 = vunpack.c.l.b16 %v5132
    %v5173 = vunpack.c.l.b16 %v5133
    %v5174 = vunpack.c.l.b16 %v5134
    %v5175 = vunpack.c.l.b16 %v5135
    %v5176 = vunpack.c.l.b16 %v5136
    %v5177 = vunpack.c.l.b16 %v5137
    %v5178 = vunpack.c.l.b16 %v5138
    %v5179 = vpack.c.b16 %v5164, %v5163
    %v5180 = vpack.c.b16 %v5166, %v5165
    %v5181 = vpack.c.b16 %v5168, %v5167
    %v5182 = vpack.c.b16 %v5170, %v5169
    %v5183 = vpack.c.b16 %v5172, %v5171
    %v5184 = vpack.c.b16 %v5174, %v5173
    %v5185 = vpack.c.b16 %v5176, %v5175
    %v5186 = vpack.c.b16 %v5178, %v5177
    %5195 = vmatprep.subr.bf16.mxu0 0
    %5196 = vmatpush1.bf16.msra.mxu0 %v5179
    %5197 = vmatprep.subr.bf16.mxu0 0
    %5198 = vmatpush1.bf16.msra.mxu0 %v5180
    %5199 = vmatprep.subr.bf16.mxu0 0
    %5200 = vmatpush1.bf16.msra.mxu0 %v5181
    %5201 = vmatprep.subr.bf16.mxu0 0
    %5202 = vmatpush1.bf16.msra.mxu0 %v5182
    %5203 = vmatprep.subr.bf16.mxu0 0
    %5204 = vmatpush1.bf16.msra.mxu0 %v5183
    %5205 = vmatprep.subr.bf16.mxu0 0
    %5206 = vmatpush1.bf16.msra.mxu0 %v5184
    %5207 = vmatprep.subr.bf16.mxu0 0
    %5208 = vmatpush1.bf16.msra.mxu0 %v5185
    %5209 = vmatprep.subr.bf16.mxu0 0
    %5210 = vmatpush1.bf16.msra.mxu0 %v5186
    %5211 = vmatprep.subr.bf16.mxu0 0
    %5212 = vmatpush1.bf16.msra.mxu0 0
    %5213 = vmatprep.subr.bf16.mxu0 0
    %5214 = vmatpush1.bf16.msra.mxu0 0
    %5215 = vmatprep.subr.bf16.mxu0 0
    %5216 = vmatpush1.bf16.msra.mxu0 0
    %5217 = vmatprep.subr.bf16.mxu0 0
    %5218 = vmatpush1.bf16.msra.mxu0 0
    %5219 = vmatprep.subr.bf16.mxu0 0
    %5220 = vmatpush1.bf16.msra.mxu0 0
    %5221 = vmatprep.subr.bf16.mxu0 0
    %5222 = vmatpush1.bf16.msra.mxu0 0
    %5223 = vmatprep.subr.bf16.mxu0 0
    %5224 = vmatpush1.bf16.msra.mxu0 0
    %5225 = vmatprep.subr.bf16.mxu0 0
    %5226 = vmatpush1.bf16.msra.mxu0 0
    %5227 = vmatprep.mubr.bf16.mxu0 0
    %5228 = vmatmul.mubr.bf16.gmra.mrb[0].mxu0 %v5118
    %v5229 = vpop.f32.mrb[0].mxu0
    %v5230 = vadd.f32 %v5145, %v5229
    %v5231 = vpop.f32.mrb[0].mxu0
    %v5232 = vpop.f32.mrb[0].mxu0
    %v5233 = vadd.f32 %v5145, %v5232
    %v5234 = vpop.f32.mrb[0].mxu0
    %5235 = vmatprep.mubr.bf16.mxu0 0
    %5236 = vmatmul.mubr.bf16.gmra.mrb[0].mxu0 %v5119
    %v5237 = vpop.f32.mrb[0].mxu0
    %v5238 = vadd.f32 %v5145, %v5237
    %v5239 = vpop.f32.mrb[0].mxu0
    %v5240 = vpop.f32.mrb[0].mxu0
    %v5241 = vadd.f32 %v5145, %v5240
    %v5242 = vpop.f32.mrb[0].mxu0
    %5243 = vmatprep.mubr.bf16.mxu0 0
    %5244 = vmatmul.mubr.bf16.gmra.mrb[0].mxu0 %v5120
    %v5245 = vpop.f32.mrb[0].mxu0
    %v5246 = vadd.f32 %v5145, %v5245
    %v5247 = vpop.f32.mrb[0].mxu0
    %v5248 = vpop.f32.mrb[0].mxu0
    %v5249 = vadd.f32 %v5145, %v5248
    %v5250 = vpop.f32.mrb[0].mxu0
    %5251 = vmatprep.mubr.bf16.mxu0 0
    %5252 = vmatmul.mubr.bf16.gmra.mrb[0].mxu0 %v5121
    %v5253 = vpop.f32.mrb[0].mxu0
    %v5254 = vadd.f32 %v5145, %v5253
    %v5255 = vpop.f32.mrb[0].mxu0
    %v5256 = vpop.f32.mrb[0].mxu0
    %v5257 = vadd.f32 %v5145, %v5256
    %v5258 = vpop.f32.mrb[0].mxu0
    %5259 = vdwg.mxu0
    %v5260 = vadd.f32 %v4980, %v5230
    %v5261 = vadd.f32 %v4981, %v5233
    %v5262 = vadd.f32 %v4982, %v5238
    %v5263 = vadd.f32 %v4983, %v5241
    %v5264 = vadd.f32 %v4984, %v5246
    %v5265 = vadd.f32 %v4985, %v5249
    %v5266 = vadd.f32 %v4986, %v5254
    %v5267 = vadd.f32 %v4987, %v5257
    %s5268 = scalar_lea.vmem [#allocation7], 12
    %v5269 = vld [vmem:[%s5268] sm:$0x1]
    %s5270 = scalar_lea.vmem [#allocation7], 13
    %v5271 = vld [vmem:[%s5270] sm:$0x1]
    %v5272 = vsel %vm288, %v5260, 0.0
    %5273 = vadd.xlane.f32.xlu0 %v5272
    %v5274 = vpop.xlane.xlu0 %5273
    %v5275 = vsel %vm288, %v5261, 0.0
    %5276 = vadd.xlane.f32.xlu0 %v5275
    %v5277 = vpop.xlane.xlu0 %5276
    %v5278 = vsel %vm288, %v5262, 0.0
    %5279 = vadd.xlane.f32.xlu0 %v5278
    %v5280 = vpop.xlane.xlu0 %5279
    %v5281 = vsel %vm288, %v5263, 0.0
    %5282 = vadd.xlane.f32.xlu0 %v5281
    %v5283 = vpop.xlane.xlu0 %5282
    %v5284 = vsel %vm288, %v5264, 0.0
    %5285 = vadd.xlane.f32.xlu0 %v5284
    %v5286 = vpop.xlane.xlu0 %5285
    %v5287 = vsel %vm288, %v5265, 0.0
    %5288 = vadd.xlane.f32.xlu0 %v5287
    %v5289 = vpop.xlane.xlu0 %5288
    %v5290 = vsel %vm288, %v5266, 0.0
    %5291 = vadd.xlane.f32.xlu0 %v5290
    %v5292 = vpop.xlane.xlu0 %5291
    %v5293 = vsel %vm288, %v5267, 0.0
    %5294 = vadd.xlane.f32.xlu0 %v5293
    %v5295 = vpop.xlane.xlu0 %5294
    %v5296 = vmul.f32 %v5274, %v2300
    %v5297 = vmul.f32 %v5277, %v2300
    %v5298 = vmul.f32 %v5280, %v2300
    %v5299 = vmul.f32 %v5283, %v2300
    %v5300 = vmul.f32 %v5286, %v2300
    %v5301 = vmul.f32 %v5289, %v2300
    %v5302 = vmul.f32 %v5292, %v2300
    %v5303 = vmul.f32 %v5295, %v2300
    %v5304 = vsub.f32 %v5260, %v5296
    %v5305 = vsub.f32 %v5261, %v5297
    %v5306 = vsub.f32 %v5262, %v5298
    %v5307 = vsub.f32 %v5263, %v5299
    %v5308 = vsub.f32 %v5264, %v5300
    %v5309 = vsub.f32 %v5265, %v5301
    %v5310 = vsub.f32 %v5266, %v5302
    %v5311 = vsub.f32 %v5267, %v5303
    %v5312 = vmul.f32 %v5304, %v5304
    %v5313 = vmul.f32 %v5305, %v5305
    %v5314 = vmul.f32 %v5306, %v5306
    %v5315 = vmul.f32 %v5307, %v5307
    %v5316 = vmul.f32 %v5308, %v5308
    %v5317 = vmul.f32 %v5309, %v5309
    %v5318 = vmul.f32 %v5310, %v5310
    %v5319 = vmul.f32 %v5311, %v5311
    %v5320 = vsel %vm288, %v5312, 0.0
    %5321 = vadd.xlane.f32.xlu0 %v5320
    %v5322 = vpop.xlane.xlu0 %5321
    %v5323 = vsel %vm288, %v5313, 0.0
    %5324 = vadd.xlane.f32.xlu0 %v5323
    %v5325 = vpop.xlane.xlu0 %5324
    %v5326 = vsel %vm288, %v5314, 0.0
    %5327 = vadd.xlane.f32.xlu0 %v5326
    %v5328 = vpop.xlane.xlu0 %5327
    %v5329 = vsel %vm288, %v5315, 0.0
    %5330 = vadd.xlane.f32.xlu0 %v5329
    %v5331 = vpop.xlane.xlu0 %5330
    %v5332 = vsel %vm288, %v5316, 0.0
    %5333 = vadd.xlane.f32.xlu0 %v5332
    %v5334 = vpop.xlane.xlu0 %5333
    %v5335 = vsel %vm288, %v5317, 0.0
    %5336 = vadd.xlane.f32.xlu0 %v5335
    %v5337 = vpop.xlane.xlu0 %5336
    %v5338 = vsel %vm288, %v5318, 0.0
    %5339 = vadd.xlane.f32.xlu0 %v5338
    %v5340 = vpop.xlane.xlu0 %5339
    %v5341 = vsel %vm288, %v5319, 0.0
    %5342 = vadd.xlane.f32.xlu0 %v5341
    %v5343 = vpop.xlane.xlu0 %5342
    %v5344 = vmul.f32 %v5322, %v2300
    %v5345 = vmul.f32 %v5325, %v2300
    %v5346 = vmul.f32 %v5328, %v2300
    %v5347 = vmul.f32 %v5331, %v2300
    %v5348 = vmul.f32 %v5334, %v2300
    %v5349 = vmul.f32 %v5337, %v2300
    %v5350 = vmul.f32 %v5340, %v2300
    %v5351 = vmul.f32 %v5343, %v2300
    %v5352 = vadd.f32 %v5344, 1e-05
    %v5353 = vadd.f32 %v5345, 1e-05
    %v5354 = vadd.f32 %v5346, 1e-05
    %v5355 = vadd.f32 %v5347, 1e-05
    %v5356 = vadd.f32 %v5348, 1e-05
    %v5357 = vadd.f32 %v5349, 1e-05
    %v5358 = vadd.f32 %v5350, 1e-05
    %v5359 = vadd.f32 %v5351, 1e-05
    %v5360 = vrsqrt.pop %v5352
    %v5361 = vrsqrt.pop %v5353
    %v5362 = vrsqrt.pop %v5354
    %v5363 = vrsqrt.pop %v5355
    %v5364 = vrsqrt.pop %v5356
    %v5365 = vrsqrt.pop %v5357
    %v5366 = vrsqrt.pop %v5358
    %v5367 = vrsqrt.pop %v5359
    %v5368 = vmul.f32 %v5304, %v5360
    %v5369 = vmul.f32 %v5305, %v5361
    %v5370 = vmul.f32 %v5306, %v5362
    %v5371 = vmul.f32 %v5307, %v5363
    %v5372 = vmul.f32 %v5308, %v5364
    %v5373 = vmul.f32 %v5309, %v5365
    %v5374 = vmul.f32 %v5310, %v5366
    %v5375 = vmul.f32 %v5311, %v5367
    %v5377 = vlaneseq
    %v5378 = vshrl.u32 %v5377, 7
    %v5379 = vsub.s32 0, %v5378
    %v5380 = vrot.slane %v5269, %v5379
    %v5382 = vmul.f32 %v5368, %v5380
    %v5383 = vmul.f32 %v5369, %v5380
    %v5384 = vmul.f32 %v5370, %v5380
    %v5385 = vmul.f32 %v5371, %v5380
    %v5386 = vmul.f32 %v5372, %v5380
    %v5387 = vmul.f32 %v5373, %v5380
    %v5388 = vmul.f32 %v5374, %v5380
    %v5389 = vmul.f32 %v5375, %v5380
    %v5391 = vlaneseq
    %v5392 = vshrl.u32 %v5391, 7
    %v5393 = vsub.s32 0, %v5392
    %v5394 = vrot.slane %v5271, %v5393
    %v5396 = vadd.f32 %v5382, %v5394
    %v5397 = vadd.f32 %v5383, %v5394
    %v5398 = vadd.f32 %v5384, %v5394
    %v5399 = vadd.f32 %v5385, %v5394
    %v5400 = vadd.f32 %v5386, %v5394
    %v5401 = vadd.f32 %v5387, %v5394
    %v5402 = vadd.f32 %v5388, %v5394
    %v5403 = vadd.f32 %v5389, %v5394
    %v5404 = vld [vmem:[%s12] sm:$0x1]
    %v5405 = vpack.c.bf16 %v5397, %v5396
    %v5406 = vpack.c.bf16 %v5399, %v5398
    %v5407 = vpack.c.bf16 %v5401, %v5400
    %v5408 = vpack.c.bf16 %v5403, %v5402
    %v5410 = vsel %vm288, %v5404, 0
    %5412 = vmatprep.subr.bf16.mxu0 0
    %5413 = vmatpush1.bf16.msra.mxu0 %v5405
    %5414 = vmatprep.subr.bf16.mxu0 0
    %5415 = vmatpush1.bf16.msra.mxu0 %v5406
    %5416 = vmatprep.subr.bf16.mxu0 0
    %5417 = vmatpush1.bf16.msra.mxu0 %v5407
    %5418 = vmatprep.subr.bf16.mxu0 0
    %5419 = vmatpush1.bf16.msra.mxu0 %v5408
    %5420 = vmatprep.subr.bf16.mxu0 0
    %5421 = vmatpush1.bf16.msra.mxu0 0
    %5422 = vmatprep.subr.bf16.mxu0 0
    %5423 = vmatpush1.bf16.msra.mxu0 0
    %5424 = vmatprep.subr.bf16.mxu0 0
    %5425 = vmatpush1.bf16.msra.mxu0 0
    %5426 = vmatprep.subr.bf16.mxu0 0
    %5427 = vmatpush1.bf16.msra.mxu0 0
    %5428 = vmatprep.subr.bf16.mxu0 0
    %5429 = vmatpush1.bf16.msra.mxu0 0
    %5430 = vmatprep.subr.bf16.mxu0 0
    %5431 = vmatpush1.bf16.msra.mxu0 0
    %5432 = vmatprep.subr.bf16.mxu0 0
    %5433 = vmatpush1.bf16.msra.mxu0 0
    %5434 = vmatprep.subr.bf16.mxu0 0
    %5435 = vmatpush1.bf16.msra.mxu0 0
    %5436 = vmatprep.subr.bf16.mxu0 0
    %5437 = vmatpush1.bf16.msra.mxu0 0
    %5438 = vmatprep.subr.bf16.mxu0 0
    %5439 = vmatpush1.bf16.msra.mxu0 0
    %5440 = vmatprep.subr.bf16.mxu0 0
    %5441 = vmatpush1.bf16.msra.mxu0 0
    %5442 = vmatprep.subr.bf16.mxu0 0
    %5443 = vmatpush1.bf16.msra.mxu0 0
    %5444 = vmatprep.mubr.bf16.mxu0 0
    %5445 = vmatmul.mubr.bf16.gmra.mrb[0].mxu0 %v5410
    %v5446 = vpop.f32.mrb[0].mxu0
    %v5447 = vadd.f32 0.0, %v5446
    %v5448 = vpop.f32.mrb[0].mxu0
    %v5449 = vpop.f32.mrb[0].mxu0
    %v5450 = vpop.f32.mrb[0].mxu0
    %5451 = vdwg.mxu0
    %v5452 = vpack.c.bf16 %v5447, %v5447
    %v5453 = vld [vmem:[%s13] sm:$0xf]
    %v5454 = vld [vmem:[%s13 + $0x4] sm:$0xf]
    %v5455 = vld [vmem:[%s13 + $0x8] sm:$0xf]
    %v5456 = vld [vmem:[%s13 + $0xc] sm:$0xf]
    %v5457 = vld [vmem:[%s13 + $0x10] sm:$0xf]
    %v5458 = vld [vmem:[%s13 + $0x14] sm:$0xf]
    %v5459 = vld [vmem:[%s13 + $0x18] sm:$0xf]
    %v5460 = vld [vmem:[%s13 + $0x1c] sm:$0xf]
    %v5461 = vld [vmem:[%s14] sm:$0x1]
    %v5463 = vlaneseq
    %v5464 = vshrl.u32 %v5463, 7
    %v5465 = vsub.s32 0, %v5464
    %v5466 = vrot.slane %v5461, %v5465
    %v5476 = vunpack.c.l.b16 %v5453
    %v5477 = vunpack.c.l.b16 %v5454
    %v5478 = vunpack.c.l.b16 %v5455
    %v5479 = vunpack.c.l.b16 %v5456
    %v5480 = vunpack.c.l.b16 %v5457
    %v5481 = vunpack.c.l.b16 %v5458
    %v5482 = vunpack.c.l.b16 %v5459
    %v5483 = vunpack.c.l.b16 %v5460
    %v5484 = vpack.c.b16 %v5477, %v5476
    %v5485 = vpack.c.b16 %v5479, %v5478
    %v5486 = vpack.c.b16 %v5481, %v5480
    %v5487 = vpack.c.b16 %v5483, %v5482
    %v5493 = vsel %vm288, %v5452, 0
    %5495 = vmatprep.subr.bf16.mxu0 0
    %5496 = vmatpush1.bf16.msra.mxu0 %v5484
    %5497 = vmatprep.subr.bf16.mxu0 0
    %5498 = vmatpush1.bf16.msra.mxu0 %v5485
    %5499 = vmatprep.subr.bf16.mxu0 0
    %5500 = vmatpush1.bf16.msra.mxu0 %v5486
    %5501 = vmatprep.subr.bf16.mxu0 0
    %5502 = vmatpush1.bf16.msra.mxu0 %v5487
    %5503 = vmatprep.subr.bf16.mxu0 0
    %5504 = vmatpush1.bf16.msra.mxu0 0
    %5505 = vmatprep.subr.bf16.mxu0 0
    %5506 = vmatpush1.bf16.msra.mxu0 0
    %5507 = vmatprep.subr.bf16.mxu0 0
    %5508 = vmatpush1.bf16.msra.mxu0 0
    %5509 = vmatprep.subr.bf16.mxu0 0
    %5510 = vmatpush1.bf16.msra.mxu0 0
    %5511 = vmatprep.subr.bf16.mxu0 0
    %5512 = vmatpush1.bf16.msra.mxu0 0
    %5513 = vmatprep.subr.bf16.mxu0 0
    %5514 = vmatpush1.bf16.msra.mxu0 0
    %5515 = vmatprep.subr.bf16.mxu0 0
    %5516 = vmatpush1.bf16.msra.mxu0 0
    %5517 = vmatprep.subr.bf16.mxu0 0
    %5518 = vmatpush1.bf16.msra.mxu0 0
    %5519 = vmatprep.subr.bf16.mxu0 0
    %5520 = vmatpush1.bf16.msra.mxu0 0
    %5521 = vmatprep.subr.bf16.mxu0 0
    %5522 = vmatpush1.bf16.msra.mxu0 0
    %5523 = vmatprep.subr.bf16.mxu0 0
    %5524 = vmatpush1.bf16.msra.mxu0 0
    %5525 = vmatprep.subr.bf16.mxu0 0
    %5526 = vmatpush1.bf16.msra.mxu0 0
    %5527 = vmatprep.mubr.bf16.mxu0 0
    %5528 = vmatmul.mubr.bf16.gmra.mrb[0].mxu0 %v5493
    %v5529 = vpop.f32.mrb[0].mxu0
    %v5530 = vadd.f32 %v5466, %v5529
    %v5531 = vpop.f32.mrb[0].mxu0
    %v5532 = vpop.f32.mrb[0].mxu0
    %v5533 = vpop.f32.mrb[0].mxu0
    %5534 = vdwg.mxu0
    %5535 = vst [vmem:[#allocation8] sm:$0x3] %v5530
    // Predicated region
    $region74: #{tpu_custom_call.1} parent=1 // pred_check
      _
    $region75: #{tpu_custom_call.1} parent=1 // pred_check_branch
      %5537 = sbr.rel (0) target = $region77
    $region76: #{tpu_custom_call.1} parent=1 // pred_region
      %s5539 = ssub.s32 32, 32
      %5540 = vsyncadd [#allocation4], %s5539
      %s5542 = sshll.u32 [#allocation8], 4
      %s5543 = int_to_ptr.vmem [resolvable:$true] %s5542
      %5545 = dma.vmem_to_hbm [thread:$0]  %s5543, 32, %s15, [#allocation4]
    $region77: #{tpu_custom_call.1} parent=1 // pred_fallthru
      _
    // Predicated region
    $region78: #{tpu_custom_call.1} parent=1 // pred_check
      _
    $region79: #{tpu_custom_call.1} parent=1 // pred_check_branch
      %5547 = sbr.rel (0) target = $region81
    $region80: #{tpu_custom_call.1} parent=1 // pred_region
      %5548 = dma.done [#allocation4], 32
    $region81: #{tpu_custom_call.1} parent=1 // pred_fallthru
      _
    %5549 = vsyncpa [#allocation3], 1
    %5550 = vsyncpa [#allocation6], 1
    %5551 = vsyncpa [#allocation4], 1

</llo_original>
